<compile_context>
chip_gen: v7x
topology: tpu7x:2x2x1
jax: 0.10.0
libtpu: 0.0.40
codegen_flags: <defaults>
</compile_context>

<pallas_src>
import functools

import jax
import jax.numpy as jnp
from jax.experimental import pallas as pl
from jax.experimental.pallas import tpu as pltpu


def _setonet_kernel(phi_in_ref, ys_ref,
                    wp1, bp1, wp2, bp2, wp3, bp3,
                    wr1, br1, wr2, br2,
                    wt1, bt1, wt2, bt2, wt3, bt3, wt4, bt4,
                    bias_ref, mavg_ref, rep_ref, ssel_ref,
                    out_ref, *, inv_n_sensors):
    f32 = jnp.float32
    cdtype = wp2.dtype                     # MXU operand dtype (bf16 by default)

    def dense(w_ref, b_ref, x, relu):
        # activations are (features, columns); weights (out, in) -> W @ x + b, f32 acc
        w = w_ref[...]
        h = jnp.dot(w, x.astype(w.dtype), preferred_element_type=f32) + b_ref[...]
        return jnp.maximum(h, 0.0) if relu else h

    def tiny_dense(w_ref, b_ref, x_ref):
        # First layers contract over the 2-3 wide coordinate dim: VPU broadcast
        # multiply-adds (free filler next to the MXU streams), all in f32.
        w = w_ref[...]
        x = x_ref[...]
        h = b_ref[...]                                  # (H, 1) -> broadcasts to (H, N)
        for k in range(w.shape[1]):
            h = h + w[:, k:k + 1] * x[k:k + 1, :]
        return jnp.maximum(h, 0.0)

    # ----- branch: phi hidden layers -> mean over sensors -> phi out -> rho -----
    h = tiny_dense(wp1, bp1, phi_in_ref)                # (Hphi, Bb*Ns)
    h = dense(wp2, bp2, h, True)                        # (Hphi, Bb*Ns)
    # Mean over each batch element's sensors BEFORE the affine phi output layer:
    #   mean_s(W3 h + b3) == W3 mean_s(h) + b3.
    # mavg is a 0/1 block selector (exact in bf16); 1/Ns applied as an f32 VPU scale.
    agg_h = jnp.dot(h.astype(cdtype), mavg_ref[...],
                    preferred_element_type=f32) * inv_n_sensors      # (Hphi, Bb)
    agg = dense(wp3, bp3, agg_h, False)                 # (PhiOut, Bb)
    r = dense(wr1, br1, agg, True)                      # (Hrho, Bb)
    branch = dense(wr2, br2, r, False)                  # (Z*P, Bb), rows (z,p)-blocked

    # ----- trunk: 4-layer MLP on query points (lane axis = Bb*Np) -----
    t = tiny_dense(wt1, bt1, ys_ref)                    # (Ht, Bb*Np)
    t = dense(wt2, bt2, t, True)
    t = dense(wt3, bt3, t, True)
    trunk = dense(wt4, bt4, t, False)                   # (Z*P, Bb*Np), rows (z,p)-blocked

    # ----- combine: G[z, b*Np+d] = sum_p branch[z*P+p, b] * trunk[z*P+p, b*Np+d] -----
    branch_rep = jnp.dot(branch.astype(cdtype), rep_ref[...],
                         preferred_element_type=f32)    # (Z*P, Bb*Np), branch per point
    prod = (trunk * branch_rep).astype(cdtype)
    g = jnp.dot(ssel_ref[...], prod,
                preferred_element_type=f32) + bias_ref[...]           # (Z, Bb*Np)
    out_ref[...] = g.astype(out_ref.dtype)


def _choose_block_b(B, n_sensors, n_points, target_cols=1024, max_cols=4096):
    """Pick how many batch elements to process per grid step (lane-dense, megacore-friendly)."""
    divs = [d for d in range(1, B + 1) if B % d == 0]
    valid = [d for d in divs
             if d == B or ((d * n_sensors) % 128 == 0 and (d * n_points) % 128 == 0)]

    def fits(d):
        return d * n_points <= max_cols and d * n_sensors <= max_cols

    # Prefer >= 2 grid steps, and an even step count so both v7x TensorCores get work.
    even_multi = [d for d in valid if (B // d) >= 2 and (B // d) % 2 == 0 and fits(d)]
    multi = [d for d in valid if (B // d) >= 2 and fits(d)]
    pool = even_multi or multi or [d for d in valid if fits(d)] or valid

    for d in pool:
        if d * n_points >= target_cols and d * n_sensors >= 128:
            return d
    return pool[-1]


def prepare_setonet_params(params, *, p, z, batch_size, n_sensors, n_points,
                           block_b=None, compute_dtype=jnp.bfloat16):
    """One-time parameter prep: weight transposes, (p,z)->(z,p) channel permutes,
    constant block matrices, block-size selection and VMEM budget."""
    f32 = jnp.float32
    B = batch_size

    bb = block_b if block_b is not None else _choose_block_b(B, n_sensors, n_points)
    assert B % bb == 0, "block_b must divide the batch size"
    assert bb == B or ((bb * n_sensors) % 128 == 0 and (bb * n_points) % 128 == 0), \
        "partial batch blocks need 128-multiple flattened column counts"

    d_phi_in = params['wp1'].shape[0]
    d_tgt = params['wt1'].shape[0]
    phi_h = params['wp2'].shape[0]
    trunk_h = params['wt2'].shape[0]
    rho_h = params['wr2'].shape[0]
    t4_h = params['wt4'].shape[0]

    # permute final-layer channels from PyTorch (p, z) interleave -> (z, p) blocks
    wr2 = params['wr2'].reshape(rho_h, p, z).transpose(0, 2, 1).reshape(rho_h, z * p)
    br2 = params['br2'].reshape(p, z).T.reshape(z * p)
    wt4 = params['wt4'].reshape(t4_h, p, z).transpose(0, 2, 1).reshape(t4_h, z * p)
    bt4 = params['bt4'].reshape(p, z).T.reshape(z * p)

    def w(a):        # MXU-layer weights: (out, in), compute dtype
        return a.T.astype(compute_dtype)

    def w32(a):      # first (coordinate) layers stay f32: computed on the VPU
        return a.T.astype(f32)

    def col(a):      # biases as (out, 1) f32 columns (broadcast over lanes)
        return a.reshape(-1, 1).astype(f32)

    # constant combine matrices: 0/1 entries -> exact in bf16 (1/Ns applied in-kernel, f32)
    mavg = jnp.kron(jnp.eye(bb, dtype=f32),
                    jnp.ones((n_sensors, 1), f32)).astype(compute_dtype)
    rep = jnp.kron(jnp.eye(bb, dtype=f32),
                   jnp.ones((1, n_points), f32)).astype(compute_dtype)
    ssel = jnp.kron(jnp.eye(z, dtype=f32),
                    jnp.ones((1, p), f32)).astype(compute_dtype)

    weight_args = (
        w32(params['wp1']), col(params['bp1']),
        w(params['wp2']), col(params['bp2']),
        w(params['wp3']), col(params['bp3']),
        w(params['wr1']), col(params['br1']),
        w(wr2), col(br2),
        w32(params['wt1']), col(params['bt1']),
        w(params['wt2']), col(params['bt2']),
        w(params['wt3']), col(params['bt3']),
        w(wt4), col(bt4),
        col(params['bias']), mavg, rep, ssel,
    )

    # VMEM budget: actual footprint (constants + double-buffered I/O + intermediates)
    # with 2x headroom, clamped to <= 32 MiB so it is also safe on v7x (64 MiB/TC).
    cols_s, cols_p = bb * n_sensors, bb * n_points
    const_bytes = sum(int(a.size) * a.dtype.itemsize for a in weight_args)
    io_bytes = 2 * 4 * (d_phi_in * cols_s + d_tgt * cols_p + z * cols_p)
    act_bytes = 4 * (2 * phi_h * cols_s + 2 * trunk_h * cols_p + 3 * z * p * cols_p)
    vmem_limit = int(min(max(2 * (const_bytes + io_bytes + act_bytes), 16 << 20),
                         32 << 20))

    return dict(weight_args=weight_args, block_b=bb, p=p, z=z,
                batch_size=B, n_sensors=n_sensors, n_points=n_points,
                d_phi_in=d_phi_in, d_tgt=d_tgt,
                vmem_limit_bytes=vmem_limit, compute_dtype=compute_dtype)


def setonet_forward_prepared(prep, xs, us, ys):
    """Fused SetONet forward using pre-prepared parameters."""
    B, Ns, Np = prep['batch_size'], prep['n_sensors'], prep['n_points']
    z, bb = prep['z'], prep['block_b']
    d_phi_in, d_tgt = prep['d_phi_in'], prep['d_tgt']
    n_blk = B // bb

    # pos_encoding_type='skip': phi input is concat(xs, us)
    phi_in = jnp.concatenate([xs, us], axis=-1)              # (B, Ns, d_phi_in)

    # column-major activations: features on sublanes, flattened batch*set axis on lanes
    phi_in_t = phi_in.reshape(B * Ns, d_phi_in).T            # (d_phi_in, B*Ns)
    ys_t = ys.reshape(B * Np, d_tgt).T                       # (d_tgt,   B*Np)

    # constants live whole in VMEM: one copy, not double-buffered per grid step
    const_spec = pl.BlockSpec(memory_space=pltpu.MemorySpace.VMEM)
    in_specs = [
        pl.BlockSpec((d_phi_in, bb * Ns), lambda i: (0, i)),
        pl.BlockSpec((d_tgt, bb * Np), lambda i: (0, i)),
    ] + [const_spec] * len(prep['weight_args'])
    out_specs = pl.BlockSpec((z, bb * Np), lambda i: (0, i))

    kernel = functools.partial(_setonet_kernel, inv_n_sensors=float(1.0 / Ns))

    out_t = pl.pallas_call(
        kernel,
        out_shape=jax.ShapeDtypeStruct((z, B * Np), jnp.float32),
        grid_spec=pltpu.PrefetchScalarGridSpec(
            num_scalar_prefetch=0,
            grid=(n_blk,),
            in_specs=in_specs,
            out_specs=out_specs,
        ),
        compiler_params=pltpu.CompilerParams(
            dimension_semantics=("parallel",),
            vmem_limit_bytes=prep['vmem_limit_bytes'],
        ),
    )(phi_in_t, ys_t, *prep['weight_args'])

    # (z, B*Np) -> (B, Np, z)
    return out_t.reshape(z, B, Np).transpose(1, 2, 0)


def setonet_forward(params, xs, us, ys, p, z, *, block_b=None,
                    compute_dtype=jnp.bfloat16):
    """Convenience wrapper: prepare parameters then run the fused forward."""
    B, Ns, _ = xs.shape
    Np = ys.shape[1]
    prep = prepare_setonet_params(params, p=p, z=z, batch_size=B,
                                  n_sensors=Ns, n_points=Np,
                                  block_b=block_b, compute_dtype=compute_dtype)
    return setonet_forward_prepared(prep, xs, us, ys)


def reference_forward(params, xs, us, ys, p, z):
    """Pure-JAX mirror of SetONet.forward (PyTorch semantics, mean aggregation)."""
    B, n_sensors, _ = xs.shape
    n_points = ys.shape[1]

    phi_in = jnp.concatenate([xs, us], axis=-1).reshape(B * n_sensors, -1)
    h = jax.nn.relu(phi_in @ params['wp1'] + params['bp1'])
    h = jax.nn.relu(h @ params['wp2'] + params['bp2'])
    phi = (h @ params['wp3'] + params['bp3']).reshape(B, n_sensors, -1)
    agg = phi.mean(axis=1)
    r = jax.nn.relu(agg @ params['wr1'] + params['br1'])
    rho = r @ params['wr2'] + params['br2']
    b = rho.reshape(B, p, z)

    t = ys.reshape(B * n_points, -1)
    t = jax.nn.relu(t @ params['wt1'] + params['bt1'])
    t = jax.nn.relu(t @ params['wt2'] + params['bt2'])
    t = jax.nn.relu(t @ params['wt3'] + params['bt3'])
    t = (t @ params['wt4'] + params['bt4']).reshape(B, n_points, p, z)

    G = jnp.einsum('bpz,bdpz->bdz', b, t)
    return G + params['bias']


if __name__ == "__main__":
    key = jax.random.PRNGKey(0)

    # Small shapes consistent with the module's forward (picked so the batch splits
    # into 2 lane-dense grid steps: bb=4 -> 128 sensor / 256 point columns per step).
    B, N_SENSORS, N_POINTS = 8, 32, 64
    IN_SRC, OUT_SRC, IN_TGT, OUT_TGT = 2, 1, 2, 2
    P = 32
    PHI_H, PHI_OUT, RHO_H, TRUNK_H = 64, 64, 64, 64      # n_trunk_layers = 4

    keys = jax.random.split(key, 22)

    def init(k, shape, scale=0.1):
        return jax.random.normal(k, shape, jnp.float32) * scale

    phi_in_dim = IN_SRC + OUT_SRC
    params = {
        'wp1': init(keys[0], (phi_in_dim, PHI_H)),   'bp1': init(keys[1], (PHI_H,)),
        'wp2': init(keys[2], (PHI_H, PHI_H)),        'bp2': init(keys[3], (PHI_H,)),
        'wp3': init(keys[4], (PHI_H, PHI_OUT)),      'bp3': init(keys[5], (PHI_OUT,)),
        'wr1': init(keys[6], (PHI_OUT, RHO_H)),      'br1': init(keys[7], (RHO_H,)),
        'wr2': init(keys[8], (RHO_H, OUT_TGT * P)),  'br2': init(keys[9], (OUT_TGT * P,)),
        'wt1': init(keys[10], (IN_TGT, TRUNK_H)),    'bt1': init(keys[11], (TRUNK_H,)),
        'wt2': init(keys[12], (TRUNK_H, TRUNK_H)),   'bt2': init(keys[13], (TRUNK_H,)),
        'wt3': init(keys[14], (TRUNK_H, TRUNK_H)),   'bt3': init(keys[15], (TRUNK_H,)),
        'wt4': init(keys[16], (TRUNK_H, OUT_TGT * P)), 'bt4': init(keys[17], (OUT_TGT * P,)),
        'bias': init(keys[18], (OUT_TGT,)),          # deeponet bias (~ randn * 0.1)
    }

    xs = jax.random.normal(keys[19], (B, N_SENSORS, IN_SRC), jnp.float32)
    us = jax.random.normal(keys[20], (B, N_SENSORS, OUT_SRC), jnp.float32)
    ys = jax.random.normal(keys[21], (B, N_POINTS, IN_TGT), jnp.float32)

    ref = reference_forward(params, xs, us, ys, P, OUT_TGT)

    # f32 MXU-operand path (tight tolerance)
    out = setonet_forward(params, xs, us, ys, P, OUT_TGT, compute_dtype=jnp.float32)
    out = jax.block_until_ready(out)
    assert out.shape == (B, N_POINTS, OUT_TGT), out.shape
    err = float(jnp.max(jnp.abs(out - ref)))
    assert jnp.allclose(out, ref, atol=5e-4, rtol=5e-4), f"f32 max abs err = {err}"

    # default bf16 MXU-operand path (all generations); f32 accumulation, looser tolerance
    out_bf16 = jax.block_until_ready(setonet_forward(params, xs, us, ys, P, OUT_TGT))
    err_bf16 = float(jnp.max(jnp.abs(out_bf16 - ref)))
    assert err_bf16 < 5e-2, f"bf16 max abs err = {err_bf16}"

    print("KERNEL_OK")
</pallas_src>

<mosaic_0001>
module attributes {stable_mosaic.version = 11 : i64} {
  func.func @_setonet_kernel(%arg0: i32, %arg1: memref<3x128xf32, #tpu.memory_space<vmem>>, %arg2: memref<2x256xf32, #tpu.memory_space<vmem>>, %arg3: memref<64x3xf32, #tpu.memory_space<vmem>>, %arg4: memref<64x1xf32, #tpu.memory_space<vmem>>, %arg5: memref<64x64xf32, #tpu.memory_space<vmem>>, %arg6: memref<64x1xf32, #tpu.memory_space<vmem>>, %arg7: memref<64x64xf32, #tpu.memory_space<vmem>>, %arg8: memref<64x1xf32, #tpu.memory_space<vmem>>, %arg9: memref<64x64xf32, #tpu.memory_space<vmem>>, %arg10: memref<64x1xf32, #tpu.memory_space<vmem>>, %arg11: memref<64x64xf32, #tpu.memory_space<vmem>>, %arg12: memref<64x1xf32, #tpu.memory_space<vmem>>, %arg13: memref<64x2xf32, #tpu.memory_space<vmem>>, %arg14: memref<64x1xf32, #tpu.memory_space<vmem>>, %arg15: memref<64x64xf32, #tpu.memory_space<vmem>>, %arg16: memref<64x1xf32, #tpu.memory_space<vmem>>, %arg17: memref<64x64xf32, #tpu.memory_space<vmem>>, %arg18: memref<64x1xf32, #tpu.memory_space<vmem>>, %arg19: memref<64x64xf32, #tpu.memory_space<vmem>>, %arg20: memref<64x1xf32, #tpu.memory_space<vmem>>, %arg21: memref<2x1xf32, #tpu.memory_space<vmem>>, %arg22: memref<128x4xf32, #tpu.memory_space<vmem>>, %arg23: memref<4x256xf32, #tpu.memory_space<vmem>>, %arg24: memref<2x64xf32, #tpu.memory_space<vmem>>, %arg25: memref<2x256xf32, #tpu.memory_space<vmem>>) attributes {dimension_semantics = [#tpu.dimension_semantics<parallel>], iteration_bounds = array<i64: 2>, scalar_prefetch = 0 : i64, scratch_operands = 0 : i64, tpu.core_type = #tpu.core_type<tc>, window_params = [{transform_indices = @transform_0, window_bounds = array<i64: 3, 128>}, {transform_indices = @transform_1, window_bounds = array<i64: 2, 256>}, {pipeline_mode = #tpu.pipeline_mode<synchronous>, transform_indices = @transform_2, window_bounds = array<i64: 64, 3>}, {pipeline_mode = #tpu.pipeline_mode<synchronous>, transform_indices = @transform_3, window_bounds = array<i64: 64, 1>}, {pipeline_mode = #tpu.pipeline_mode<synchronous>, transform_indices = @transform_4, window_bounds = array<i64: 64, 64>}, {pipeline_mode = #tpu.pipeline_mode<synchronous>, transform_indices = @transform_5, window_bounds = array<i64: 64, 1>}, {pipeline_mode = #tpu.pipeline_mode<synchronous>, transform_indices = @transform_6, window_bounds = array<i64: 64, 64>}, {pipeline_mode = #tpu.pipeline_mode<synchronous>, transform_indices = @transform_7, window_bounds = array<i64: 64, 1>}, {pipeline_mode = #tpu.pipeline_mode<synchronous>, transform_indices = @transform_8, window_bounds = array<i64: 64, 64>}, {pipeline_mode = #tpu.pipeline_mode<synchronous>, transform_indices = @transform_9, window_bounds = array<i64: 64, 1>}, {pipeline_mode = #tpu.pipeline_mode<synchronous>, transform_indices = @transform_10, window_bounds = array<i64: 64, 64>}, {pipeline_mode = #tpu.pipeline_mode<synchronous>, transform_indices = @transform_11, window_bounds = array<i64: 64, 1>}, {pipeline_mode = #tpu.pipeline_mode<synchronous>, transform_indices = @transform_12, window_bounds = array<i64: 64, 2>}, {pipeline_mode = #tpu.pipeline_mode<synchronous>, transform_indices = @transform_13, window_bounds = array<i64: 64, 1>}, {pipeline_mode = #tpu.pipeline_mode<synchronous>, transform_indices = @transform_14, window_bounds = array<i64: 64, 64>}, {pipeline_mode = #tpu.pipeline_mode<synchronous>, transform_indices = @transform_15, window_bounds = array<i64: 64, 1>}, {pipeline_mode = #tpu.pipeline_mode<synchronous>, transform_indices = @transform_16, window_bounds = array<i64: 64, 64>}, {pipeline_mode = #tpu.pipeline_mode<synchronous>, transform_indices = @transform_17, window_bounds = array<i64: 64, 1>}, {pipeline_mode = #tpu.pipeline_mode<synchronous>, transform_indices = @transform_18, window_bounds = array<i64: 64, 64>}, {pipeline_mode = #tpu.pipeline_mode<synchronous>, transform_indices = @transform_19, window_bounds = array<i64: 64, 1>}, {pipeline_mode = #tpu.pipeline_mode<synchronous>, transform_indices = @transform_20, window_bounds = array<i64: 2, 1>}, {pipeline_mode = #tpu.pipeline_mode<synchronous>, transform_indices = @transform_21, window_bounds = array<i64: 128, 4>}, {pipeline_mode = #tpu.pipeline_mode<synchronous>, transform_indices = @transform_22, window_bounds = array<i64: 4, 256>}, {pipeline_mode = #tpu.pipeline_mode<synchronous>, transform_indices = @transform_23, window_bounds = array<i64: 2, 64>}, {transform_indices = @transform_24, window_bounds = array<i64: 2, 256>}]} {
    %c0 = arith.constant 0 : index
    %c0_0 = arith.constant 0 : index
    %0 = vector.load %arg3[%c0, %c0_0] : memref<64x3xf32, #tpu.memory_space<vmem>>, vector<64x3xf32>
    %c0_1 = arith.constant 0 : index
    %c0_2 = arith.constant 0 : index
    %1 = vector.load %arg1[%c0_1, %c0_2] : memref<3x128xf32, #tpu.memory_space<vmem>>, vector<3x128xf32>
    %c0_3 = arith.constant 0 : index
    %c0_4 = arith.constant 0 : index
    %2 = vector.load %arg4[%c0_3, %c0_4] : memref<64x1xf32, #tpu.memory_space<vmem>>, vector<64x1xf32>
    %3 = vector.extract_strided_slice %0 {offsets = [0, 0], sizes = [64, 1], strides = [1, 1]} : vector<64x3xf32> to vector<64x1xf32>
    %4 = vector.extract_strided_slice %1 {offsets = [0, 0], sizes = [1, 128], strides = [1, 1]} : vector<3x128xf32> to vector<1x128xf32>
    %5 = vector.broadcast %3 : vector<64x1xf32> to vector<64x128xf32>
    %6 = vector.broadcast %4 : vector<1x128xf32> to vector<64x128xf32>
    %7 = arith.mulf %5, %6 : vector<64x128xf32>
    %8 = vector.broadcast %2 : vector<64x1xf32> to vector<64x128xf32>
    %9 = arith.addf %8, %7 : vector<64x128xf32>
    %10 = vector.extract_strided_slice %0 {offsets = [0, 1], sizes = [64, 1], strides = [1, 1]} : vector<64x3xf32> to vector<64x1xf32>
    %11 = vector.extract_strided_slice %1 {offsets = [1, 0], sizes = [1, 128], strides = [1, 1]} : vector<3x128xf32> to vector<1x128xf32>
    %12 = vector.broadcast %10 : vector<64x1xf32> to vector<64x128xf32>
    %13 = vector.broadcast %11 : vector<1x128xf32> to vector<64x128xf32>
    %14 = arith.mulf %12, %13 : vector<64x128xf32>
    %15 = arith.addf %9, %14 : vector<64x128xf32>
    %16 = vector.extract_strided_slice %0 {offsets = [0, 2], sizes = [64, 1], strides = [1, 1]} : vector<64x3xf32> to vector<64x1xf32>
    %17 = vector.extract_strided_slice %1 {offsets = [2, 0], sizes = [1, 128], strides = [1, 1]} : vector<3x128xf32> to vector<1x128xf32>
    %18 = vector.broadcast %16 : vector<64x1xf32> to vector<64x128xf32>
    %19 = vector.broadcast %17 : vector<1x128xf32> to vector<64x128xf32>
    %20 = arith.mulf %18, %19 : vector<64x128xf32>
    %21 = arith.addf %15, %20 : vector<64x128xf32>
    %cst = arith.constant 0.000000e+00 : f32
    %22 = vector.broadcast %cst : f32 to vector<64x128xf32>
    %23 = arith.maximumf %21, %22 : vector<64x128xf32>
    %c0_5 = arith.constant 0 : index
    %c0_6 = arith.constant 0 : index
    %24 = vector.load %arg5[%c0_5, %c0_6] : memref<64x64xf32, #tpu.memory_space<vmem>>, vector<64x64xf32>
    %cst_7 = arith.constant dense<0.000000e+00> : vector<64x128xf32>
    %25 = tpu.matmul %24, %23, %cst_7 {dimension_numbers = #tpu.dot_dimension_numbers<[1], [0], [0], [1], [0, 0, 1, 1], [], []>} : vector<64x64xf32>, vector<64x128xf32>, vector<64x128xf32> -> vector<64x128xf32>
    %c0_8 = arith.constant 0 : index
    %c0_9 = arith.constant 0 : index
    %26 = vector.load %arg6[%c0_8, %c0_9] : memref<64x1xf32, #tpu.memory_space<vmem>>, vector<64x1xf32>
    %27 = vector.broadcast %26 : vector<64x1xf32> to vector<64x128xf32>
    %28 = arith.addf %25, %27 : vector<64x128xf32>
    %cst_10 = arith.constant 0.000000e+00 : f32
    %29 = vector.broadcast %cst_10 : f32 to vector<64x128xf32>
    %30 = arith.maximumf %28, %29 : vector<64x128xf32>
    %c0_11 = arith.constant 0 : index
    %c0_12 = arith.constant 0 : index
    %31 = vector.load %arg22[%c0_11, %c0_12] : memref<128x4xf32, #tpu.memory_space<vmem>>, vector<128x4xf32>
    %cst_13 = arith.constant dense<0.000000e+00> : vector<64x4xf32>
    %32 = tpu.matmul %30, %31, %cst_13 {dimension_numbers = #tpu.dot_dimension_numbers<[1], [0], [0], [1], [0, 0, 1, 1], [], []>} : vector<64x128xf32>, vector<128x4xf32>, vector<64x4xf32> -> vector<64x4xf32>
    %cst_14 = arith.constant 3.125000e-02 : f32
    %33 = vector.broadcast %cst_14 : f32 to vector<64x4xf32>
    %34 = arith.mulf %32, %33 : vector<64x4xf32>
    %c0_15 = arith.constant 0 : index
    %c0_16 = arith.constant 0 : index
    %35 = vector.load %arg7[%c0_15, %c0_16] : memref<64x64xf32, #tpu.memory_space<vmem>>, vector<64x64xf32>
    %cst_17 = arith.constant dense<0.000000e+00> : vector<64x4xf32>
    %36 = tpu.matmul %35, %34, %cst_17 {dimension_numbers = #tpu.dot_dimension_numbers<[1], [0], [0], [1], [0, 0, 1, 1], [], []>} : vector<64x64xf32>, vector<64x4xf32>, vector<64x4xf32> -> vector<64x4xf32>
    %c0_18 = arith.constant 0 : index
    %c0_19 = arith.constant 0 : index
    %37 = vector.load %arg8[%c0_18, %c0_19] : memref<64x1xf32, #tpu.memory_space<vmem>>, vector<64x1xf32>
    %38 = vector.broadcast %37 : vector<64x1xf32> to vector<64x4xf32>
    %39 = arith.addf %36, %38 : vector<64x4xf32>
    %c0_20 = arith.constant 0 : index
    %c0_21 = arith.constant 0 : index
    %40 = vector.load %arg9[%c0_20, %c0_21] : memref<64x64xf32, #tpu.memory_space<vmem>>, vector<64x64xf32>
    %cst_22 = arith.constant dense<0.000000e+00> : vector<64x4xf32>
    %41 = tpu.matmul %40, %39, %cst_22 {dimension_numbers = #tpu.dot_dimension_numbers<[1], [0], [0], [1], [0, 0, 1, 1], [], []>} : vector<64x64xf32>, vector<64x4xf32>, vector<64x4xf32> -> vector<64x4xf32>
    %c0_23 = arith.constant 0 : index
    %c0_24 = arith.constant 0 : index
    %42 = vector.load %arg10[%c0_23, %c0_24] : memref<64x1xf32, #tpu.memory_space<vmem>>, vector<64x1xf32>
    %43 = vector.broadcast %42 : vector<64x1xf32> to vector<64x4xf32>
    %44 = arith.addf %41, %43 : vector<64x4xf32>
    %cst_25 = arith.constant 0.000000e+00 : f32
    %45 = vector.broadcast %cst_25 : f32 to vector<64x4xf32>
    %46 = arith.maximumf %44, %45 : vector<64x4xf32>
    %c0_26 = arith.constant 0 : index
    %c0_27 = arith.constant 0 : index
    %47 = vector.load %arg11[%c0_26, %c0_27] : memref<64x64xf32, #tpu.memory_space<vmem>>, vector<64x64xf32>
    %cst_28 = arith.constant dense<0.000000e+00> : vector<64x4xf32>
    %48 = tpu.matmul %47, %46, %cst_28 {dimension_numbers = #tpu.dot_dimension_numbers<[1], [0], [0], [1], [0, 0, 1, 1], [], []>} : vector<64x64xf32>, vector<64x4xf32>, vector<64x4xf32> -> vector<64x4xf32>
    %c0_29 = arith.constant 0 : index
    %c0_30 = arith.constant 0 : index
    %49 = vector.load %arg12[%c0_29, %c0_30] : memref<64x1xf32, #tpu.memory_space<vmem>>, vector<64x1xf32>
    %50 = vector.broadcast %49 : vector<64x1xf32> to vector<64x4xf32>
    %51 = arith.addf %48, %50 : vector<64x4xf32>
    %c0_31 = arith.constant 0 : index
    %c0_32 = arith.constant 0 : index
    %52 = vector.load %arg13[%c0_31, %c0_32] : memref<64x2xf32, #tpu.memory_space<vmem>>, vector<64x2xf32>
    %c0_33 = arith.constant 0 : index
    %c0_34 = arith.constant 0 : index
    %53 = vector.load %arg2[%c0_33, %c0_34] : memref<2x256xf32, #tpu.memory_space<vmem>>, vector<2x256xf32>
    %c0_35 = arith.constant 0 : index
    %c0_36 = arith.constant 0 : index
    %54 = vector.load %arg14[%c0_35, %c0_36] : memref<64x1xf32, #tpu.memory_space<vmem>>, vector<64x1xf32>
    %55 = vector.extract_strided_slice %52 {offsets = [0, 0], sizes = [64, 1], strides = [1, 1]} : vector<64x2xf32> to vector<64x1xf32>
    %56 = vector.extract_strided_slice %53 {offsets = [0, 0], sizes = [1, 256], strides = [1, 1]} : vector<2x256xf32> to vector<1x256xf32>
    %57 = vector.broadcast %55 : vector<64x1xf32> to vector<64x256xf32>
    %58 = vector.broadcast %56 : vector<1x256xf32> to vector<64x256xf32>
    %59 = arith.mulf %57, %58 : vector<64x256xf32>
    %60 = vector.broadcast %54 : vector<64x1xf32> to vector<64x256xf32>
    %61 = arith.addf %60, %59 : vector<64x256xf32>
    %62 = vector.extract_strided_slice %52 {offsets = [0, 1], sizes = [64, 1], strides = [1, 1]} : vector<64x2xf32> to vector<64x1xf32>
    %63 = vector.extract_strided_slice %53 {offsets = [1, 0], sizes = [1, 256], strides = [1, 1]} : vector<2x256xf32> to vector<1x256xf32>
    %64 = vector.broadcast %62 : vector<64x1xf32> to vector<64x256xf32>
    %65 = vector.broadcast %63 : vector<1x256xf32> to vector<64x256xf32>
    %66 = arith.mulf %64, %65 : vector<64x256xf32>
    %67 = arith.addf %61, %66 : vector<64x256xf32>
    %cst_37 = arith.constant 0.000000e+00 : f32
    %68 = vector.broadcast %cst_37 : f32 to vector<64x256xf32>
    %69 = arith.maximumf %67, %68 : vector<64x256xf32>
    %c0_38 = arith.constant 0 : index
    %c0_39 = arith.constant 0 : index
    %70 = vector.load %arg15[%c0_38, %c0_39] : memref<64x64xf32, #tpu.memory_space<vmem>>, vector<64x64xf32>
    %cst_40 = arith.constant dense<0.000000e+00> : vector<64x256xf32>
    %71 = tpu.matmul %70, %69, %cst_40 {dimension_numbers = #tpu.dot_dimension_numbers<[1], [0], [0], [1], [0, 0, 1, 1], [], []>} : vector<64x64xf32>, vector<64x256xf32>, vector<64x256xf32> -> vector<64x256xf32>
    %c0_41 = arith.constant 0 : index
    %c0_42 = arith.constant 0 : index
    %72 = vector.load %arg16[%c0_41, %c0_42] : memref<64x1xf32, #tpu.memory_space<vmem>>, vector<64x1xf32>
    %73 = vector.broadcast %72 : vector<64x1xf32> to vector<64x256xf32>
    %74 = arith.addf %71, %73 : vector<64x256xf32>
    %cst_43 = arith.constant 0.000000e+00 : f32
    %75 = vector.broadcast %cst_43 : f32 to vector<64x256xf32>
    %76 = arith.maximumf %74, %75 : vector<64x256xf32>
    %c0_44 = arith.constant 0 : index
    %c0_45 = arith.constant 0 : index
    %77 = vector.load %arg17[%c0_44, %c0_45] : memref<64x64xf32, #tpu.memory_space<vmem>>, vector<64x64xf32>
    %cst_46 = arith.constant dense<0.000000e+00> : vector<64x256xf32>
    %78 = tpu.matmul %77, %76, %cst_46 {dimension_numbers = #tpu.dot_dimension_numbers<[1], [0], [0], [1], [0, 0, 1, 1], [], []>} : vector<64x64xf32>, vector<64x256xf32>, vector<64x256xf32> -> vector<64x256xf32>
    %c0_47 = arith.constant 0 : index
    %c0_48 = arith.constant 0 : index
    %79 = vector.load %arg18[%c0_47, %c0_48] : memref<64x1xf32, #tpu.memory_space<vmem>>, vector<64x1xf32>
    %80 = vector.broadcast %79 : vector<64x1xf32> to vector<64x256xf32>
    %81 = arith.addf %78, %80 : vector<64x256xf32>
    %cst_49 = arith.constant 0.000000e+00 : f32
    %82 = vector.broadcast %cst_49 : f32 to vector<64x256xf32>
    %83 = arith.maximumf %81, %82 : vector<64x256xf32>
    %c0_50 = arith.constant 0 : index
    %c0_51 = arith.constant 0 : index
    %84 = vector.load %arg19[%c0_50, %c0_51] : memref<64x64xf32, #tpu.memory_space<vmem>>, vector<64x64xf32>
    %cst_52 = arith.constant dense<0.000000e+00> : vector<64x256xf32>
    %85 = tpu.matmul %84, %83, %cst_52 {dimension_numbers = #tpu.dot_dimension_numbers<[1], [0], [0], [1], [0, 0, 1, 1], [], []>} : vector<64x64xf32>, vector<64x256xf32>, vector<64x256xf32> -> vector<64x256xf32>
    %c0_53 = arith.constant 0 : index
    %c0_54 = arith.constant 0 : index
    %86 = vector.load %arg20[%c0_53, %c0_54] : memref<64x1xf32, #tpu.memory_space<vmem>>, vector<64x1xf32>
    %87 = vector.broadcast %86 : vector<64x1xf32> to vector<64x256xf32>
    %88 = arith.addf %85, %87 : vector<64x256xf32>
    %c0_55 = arith.constant 0 : index
    %c0_56 = arith.constant 0 : index
    %89 = vector.load %arg23[%c0_55, %c0_56] : memref<4x256xf32, #tpu.memory_space<vmem>>, vector<4x256xf32>
    %cst_57 = arith.constant dense<0.000000e+00> : vector<64x256xf32>
    %90 = tpu.matmul %51, %89, %cst_57 {dimension_numbers = #tpu.dot_dimension_numbers<[1], [0], [0], [1], [0, 0, 1, 1], [], []>} : vector<64x4xf32>, vector<4x256xf32>, vector<64x256xf32> -> vector<64x256xf32>
    %91 = arith.mulf %88, %90 : vector<64x256xf32>
    %c0_58 = arith.constant 0 : index
    %c0_59 = arith.constant 0 : index
    %92 = vector.load %arg24[%c0_58, %c0_59] : memref<2x64xf32, #tpu.memory_space<vmem>>, vector<2x64xf32>
    %cst_60 = arith.constant dense<0.000000e+00> : vector<2x256xf32>
    %93 = tpu.matmul %92, %91, %cst_60 {dimension_numbers = #tpu.dot_dimension_numbers<[1], [0], [0], [1], [0, 0, 1, 1], [], []>} : vector<2x64xf32>, vector<64x256xf32>, vector<2x256xf32> -> vector<2x256xf32>
    %c0_61 = arith.constant 0 : index
    %c0_62 = arith.constant 0 : index
    %94 = vector.load %arg21[%c0_61, %c0_62] : memref<2x1xf32, #tpu.memory_space<vmem>>, vector<2x1xf32>
    %95 = vector.broadcast %94 : vector<2x1xf32> to vector<2x256xf32>
    %96 = arith.addf %93, %95 : vector<2x256xf32>
    %c0_63 = arith.constant 0 : index
    %c0_64 = arith.constant 0 : index
    %97 = vector.load %arg25[%c0_63, %c0_64] : memref<2x256xf32, #tpu.memory_space<vmem>>, vector<2x256xf32>
    tpu.vector_store %arg25[%c0_63, %c0_64], %96 {strides = array<i32>} : memref<2x256xf32, #tpu.memory_space<vmem>>, vector<2x256xf32>,
    return
  }
  func.func @transform_0(%arg0: i32) -> (i32, i32) {
    %c0_i32 = arith.constant 0 : i32
    %c0_i32_0 = arith.constant 0 : i32
    return %c0_i32, %arg0 : i32, i32
  }
  func.func @transform_1(%arg0: i32) -> (i32, i32) {
    %c0_i32 = arith.constant 0 : i32
    %c0_i32_0 = arith.constant 0 : i32
    return %c0_i32, %arg0 : i32, i32
  }
  func.func @transform_2(%arg0: i32) -> (i32, i32) {
    %c0_i32 = arith.constant 0 : i32
    %c0_i32_0 = arith.constant 0 : i32
    %c0_i32_1 = arith.constant 0 : i32
    return %c0_i32, %c0_i32_0 : i32, i32
  }
  func.func @transform_3(%arg0: i32) -> (i32, i32) {
    %c0_i32 = arith.constant 0 : i32
    %c0_i32_0 = arith.constant 0 : i32
    %c0_i32_1 = arith.constant 0 : i32
    return %c0_i32, %c0_i32_0 : i32, i32
  }
  func.func @transform_4(%arg0: i32) -> (i32, i32) {
    %c0_i32 = arith.constant 0 : i32
    %c0_i32_0 = arith.constant 0 : i32
    %c0_i32_1 = arith.constant 0 : i32
    return %c0_i32, %c0_i32_0 : i32, i32
  }
  func.func @transform_5(%arg0: i32) -> (i32, i32) {
    %c0_i32 = arith.constant 0 : i32
    %c0_i32_0 = arith.constant 0 : i32
    %c0_i32_1 = arith.constant 0 : i32
    return %c0_i32, %c0_i32_0 : i32, i32
  }
  func.func @transform_6(%arg0: i32) -> (i32, i32) {
    %c0_i32 = arith.constant 0 : i32
    %c0_i32_0 = arith.constant 0 : i32
    %c0_i32_1 = arith.constant 0 : i32
    return %c0_i32, %c0_i32_0 : i32, i32
  }
  func.func @transform_7(%arg0: i32) -> (i32, i32) {
    %c0_i32 = arith.constant 0 : i32
    %c0_i32_0 = arith.constant 0 : i32
    %c0_i32_1 = arith.constant 0 : i32
    return %c0_i32, %c0_i32_0 : i32, i32
  }
  func.func @transform_8(%arg0: i32) -> (i32, i32) {
    %c0_i32 = arith.constant 0 : i32
    %c0_i32_0 = arith.constant 0 : i32
    %c0_i32_1 = arith.constant 0 : i32
    return %c0_i32, %c0_i32_0 : i32, i32
  }
  func.func @transform_9(%arg0: i32) -> (i32, i32) {
    %c0_i32 = arith.constant 0 : i32
    %c0_i32_0 = arith.constant 0 : i32
    %c0_i32_1 = arith.constant 0 : i32
    return %c0_i32, %c0_i32_0 : i32, i32
  }
  func.func @transform_10(%arg0: i32) -> (i32, i32) {
    %c0_i32 = arith.constant 0 : i32
    %c0_i32_0 = arith.constant 0 : i32
    %c0_i32_1 = arith.constant 0 : i32
    return %c0_i32, %c0_i32_0 : i32, i32
  }
  func.func @transform_11(%arg0: i32) -> (i32, i32) {
    %c0_i32 = arith.constant 0 : i32
    %c0_i32_0 = arith.constant 0 : i32
    %c0_i32_1 = arith.constant 0 : i32
    return %c0_i32, %c0_i32_0 : i32, i32
  }
  func.func @transform_12(%arg0: i32) -> (i32, i32) {
    %c0_i32 = arith.constant 0 : i32
    %c0_i32_0 = arith.constant 0 : i32
    %c0_i32_1 = arith.constant 0 : i32
    return %c0_i32, %c0_i32_0 : i32, i32
  }
  func.func @transform_13(%arg0: i32) -> (i32, i32) {
    %c0_i32 = arith.constant 0 : i32
    %c0_i32_0 = arith.constant 0 : i32
    %c0_i32_1 = arith.constant 0 : i32
    return %c0_i32, %c0_i32_0 : i32, i32
  }
  func.func @transform_14(%arg0: i32) -> (i32, i32) {
    %c0_i32 = arith.constant 0 : i32
    %c0_i32_0 = arith.constant 0 : i32
    %c0_i32_1 = arith.constant 0 : i32
    return %c0_i32, %c0_i32_0 : i32, i32
  }
  func.func @transform_15(%arg0: i32) -> (i32, i32) {
    %c0_i32 = arith.constant 0 : i32
    %c0_i32_0 = arith.constant 0 : i32
    %c0_i32_1 = arith.constant 0 : i32
    return %c0_i32, %c0_i32_0 : i32, i32
  }
  func.func @transform_16(%arg0: i32) -> (i32, i32) {
    %c0_i32 = arith.constant 0 : i32
    %c0_i32_0 = arith.constant 0 : i32
    %c0_i32_1 = arith.constant 0 : i32
    return %c0_i32, %c0_i32_0 : i32, i32
  }
  func.func @transform_17(%arg0: i32) -> (i32, i32) {
    %c0_i32 = arith.constant 0 : i32
    %c0_i32_0 = arith.constant 0 : i32
    %c0_i32_1 = arith.constant 0 : i32
    return %c0_i32, %c0_i32_0 : i32, i32
  }
  func.func @transform_18(%arg0: i32) -> (i32, i32) {
    %c0_i32 = arith.constant 0 : i32
    %c0_i32_0 = arith.constant 0 : i32
    %c0_i32_1 = arith.constant 0 : i32
    return %c0_i32, %c0_i32_0 : i32, i32
  }
  func.func @transform_19(%arg0: i32) -> (i32, i32) {
    %c0_i32 = arith.constant 0 : i32
    %c0_i32_0 = arith.constant 0 : i32
    %c0_i32_1 = arith.constant 0 : i32
    return %c0_i32, %c0_i32_0 : i32, i32
  }
  func.func @transform_20(%arg0: i32) -> (i32, i32) {
    %c0_i32 = arith.constant 0 : i32
    %c0_i32_0 = arith.constant 0 : i32
    %c0_i32_1 = arith.constant 0 : i32
    return %c0_i32, %c0_i32_0 : i32, i32
  }
  func.func @transform_21(%arg0: i32) -> (i32, i32) {
    %c0_i32 = arith.constant 0 : i32
    %c0_i32_0 = arith.constant 0 : i32
    %c0_i32_1 = arith.constant 0 : i32
    return %c0_i32, %c0_i32_0 : i32, i32
  }
  func.func @transform_22(%arg0: i32) -> (i32, i32) {
    %c0_i32 = arith.constant 0 : i32
    %c0_i32_0 = arith.constant 0 : i32
    %c0_i32_1 = arith.constant 0 : i32
    return %c0_i32, %c0_i32_0 : i32, i32
  }
  func.func @transform_23(%arg0: i32) -> (i32, i32) {
    %c0_i32 = arith.constant 0 : i32
    %c0_i32_0 = arith.constant 0 : i32
    %c0_i32_1 = arith.constant 0 : i32
    return %c0_i32, %c0_i32_0 : i32, i32
  }
  func.func @transform_24(%arg0: i32) -> (i32, i32) {
    %c0_i32 = arith.constant 0 : i32
    %c0_i32_0 = arith.constant 0 : i32
    return %c0_i32, %arg0 : i32, i32
  }
}

</mosaic_0001>

<llo_original>
// kernel: tpu_custom_call.1
$region0: #{tpu_custom_call.1}
  #allocation0 [shape = 'u32[]', space=smem, size = 0x4, offset = 0x4, fixed_abs, tag = 'smem constant byte address 0x4 - core index']
  #allocation1 [shape = 'u32[144,128]{1,0:T(1,128)}', space=vmem, size = 0x12000, scoped, tag = 'internal scratch']
  %s0 = inlined_call_operand.vmem [shape: f32[3,256], index: 0, kind: input, shape index: {}]
  %s1 = inlined_call_operand.vmem [shape: f32[2,512], index: 1, kind: input, shape index: {}]
  %s2 = inlined_call_operand.vmem [shape: f32[64,3], index: 2, kind: input, shape index: {}]
  %s3 = inlined_call_operand.vmem [shape: f32[64,1], index: 3, kind: input, shape index: {}]
  %s4 = inlined_call_operand.vmem [shape: f32[64,64], index: 4, kind: input, shape index: {}]
  %s5 = inlined_call_operand.vmem [shape: f32[64,1], index: 5, kind: input, shape index: {}]
  %s6 = inlined_call_operand.vmem [shape: f32[64,64], index: 6, kind: input, shape index: {}]
  %s7 = inlined_call_operand.vmem [shape: f32[64,1], index: 7, kind: input, shape index: {}]
  %s8 = inlined_call_operand.vmem [shape: f32[64,64], index: 8, kind: input, shape index: {}]
  %s9 = inlined_call_operand.vmem [shape: f32[64,1], index: 9, kind: input, shape index: {}]
  %s10 = inlined_call_operand.vmem [shape: f32[64,64], index: 10, kind: input, shape index: {}]
  %s11 = inlined_call_operand.vmem [shape: f32[64,1], index: 11, kind: input, shape index: {}]
  %s12 = inlined_call_operand.vmem [shape: f32[64,2], index: 12, kind: input, shape index: {}]
  %s13 = inlined_call_operand.vmem [shape: f32[64,1], index: 13, kind: input, shape index: {}]
  %s14 = inlined_call_operand.vmem [shape: f32[64,64], index: 14, kind: input, shape index: {}]
  %s15 = inlined_call_operand.vmem [shape: f32[64,1], index: 15, kind: input, shape index: {}]
  %s16 = inlined_call_operand.vmem [shape: f32[64,64], index: 16, kind: input, shape index: {}]
  %s17 = inlined_call_operand.vmem [shape: f32[64,1], index: 17, kind: input, shape index: {}]
  %s18 = inlined_call_operand.vmem [shape: f32[64,64], index: 18, kind: input, shape index: {}]
  %s19 = inlined_call_operand.vmem [shape: f32[64,1], index: 19, kind: input, shape index: {}]
  %s20 = inlined_call_operand.vmem [shape: f32[2,1], index: 20, kind: input, shape index: {}]
  %s21 = inlined_call_operand.vmem [shape: f32[128,4], index: 21, kind: input, shape index: {}]
  %s22 = inlined_call_operand.vmem [shape: f32[4,256], index: 22, kind: input, shape index: {}]
  %s23 = inlined_call_operand.vmem [shape: f32[2,64], index: 23, kind: input, shape index: {}]
  %s24 = inlined_call_operand.hbm [shape: f32[2,512], index: 24, kind: output, shape index: {}]
  %s25 = sld [smem:[#allocation0]]
  $region129: #{tpu_custom_call.1} parent=0
    _
  %s27 = ssub.s32 1, %s25
  %s28 = scalar_select 0, %s27, %s25
  $region1: #{tpu_custom_call.1} parent=0
    #allocation2 [shape = 'u8[4096]{0}', space=vmem, size = 0x1000, scoped, tag = 'output window, operand 0']
    #allocation3 [shape = 's32[2]{0}', space=sflag, size = 0x8, scoped, tag = 'scoped memory for tpu_custom_call.1']
    %29 = vsyncpa [#allocation3], 0
    %s30 = scalar_lea.sflag [#allocation3], 1
    %31 = vsyncpa %s30, 0
    loop: start=0, step=1, limit=4
    $region2: #{tpu_custom_call.1} parent=1 // loop_pre_header
      _
    $region3: #{tpu_custom_call.1} parent=1 // loop_header
      %s33 = sphi 0, %s37
      %p34 = scmp.ge.s32.totalorder %s33, 4
      %s43 = sphi 0, %s45
      %s46 = sphi 0, %s43
      %s47 = sphi 0, %s46
      %s63 = sphi 0, %s47
      %s69 = sphi 0, %s71
      %s72 = sphi 0, %s69
      %s73 = sphi 0, %s72
      %s89 = sphi 0, %s73
      %s93 = sphi 0, %s93
      %s95 = sphi 0, %s93
      %s96 = sphi 0, %s95
      %s110 = sphi 0, %s96
      %s114 = sphi 0, %s114
      %s116 = sphi 0, %s114
      %s117 = sphi 0, %s116
      %s131 = sphi 0, %s117
      %s135 = sphi 0, %s135
      %s137 = sphi 0, %s135
      %s138 = sphi 0, %s137
      %s152 = sphi 0, %s138
      %s156 = sphi 0, %s156
      %s158 = sphi 0, %s156
      %s159 = sphi 0, %s158
      %s173 = sphi 0, %s159
      %s177 = sphi 0, %s177
      %s179 = sphi 0, %s177
      %s180 = sphi 0, %s179
      %s194 = sphi 0, %s180
      %s198 = sphi 0, %s198
      %s200 = sphi 0, %s198
      %s201 = sphi 0, %s200
      %s215 = sphi 0, %s201
      %s219 = sphi 0, %s219
      %s221 = sphi 0, %s219
      %s222 = sphi 0, %s221
      %s236 = sphi 0, %s222
      %s240 = sphi 0, %s240
      %s242 = sphi 0, %s240
      %s243 = sphi 0, %s242
      %s257 = sphi 0, %s243
      %s261 = sphi 0, %s261
      %s263 = sphi 0, %s261
      %s264 = sphi 0, %s263
      %s278 = sphi 0, %s264
      %s282 = sphi 0, %s282
      %s284 = sphi 0, %s282
      %s285 = sphi 0, %s284
      %s299 = sphi 0, %s285
      %s303 = sphi 0, %s303
      %s305 = sphi 0, %s303
      %s306 = sphi 0, %s305
      %s320 = sphi 0, %s306
      %s324 = sphi 0, %s324
      %s326 = sphi 0, %s324
      %s327 = sphi 0, %s326
      %s341 = sphi 0, %s327
      %s345 = sphi 0, %s345
      %s347 = sphi 0, %s345
      %s348 = sphi 0, %s347
      %s362 = sphi 0, %s348
      %s366 = sphi 0, %s366
      %s368 = sphi 0, %s366
      %s369 = sphi 0, %s368
      %s383 = sphi 0, %s369
      %s387 = sphi 0, %s387
      %s389 = sphi 0, %s387
      %s390 = sphi 0, %s389
      %s404 = sphi 0, %s390
      %s408 = sphi 0, %s408
      %s410 = sphi 0, %s408
      %s411 = sphi 0, %s410
      %s425 = sphi 0, %s411
      %s429 = sphi 0, %s429
      %s431 = sphi 0, %s429
      %s432 = sphi 0, %s431
      %s446 = sphi 0, %s432
      %s450 = sphi 0, %s450
      %s452 = sphi 0, %s450
      %s453 = sphi 0, %s452
      %s467 = sphi 0, %s453
      %s471 = sphi 0, %s471
      %s473 = sphi 0, %s471
      %s474 = sphi 0, %s473
      %s488 = sphi 0, %s474
      %s492 = sphi 0, %s492
      %s494 = sphi 0, %s492
      %s495 = sphi 0, %s494
      %s509 = sphi 0, %s495
      %s513 = sphi 0, %s513
      %s515 = sphi 0, %s513
      %s516 = sphi 0, %s515
      %s530 = sphi 0, %s516
      %s534 = sphi 0, %s534
      %s536 = sphi 0, %s534
      %s537 = sphi 0, %s536
      %s551 = sphi 0, %s537
      %s557 = sphi 0, %s559
      %s560 = sphi 0, %s557
      %s561 = sphi 0, %s560
      %s577 = sphi 0, %s561
    $region4: #{tpu_custom_call.1} parent=1 // loop_header_branch
      %36 = sbr.rel (%p34) target = $region8
    $region5: #{tpu_custom_call.1} parent=1 // loop_body
      %s38 = ssub.s32 %s33, 1
      %s39 = ssub.s32 %s33, 2
      %s40 = sadd.s32 %s33, 1
      %s41 = ssub.s32 %s33, %s40
      %p42 = scmp.eq.s32.totalorder %s41, 0
      %s44 = sadd.s32 %s43, 1
      %s45 = scalar_select %p42, %s43, %s44
      %p48 = pneg %p42
      %p49 = scmp.eq.s32.totalorder %s33, 1
      %p50 = por %p48, %p49
      %p51 = scmp.ne.s32.totalorder %s43, %s46
      %p52 = scmp.eq.s32.totalorder %s33, 0
      %p53 = por %p51, %p52
      %p54 = scmp.ne.s32.totalorder %s43, %s46
      %p55 = scmp.eq.s32.totalorder %s38, 1
      %p56 = por %p54, %p55
      %p57 = scmp.ne.s32.totalorder %s46, %s47
      %p58 = scmp.eq.s32.totalorder %s38, 0
      %p59 = por %p57, %p58
      %p60 = scmp.ne.s32.totalorder %s46, %s47
      %p61 = scmp.eq.s32.totalorder %s39, 1
      %p62 = por %p60, %p61
      %p64 = scmp.ne.s32.totalorder %s47, %s63
      %p65 = scmp.eq.s32.totalorder %s39, 0
      %p66 = por %p64, %p65
      %s67 = ssub.s32 %s33, %s40
      %p68 = scmp.eq.s32.totalorder %s67, 0
      %s70 = sadd.s32 %s69, 1
      %s71 = scalar_select %p68, %s69, %s70
      %p74 = pneg %p68
      %p75 = scmp.eq.s32.totalorder %s33, 1
      %p76 = por %p74, %p75
      %p77 = scmp.ne.s32.totalorder %s69, %s72
      %p78 = scmp.eq.s32.totalorder %s33, 0
      %p79 = por %p77, %p78
      %p80 = scmp.ne.s32.totalorder %s69, %s72
      %p81 = scmp.eq.s32.totalorder %s38, 1
      %p82 = por %p80, %p81
      %p83 = scmp.ne.s32.totalorder %s72, %s73
      %p84 = scmp.eq.s32.totalorder %s38, 0
      %p85 = por %p83, %p84
      %p86 = scmp.ne.s32.totalorder %s72, %s73
      %p87 = scmp.eq.s32.totalorder %s39, 1
      %p88 = por %p86, %p87
      %p90 = scmp.ne.s32.totalorder %s73, %s89
      %p91 = scmp.eq.s32.totalorder %s39, 0
      %p92 = por %p90, %p91
      %s94 = sadd.s32 %s93, 1
      %p97 = scmp.eq.s32.totalorder %s33, 1
      %p98 = scmp.ne.s32.totalorder %s93, %s95
      %p99 = scmp.eq.s32.totalorder %s33, 0
      %p100 = por %p98, %p99
      %p101 = scmp.ne.s32.totalorder %s93, %s95
      %p102 = scmp.eq.s32.totalorder %s38, 1
      %p103 = por %p101, %p102
      %p104 = scmp.ne.s32.totalorder %s95, %s96
      %p105 = scmp.eq.s32.totalorder %s38, 0
      %p106 = por %p104, %p105
      %p107 = scmp.ne.s32.totalorder %s95, %s96
      %p108 = scmp.eq.s32.totalorder %s39, 1
      %p109 = por %p107, %p108
      %p111 = scmp.ne.s32.totalorder %s96, %s110
      %p112 = scmp.eq.s32.totalorder %s39, 0
      %p113 = por %p111, %p112
      %s115 = sadd.s32 %s114, 1
      %p118 = scmp.eq.s32.totalorder %s33, 1
      %p119 = scmp.ne.s32.totalorder %s114, %s116
      %p120 = scmp.eq.s32.totalorder %s33, 0
      %p121 = por %p119, %p120
      %p122 = scmp.ne.s32.totalorder %s114, %s116
      %p123 = scmp.eq.s32.totalorder %s38, 1
      %p124 = por %p122, %p123
      %p125 = scmp.ne.s32.totalorder %s116, %s117
      %p126 = scmp.eq.s32.totalorder %s38, 0
      %p127 = por %p125, %p126
      %p128 = scmp.ne.s32.totalorder %s116, %s117
      %p129 = scmp.eq.s32.totalorder %s39, 1
      %p130 = por %p128, %p129
      %p132 = scmp.ne.s32.totalorder %s117, %s131
      %p133 = scmp.eq.s32.totalorder %s39, 0
      %p134 = por %p132, %p133
      %s136 = sadd.s32 %s135, 1
      %p139 = scmp.eq.s32.totalorder %s33, 1
      %p140 = scmp.ne.s32.totalorder %s135, %s137
      %p141 = scmp.eq.s32.totalorder %s33, 0
      %p142 = por %p140, %p141
      %p143 = scmp.ne.s32.totalorder %s135, %s137
      %p144 = scmp.eq.s32.totalorder %s38, 1
      %p145 = por %p143, %p144
      %p146 = scmp.ne.s32.totalorder %s137, %s138
      %p147 = scmp.eq.s32.totalorder %s38, 0
      %p148 = por %p146, %p147
      %p149 = scmp.ne.s32.totalorder %s137, %s138
      %p150 = scmp.eq.s32.totalorder %s39, 1
      %p151 = por %p149, %p150
      %p153 = scmp.ne.s32.totalorder %s138, %s152
      %p154 = scmp.eq.s32.totalorder %s39, 0
      %p155 = por %p153, %p154
      %s157 = sadd.s32 %s156, 1
      %p160 = scmp.eq.s32.totalorder %s33, 1
      %p161 = scmp.ne.s32.totalorder %s156, %s158
      %p162 = scmp.eq.s32.totalorder %s33, 0
      %p163 = por %p161, %p162
      %p164 = scmp.ne.s32.totalorder %s156, %s158
      %p165 = scmp.eq.s32.totalorder %s38, 1
      %p166 = por %p164, %p165
      %p167 = scmp.ne.s32.totalorder %s158, %s159
      %p168 = scmp.eq.s32.totalorder %s38, 0
      %p169 = por %p167, %p168
      %p170 = scmp.ne.s32.totalorder %s158, %s159
      %p171 = scmp.eq.s32.totalorder %s39, 1
      %p172 = por %p170, %p171
      %p174 = scmp.ne.s32.totalorder %s159, %s173
      %p175 = scmp.eq.s32.totalorder %s39, 0
      %p176 = por %p174, %p175
      %s178 = sadd.s32 %s177, 1
      %p181 = scmp.eq.s32.totalorder %s33, 1
      %p182 = scmp.ne.s32.totalorder %s177, %s179
      %p183 = scmp.eq.s32.totalorder %s33, 0
      %p184 = por %p182, %p183
      %p185 = scmp.ne.s32.totalorder %s177, %s179
      %p186 = scmp.eq.s32.totalorder %s38, 1
      %p187 = por %p185, %p186
      %p188 = scmp.ne.s32.totalorder %s179, %s180
      %p189 = scmp.eq.s32.totalorder %s38, 0
      %p190 = por %p188, %p189
      %p191 = scmp.ne.s32.totalorder %s179, %s180
      %p192 = scmp.eq.s32.totalorder %s39, 1
      %p193 = por %p191, %p192
      %p195 = scmp.ne.s32.totalorder %s180, %s194
      %p196 = scmp.eq.s32.totalorder %s39, 0
      %p197 = por %p195, %p196
      %s199 = sadd.s32 %s198, 1
      %p202 = scmp.eq.s32.totalorder %s33, 1
      %p203 = scmp.ne.s32.totalorder %s198, %s200
      %p204 = scmp.eq.s32.totalorder %s33, 0
      %p205 = por %p203, %p204
      %p206 = scmp.ne.s32.totalorder %s198, %s200
      %p207 = scmp.eq.s32.totalorder %s38, 1
      %p208 = por %p206, %p207
      %p209 = scmp.ne.s32.totalorder %s200, %s201
      %p210 = scmp.eq.s32.totalorder %s38, 0
      %p211 = por %p209, %p210
      %p212 = scmp.ne.s32.totalorder %s200, %s201
      %p213 = scmp.eq.s32.totalorder %s39, 1
      %p214 = por %p212, %p213
      %p216 = scmp.ne.s32.totalorder %s201, %s215
      %p217 = scmp.eq.s32.totalorder %s39, 0
      %p218 = por %p216, %p217
      %s220 = sadd.s32 %s219, 1
      %p223 = scmp.eq.s32.totalorder %s33, 1
      %p224 = scmp.ne.s32.totalorder %s219, %s221
      %p225 = scmp.eq.s32.totalorder %s33, 0
      %p226 = por %p224, %p225
      %p227 = scmp.ne.s32.totalorder %s219, %s221
      %p228 = scmp.eq.s32.totalorder %s38, 1
      %p229 = por %p227, %p228
      %p230 = scmp.ne.s32.totalorder %s221, %s222
      %p231 = scmp.eq.s32.totalorder %s38, 0
      %p232 = por %p230, %p231
      %p233 = scmp.ne.s32.totalorder %s221, %s222
      %p234 = scmp.eq.s32.totalorder %s39, 1
      %p235 = por %p233, %p234
      %p237 = scmp.ne.s32.totalorder %s222, %s236
      %p238 = scmp.eq.s32.totalorder %s39, 0
      %p239 = por %p237, %p238
      %s241 = sadd.s32 %s240, 1
      %p244 = scmp.eq.s32.totalorder %s33, 1
      %p245 = scmp.ne.s32.totalorder %s240, %s242
      %p246 = scmp.eq.s32.totalorder %s33, 0
      %p247 = por %p245, %p246
      %p248 = scmp.ne.s32.totalorder %s240, %s242
      %p249 = scmp.eq.s32.totalorder %s38, 1
      %p250 = por %p248, %p249
      %p251 = scmp.ne.s32.totalorder %s242, %s243
      %p252 = scmp.eq.s32.totalorder %s38, 0
      %p253 = por %p251, %p252
      %p254 = scmp.ne.s32.totalorder %s242, %s243
      %p255 = scmp.eq.s32.totalorder %s39, 1
      %p256 = por %p254, %p255
      %p258 = scmp.ne.s32.totalorder %s243, %s257
      %p259 = scmp.eq.s32.totalorder %s39, 0
      %p260 = por %p258, %p259
      %s262 = sadd.s32 %s261, 1
      %p265 = scmp.eq.s32.totalorder %s33, 1
      %p266 = scmp.ne.s32.totalorder %s261, %s263
      %p267 = scmp.eq.s32.totalorder %s33, 0
      %p268 = por %p266, %p267
      %p269 = scmp.ne.s32.totalorder %s261, %s263
      %p270 = scmp.eq.s32.totalorder %s38, 1
      %p271 = por %p269, %p270
      %p272 = scmp.ne.s32.totalorder %s263, %s264
      %p273 = scmp.eq.s32.totalorder %s38, 0
      %p274 = por %p272, %p273
      %p275 = scmp.ne.s32.totalorder %s263, %s264
      %p276 = scmp.eq.s32.totalorder %s39, 1
      %p277 = por %p275, %p276
      %p279 = scmp.ne.s32.totalorder %s264, %s278
      %p280 = scmp.eq.s32.totalorder %s39, 0
      %p281 = por %p279, %p280
      %s283 = sadd.s32 %s282, 1
      %p286 = scmp.eq.s32.totalorder %s33, 1
      %p287 = scmp.ne.s32.totalorder %s282, %s284
      %p288 = scmp.eq.s32.totalorder %s33, 0
      %p289 = por %p287, %p288
      %p290 = scmp.ne.s32.totalorder %s282, %s284
      %p291 = scmp.eq.s32.totalorder %s38, 1
      %p292 = por %p290, %p291
      %p293 = scmp.ne.s32.totalorder %s284, %s285
      %p294 = scmp.eq.s32.totalorder %s38, 0
      %p295 = por %p293, %p294
      %p296 = scmp.ne.s32.totalorder %s284, %s285
      %p297 = scmp.eq.s32.totalorder %s39, 1
      %p298 = por %p296, %p297
      %p300 = scmp.ne.s32.totalorder %s285, %s299
      %p301 = scmp.eq.s32.totalorder %s39, 0
      %p302 = por %p300, %p301
      %s304 = sadd.s32 %s303, 1
      %p307 = scmp.eq.s32.totalorder %s33, 1
      %p308 = scmp.ne.s32.totalorder %s303, %s305
      %p309 = scmp.eq.s32.totalorder %s33, 0
      %p310 = por %p308, %p309
      %p311 = scmp.ne.s32.totalorder %s303, %s305
      %p312 = scmp.eq.s32.totalorder %s38, 1
      %p313 = por %p311, %p312
      %p314 = scmp.ne.s32.totalorder %s305, %s306
      %p315 = scmp.eq.s32.totalorder %s38, 0
      %p316 = por %p314, %p315
      %p317 = scmp.ne.s32.totalorder %s305, %s306
      %p318 = scmp.eq.s32.totalorder %s39, 1
      %p319 = por %p317, %p318
      %p321 = scmp.ne.s32.totalorder %s306, %s320
      %p322 = scmp.eq.s32.totalorder %s39, 0
      %p323 = por %p321, %p322
      %s325 = sadd.s32 %s324, 1
      %p328 = scmp.eq.s32.totalorder %s33, 1
      %p329 = scmp.ne.s32.totalorder %s324, %s326
      %p330 = scmp.eq.s32.totalorder %s33, 0
      %p331 = por %p329, %p330
      %p332 = scmp.ne.s32.totalorder %s324, %s326
      %p333 = scmp.eq.s32.totalorder %s38, 1
      %p334 = por %p332, %p333
      %p335 = scmp.ne.s32.totalorder %s326, %s327
      %p336 = scmp.eq.s32.totalorder %s38, 0
      %p337 = por %p335, %p336
      %p338 = scmp.ne.s32.totalorder %s326, %s327
      %p339 = scmp.eq.s32.totalorder %s39, 1
      %p340 = por %p338, %p339
      %p342 = scmp.ne.s32.totalorder %s327, %s341
      %p343 = scmp.eq.s32.totalorder %s39, 0
      %p344 = por %p342, %p343
      %s346 = sadd.s32 %s345, 1
      %p349 = scmp.eq.s32.totalorder %s33, 1
      %p350 = scmp.ne.s32.totalorder %s345, %s347
      %p351 = scmp.eq.s32.totalorder %s33, 0
      %p352 = por %p350, %p351
      %p353 = scmp.ne.s32.totalorder %s345, %s347
      %p354 = scmp.eq.s32.totalorder %s38, 1
      %p355 = por %p353, %p354
      %p356 = scmp.ne.s32.totalorder %s347, %s348
      %p357 = scmp.eq.s32.totalorder %s38, 0
      %p358 = por %p356, %p357
      %p359 = scmp.ne.s32.totalorder %s347, %s348
      %p360 = scmp.eq.s32.totalorder %s39, 1
      %p361 = por %p359, %p360
      %p363 = scmp.ne.s32.totalorder %s348, %s362
      %p364 = scmp.eq.s32.totalorder %s39, 0
      %p365 = por %p363, %p364
      %s367 = sadd.s32 %s366, 1
      %p370 = scmp.eq.s32.totalorder %s33, 1
      %p371 = scmp.ne.s32.totalorder %s366, %s368
      %p372 = scmp.eq.s32.totalorder %s33, 0
      %p373 = por %p371, %p372
      %p374 = scmp.ne.s32.totalorder %s366, %s368
      %p375 = scmp.eq.s32.totalorder %s38, 1
      %p376 = por %p374, %p375
      %p377 = scmp.ne.s32.totalorder %s368, %s369
      %p378 = scmp.eq.s32.totalorder %s38, 0
      %p379 = por %p377, %p378
      %p380 = scmp.ne.s32.totalorder %s368, %s369
      %p381 = scmp.eq.s32.totalorder %s39, 1
      %p382 = por %p380, %p381
      %p384 = scmp.ne.s32.totalorder %s369, %s383
      %p385 = scmp.eq.s32.totalorder %s39, 0
      %p386 = por %p384, %p385
      %s388 = sadd.s32 %s387, 1
      %p391 = scmp.eq.s32.totalorder %s33, 1
      %p392 = scmp.ne.s32.totalorder %s387, %s389
      %p393 = scmp.eq.s32.totalorder %s33, 0
      %p394 = por %p392, %p393
      %p395 = scmp.ne.s32.totalorder %s387, %s389
      %p396 = scmp.eq.s32.totalorder %s38, 1
      %p397 = por %p395, %p396
      %p398 = scmp.ne.s32.totalorder %s389, %s390
      %p399 = scmp.eq.s32.totalorder %s38, 0
      %p400 = por %p398, %p399
      %p401 = scmp.ne.s32.totalorder %s389, %s390
      %p402 = scmp.eq.s32.totalorder %s39, 1
      %p403 = por %p401, %p402
      %p405 = scmp.ne.s32.totalorder %s390, %s404
      %p406 = scmp.eq.s32.totalorder %s39, 0
      %p407 = por %p405, %p406
      %s409 = sadd.s32 %s408, 1
      %p412 = scmp.eq.s32.totalorder %s33, 1
      %p413 = scmp.ne.s32.totalorder %s408, %s410
      %p414 = scmp.eq.s32.totalorder %s33, 0
      %p415 = por %p413, %p414
      %p416 = scmp.ne.s32.totalorder %s408, %s410
      %p417 = scmp.eq.s32.totalorder %s38, 1
      %p418 = por %p416, %p417
      %p419 = scmp.ne.s32.totalorder %s410, %s411
      %p420 = scmp.eq.s32.totalorder %s38, 0
      %p421 = por %p419, %p420
      %p422 = scmp.ne.s32.totalorder %s410, %s411
      %p423 = scmp.eq.s32.totalorder %s39, 1
      %p424 = por %p422, %p423
      %p426 = scmp.ne.s32.totalorder %s411, %s425
      %p427 = scmp.eq.s32.totalorder %s39, 0
      %p428 = por %p426, %p427
      %s430 = sadd.s32 %s429, 1
      %p433 = scmp.eq.s32.totalorder %s33, 1
      %p434 = scmp.ne.s32.totalorder %s429, %s431
      %p435 = scmp.eq.s32.totalorder %s33, 0
      %p436 = por %p434, %p435
      %p437 = scmp.ne.s32.totalorder %s429, %s431
      %p438 = scmp.eq.s32.totalorder %s38, 1
      %p439 = por %p437, %p438
      %p440 = scmp.ne.s32.totalorder %s431, %s432
      %p441 = scmp.eq.s32.totalorder %s38, 0
      %p442 = por %p440, %p441
      %p443 = scmp.ne.s32.totalorder %s431, %s432
      %p444 = scmp.eq.s32.totalorder %s39, 1
      %p445 = por %p443, %p444
      %p447 = scmp.ne.s32.totalorder %s432, %s446
      %p448 = scmp.eq.s32.totalorder %s39, 0
      %p449 = por %p447, %p448
      %s451 = sadd.s32 %s450, 1
      %p454 = scmp.eq.s32.totalorder %s33, 1
      %p455 = scmp.ne.s32.totalorder %s450, %s452
      %p456 = scmp.eq.s32.totalorder %s33, 0
      %p457 = por %p455, %p456
      %p458 = scmp.ne.s32.totalorder %s450, %s452
      %p459 = scmp.eq.s32.totalorder %s38, 1
      %p460 = por %p458, %p459
      %p461 = scmp.ne.s32.totalorder %s452, %s453
      %p462 = scmp.eq.s32.totalorder %s38, 0
      %p463 = por %p461, %p462
      %p464 = scmp.ne.s32.totalorder %s452, %s453
      %p465 = scmp.eq.s32.totalorder %s39, 1
      %p466 = por %p464, %p465
      %p468 = scmp.ne.s32.totalorder %s453, %s467
      %p469 = scmp.eq.s32.totalorder %s39, 0
      %p470 = por %p468, %p469
      %s472 = sadd.s32 %s471, 1
      %p475 = scmp.eq.s32.totalorder %s33, 1
      %p476 = scmp.ne.s32.totalorder %s471, %s473
      %p477 = scmp.eq.s32.totalorder %s33, 0
      %p478 = por %p476, %p477
      %p479 = scmp.ne.s32.totalorder %s471, %s473
      %p480 = scmp.eq.s32.totalorder %s38, 1
      %p481 = por %p479, %p480
      %p482 = scmp.ne.s32.totalorder %s473, %s474
      %p483 = scmp.eq.s32.totalorder %s38, 0
      %p484 = por %p482, %p483
      %p485 = scmp.ne.s32.totalorder %s473, %s474
      %p486 = scmp.eq.s32.totalorder %s39, 1
      %p487 = por %p485, %p486
      %p489 = scmp.ne.s32.totalorder %s474, %s488
      %p490 = scmp.eq.s32.totalorder %s39, 0
      %p491 = por %p489, %p490
      %s493 = sadd.s32 %s492, 1
      %p496 = scmp.eq.s32.totalorder %s33, 1
      %p497 = scmp.ne.s32.totalorder %s492, %s494
      %p498 = scmp.eq.s32.totalorder %s33, 0
      %p499 = por %p497, %p498
      %p500 = scmp.ne.s32.totalorder %s492, %s494
      %p501 = scmp.eq.s32.totalorder %s38, 1
      %p502 = por %p500, %p501
      %p503 = scmp.ne.s32.totalorder %s494, %s495
      %p504 = scmp.eq.s32.totalorder %s38, 0
      %p505 = por %p503, %p504
      %p506 = scmp.ne.s32.totalorder %s494, %s495
      %p507 = scmp.eq.s32.totalorder %s39, 1
      %p508 = por %p506, %p507
      %p510 = scmp.ne.s32.totalorder %s495, %s509
      %p511 = scmp.eq.s32.totalorder %s39, 0
      %p512 = por %p510, %p511
      %s514 = sadd.s32 %s513, 1
      %p517 = scmp.eq.s32.totalorder %s33, 1
      %p518 = scmp.ne.s32.totalorder %s513, %s515
      %p519 = scmp.eq.s32.totalorder %s33, 0
      %p520 = por %p518, %p519
      %p521 = scmp.ne.s32.totalorder %s513, %s515
      %p522 = scmp.eq.s32.totalorder %s38, 1
      %p523 = por %p521, %p522
      %p524 = scmp.ne.s32.totalorder %s515, %s516
      %p525 = scmp.eq.s32.totalorder %s38, 0
      %p526 = por %p524, %p525
      %p527 = scmp.ne.s32.totalorder %s515, %s516
      %p528 = scmp.eq.s32.totalorder %s39, 1
      %p529 = por %p527, %p528
      %p531 = scmp.ne.s32.totalorder %s516, %s530
      %p532 = scmp.eq.s32.totalorder %s39, 0
      %p533 = por %p531, %p532
      %s535 = sadd.s32 %s534, 1
      %p538 = scmp.eq.s32.totalorder %s33, 1
      %p539 = scmp.ne.s32.totalorder %s534, %s536
      %p540 = scmp.eq.s32.totalorder %s33, 0
      %p541 = por %p539, %p540
      %p542 = scmp.ne.s32.totalorder %s534, %s536
      %p543 = scmp.eq.s32.totalorder %s38, 1
      %p544 = por %p542, %p543
      %p545 = scmp.ne.s32.totalorder %s536, %s537
      %p546 = scmp.eq.s32.totalorder %s38, 0
      %p547 = por %p545, %p546
      %p548 = scmp.ne.s32.totalorder %s536, %s537
      %p549 = scmp.eq.s32.totalorder %s39, 1
      %p550 = por %p548, %p549
      %p552 = scmp.ne.s32.totalorder %s537, %s551
      %p553 = scmp.eq.s32.totalorder %s39, 0
      %p554 = por %p552, %p553
      %s555 = ssub.s32 %s33, %s40
      %p556 = scmp.eq.s32.totalorder %s555, 0
      %s558 = sadd.s32 %s557, 1
      %s559 = scalar_select %p556, %s557, %s558
      %p562 = pneg %p556
      %p563 = scmp.eq.s32.totalorder %s33, 1
      %p564 = por %p562, %p563
      %p565 = scmp.ne.s32.totalorder %s557, %s560
      %p566 = scmp.eq.s32.totalorder %s33, 0
      %p567 = por %p565, %p566
      %p568 = scmp.ne.s32.totalorder %s557, %s560
      %p569 = scmp.eq.s32.totalorder %s38, 1
      %p570 = por %p568, %p569
      %p571 = scmp.ne.s32.totalorder %s560, %s561
      %p572 = scmp.eq.s32.totalorder %s38, 0
      %p573 = por %p571, %p572
      %p574 = scmp.ne.s32.totalorder %s560, %s561
      %p575 = scmp.eq.s32.totalorder %s39, 1
      %p576 = por %p574, %p575
      %p578 = scmp.ne.s32.totalorder %s561, %s577
      %p579 = scmp.eq.s32.totalorder %s39, 0
      %p580 = por %p578, %p579
      %p581 = scmp.le.s32.totalorder 1, %s33
      %p582 = scmp.lt.s32.totalorder %s33, 3
      %p583 = pnand %p581, %p582
      %p584 = pneg %p583
      // Predicated region
      $region9: #{tpu_custom_call.1} parent=5 // pred_check
        _
      $region10: #{tpu_custom_call.1} parent=5 // pred_check_branch
        %586 = sbr.rel (%p583) target = $region12
      $region11: #{tpu_custom_call.1} parent=5 // pred_region
        %s587 = ssub.s32 %s33, 1
        // Predicated region
        $region13: #{tpu_custom_call.1} parent=11 // pred_check
          %p588 = pneg %p106
        $region14: #{tpu_custom_call.1} parent=11 // pred_check_branch
          %590 = sbr.rel (%p588) target = $region16
        $region15: #{tpu_custom_call.1} parent=11 // pred_region
          _
        $region16: #{tpu_custom_call.1} parent=11 // pred_fallthru
          _
        // Predicated region
        $region17: #{tpu_custom_call.1} parent=11 // pred_check
          %p591 = pneg %p127
        $region18: #{tpu_custom_call.1} parent=11 // pred_check_branch
          %593 = sbr.rel (%p591) target = $region20
        $region19: #{tpu_custom_call.1} parent=11 // pred_region
          _
        $region20: #{tpu_custom_call.1} parent=11 // pred_fallthru
          _
        // Predicated region
        $region21: #{tpu_custom_call.1} parent=11 // pred_check
          %p594 = pneg %p148
        $region22: #{tpu_custom_call.1} parent=11 // pred_check_branch
          %596 = sbr.rel (%p594) target = $region24
        $region23: #{tpu_custom_call.1} parent=11 // pred_region
          _
        $region24: #{tpu_custom_call.1} parent=11 // pred_fallthru
          _
        // Predicated region
        $region25: #{tpu_custom_call.1} parent=11 // pred_check
          %p597 = pneg %p169
        $region26: #{tpu_custom_call.1} parent=11 // pred_check_branch
          %599 = sbr.rel (%p597) target = $region28
        $region27: #{tpu_custom_call.1} parent=11 // pred_region
          _
        $region28: #{tpu_custom_call.1} parent=11 // pred_fallthru
          _
        // Predicated region
        $region29: #{tpu_custom_call.1} parent=11 // pred_check
          %p600 = pneg %p190
        $region30: #{tpu_custom_call.1} parent=11 // pred_check_branch
          %602 = sbr.rel (%p600) target = $region32
        $region31: #{tpu_custom_call.1} parent=11 // pred_region
          _
        $region32: #{tpu_custom_call.1} parent=11 // pred_fallthru
          _
        // Predicated region
        $region33: #{tpu_custom_call.1} parent=11 // pred_check
          %p603 = pneg %p211
        $region34: #{tpu_custom_call.1} parent=11 // pred_check_branch
          %605 = sbr.rel (%p603) target = $region36
        $region35: #{tpu_custom_call.1} parent=11 // pred_region
          _
        $region36: #{tpu_custom_call.1} parent=11 // pred_fallthru
          _
        // Predicated region
        $region37: #{tpu_custom_call.1} parent=11 // pred_check
          %p606 = pneg %p232
        $region38: #{tpu_custom_call.1} parent=11 // pred_check_branch
          %608 = sbr.rel (%p606) target = $region40
        $region39: #{tpu_custom_call.1} parent=11 // pred_region
          _
        $region40: #{tpu_custom_call.1} parent=11 // pred_fallthru
          _
        // Predicated region
        $region41: #{tpu_custom_call.1} parent=11 // pred_check
          %p609 = pneg %p253
        $region42: #{tpu_custom_call.1} parent=11 // pred_check_branch
          %611 = sbr.rel (%p609) target = $region44
        $region43: #{tpu_custom_call.1} parent=11 // pred_region
          _
        $region44: #{tpu_custom_call.1} parent=11 // pred_fallthru
          _
        // Predicated region
        $region45: #{tpu_custom_call.1} parent=11 // pred_check
          %p612 = pneg %p274
        $region46: #{tpu_custom_call.1} parent=11 // pred_check_branch
          %614 = sbr.rel (%p612) target = $region48
        $region47: #{tpu_custom_call.1} parent=11 // pred_region
          _
        $region48: #{tpu_custom_call.1} parent=11 // pred_fallthru
          _
        // Predicated region
        $region49: #{tpu_custom_call.1} parent=11 // pred_check
          %p615 = pneg %p295
        $region50: #{tpu_custom_call.1} parent=11 // pred_check_branch
          %617 = sbr.rel (%p615) target = $region52
        $region51: #{tpu_custom_call.1} parent=11 // pred_region
          _
        $region52: #{tpu_custom_call.1} parent=11 // pred_fallthru
          _
        // Predicated region
        $region53: #{tpu_custom_call.1} parent=11 // pred_check
          %p618 = pneg %p316
        $region54: #{tpu_custom_call.1} parent=11 // pred_check_branch
          %620 = sbr.rel (%p618) target = $region56
        $region55: #{tpu_custom_call.1} parent=11 // pred_region
          _
        $region56: #{tpu_custom_call.1} parent=11 // pred_fallthru
          _
        // Predicated region
        $region57: #{tpu_custom_call.1} parent=11 // pred_check
          %p621 = pneg %p337
        $region58: #{tpu_custom_call.1} parent=11 // pred_check_branch
          %623 = sbr.rel (%p621) target = $region60
        $region59: #{tpu_custom_call.1} parent=11 // pred_region
          _
        $region60: #{tpu_custom_call.1} parent=11 // pred_fallthru
          _
        // Predicated region
        $region61: #{tpu_custom_call.1} parent=11 // pred_check
          %p624 = pneg %p358
        $region62: #{tpu_custom_call.1} parent=11 // pred_check_branch
          %626 = sbr.rel (%p624) target = $region64
        $region63: #{tpu_custom_call.1} parent=11 // pred_region
          _
        $region64: #{tpu_custom_call.1} parent=11 // pred_fallthru
          _
        // Predicated region
        $region65: #{tpu_custom_call.1} parent=11 // pred_check
          %p627 = pneg %p379
        $region66: #{tpu_custom_call.1} parent=11 // pred_check_branch
          %629 = sbr.rel (%p627) target = $region68
        $region67: #{tpu_custom_call.1} parent=11 // pred_region
          _
        $region68: #{tpu_custom_call.1} parent=11 // pred_fallthru
          _
        // Predicated region
        $region69: #{tpu_custom_call.1} parent=11 // pred_check
          %p630 = pneg %p400
        $region70: #{tpu_custom_call.1} parent=11 // pred_check_branch
          %632 = sbr.rel (%p630) target = $region72
        $region71: #{tpu_custom_call.1} parent=11 // pred_region
          _
        $region72: #{tpu_custom_call.1} parent=11 // pred_fallthru
          _
        // Predicated region
        $region73: #{tpu_custom_call.1} parent=11 // pred_check
          %p633 = pneg %p421
        $region74: #{tpu_custom_call.1} parent=11 // pred_check_branch
          %635 = sbr.rel (%p633) target = $region76
        $region75: #{tpu_custom_call.1} parent=11 // pred_region
          _
        $region76: #{tpu_custom_call.1} parent=11 // pred_fallthru
          _
        // Predicated region
        $region77: #{tpu_custom_call.1} parent=11 // pred_check
          %p636 = pneg %p442
        $region78: #{tpu_custom_call.1} parent=11 // pred_check_branch
          %638 = sbr.rel (%p636) target = $region80
        $region79: #{tpu_custom_call.1} parent=11 // pred_region
          _
        $region80: #{tpu_custom_call.1} parent=11 // pred_fallthru
          _
        // Predicated region
        $region81: #{tpu_custom_call.1} parent=11 // pred_check
          %p639 = pneg %p463
        $region82: #{tpu_custom_call.1} parent=11 // pred_check_branch
          %641 = sbr.rel (%p639) target = $region84
        $region83: #{tpu_custom_call.1} parent=11 // pred_region
          _
        $region84: #{tpu_custom_call.1} parent=11 // pred_fallthru
          _
        // Predicated region
        $region85: #{tpu_custom_call.1} parent=11 // pred_check
          %p642 = pneg %p484
        $region86: #{tpu_custom_call.1} parent=11 // pred_check_branch
          %644 = sbr.rel (%p642) target = $region88
        $region87: #{tpu_custom_call.1} parent=11 // pred_region
          _
        $region88: #{tpu_custom_call.1} parent=11 // pred_fallthru
          _
        // Predicated region
        $region89: #{tpu_custom_call.1} parent=11 // pred_check
          %p645 = pneg %p505
        $region90: #{tpu_custom_call.1} parent=11 // pred_check_branch
          %647 = sbr.rel (%p645) target = $region92
        $region91: #{tpu_custom_call.1} parent=11 // pred_region
          _
        $region92: #{tpu_custom_call.1} parent=11 // pred_fallthru
          _
        // Predicated region
        $region93: #{tpu_custom_call.1} parent=11 // pred_check
          %p648 = pneg %p526
        $region94: #{tpu_custom_call.1} parent=11 // pred_check_branch
          %650 = sbr.rel (%p648) target = $region96
        $region95: #{tpu_custom_call.1} parent=11 // pred_region
          _
        $region96: #{tpu_custom_call.1} parent=11 // pred_fallthru
          _
        // Predicated region
        $region97: #{tpu_custom_call.1} parent=11 // pred_check
          %p651 = pneg %p547
        $region98: #{tpu_custom_call.1} parent=11 // pred_check_branch
          %653 = sbr.rel (%p651) target = $region100
        $region99: #{tpu_custom_call.1} parent=11 // pred_region
          _
        $region100: #{tpu_custom_call.1} parent=11 // pred_fallthru
          _
      $region12: #{tpu_custom_call.1} parent=5 // pred_fallthru
        _
      %p654 = scmp.lt.s32.totalorder %s33, 2
      // Predicated region
      $region101: #{tpu_custom_call.1} parent=5 // pred_check
        %p655 = pneg %p654
      $region102: #{tpu_custom_call.1} parent=5 // pred_check_branch
        %657 = sbr.rel (%p655) target = $region104
      $region103: #{tpu_custom_call.1} parent=5 // pred_region
        // Predicated region
        $region105: #{tpu_custom_call.1} parent=103 // pred_check
          %p658 = pneg %p53
        $region106: #{tpu_custom_call.1} parent=103 // pred_check_branch
          %660 = sbr.rel (%p658) target = $region108
        $region107: #{tpu_custom_call.1} parent=103 // pred_region
          %p661 = scmp.lt.s32.totalorder %s33, 1
          %s662 = scalar_select %p661, %s33, 1
          %s663 = smul.addr %s662, 4
          %s664 = scalar_lea.vmem %s0, %s663
        $region108: #{tpu_custom_call.1} parent=103 // pred_fallthru
          _
        // Predicated region
        $region109: #{tpu_custom_call.1} parent=103 // pred_check
          %p665 = pneg %p79
        $region110: #{tpu_custom_call.1} parent=103 // pred_check_branch
          %667 = sbr.rel (%p665) target = $region112
        $region111: #{tpu_custom_call.1} parent=103 // pred_region
          %s668 = smul.u32 2, %s33
          %p669 = scmp.lt.s32.totalorder %s668, 3
          %s670 = scalar_select %p669, %s668, 3
          %s671 = smul.addr %s670, 2
          %s672 = scalar_lea.vmem %s1, %s671
          %s673 = smul.u32 2, %s33
        $region112: #{tpu_custom_call.1} parent=103 // pred_fallthru
          _
      $region104: #{tpu_custom_call.1} parent=5 // pred_fallthru
        _
      %p674 = scmp.le.s32.totalorder 1, %s33
      %p675 = scmp.lt.s32.totalorder %s33, 3
      %p676 = pnand %p674, %p675
      %p677 = pneg %p676
      // Predicated region
      $region113: #{tpu_custom_call.1} parent=5 // pred_check
        _
      $region114: #{tpu_custom_call.1} parent=5 // pred_check_branch
        %679 = sbr.rel (%p676) target = $region116
      $region115: #{tpu_custom_call.1} parent=5 // pred_region
        %s680 = ssub.s32 %s33, 1
        %p681 = scmp.lt.s32.totalorder %s38, 1
        %s682 = scalar_select %p681, %s38, 1
        %s683 = smul.addr %s682, 4
        %s684 = scalar_lea.vmem %s0, %s683
        %p685 = pneg %p59
        %p686 = pneg %p56
        %s687 = smul.u32 2, %s38
        %p688 = scmp.lt.s32.totalorder %s687, 3
        %s689 = scalar_select %p688, %s687, 3
        %s690 = smul.addr %s689, 2
        %s691 = scalar_lea.vmem %s1, %s690
        %p692 = pneg %p85
        %p693 = pneg %p82
        %p694 = pneg %p106
        %p695 = pneg %p103
        %p696 = pneg %p127
        %p697 = pneg %p124
        %p698 = pneg %p148
        %p699 = pneg %p145
        %p700 = pneg %p169
        %p701 = pneg %p166
        %p702 = pneg %p190
        %p703 = pneg %p187
        %p704 = pneg %p211
        %p705 = pneg %p208
        %p706 = pneg %p232
        %p707 = pneg %p229
        %p708 = pneg %p253
        %p709 = pneg %p250
        %p710 = pneg %p274
        %p711 = pneg %p271
        %p712 = pneg %p295
        %p713 = pneg %p292
        %p714 = pneg %p316
        %p715 = pneg %p313
        %p716 = pneg %p337
        %p717 = pneg %p334
        %p718 = pneg %p358
        %p719 = pneg %p355
        %p720 = pneg %p379
        %p721 = pneg %p376
        %p722 = pneg %p400
        %p723 = pneg %p397
        %p724 = pneg %p421
        %p725 = pneg %p418
        %p726 = pneg %p442
        %p727 = pneg %p439
        %p728 = pneg %p463
        %p729 = pneg %p460
        %p730 = pneg %p484
        %p731 = pneg %p481
        %p732 = pneg %p505
        %p733 = pneg %p502
        %p734 = pneg %p526
        %p735 = pneg %p523
        %p736 = pneg %p547
        %p737 = pneg %p544
        %p738 = pneg %p573
        %p739 = pneg %p570
        %s740 = sand.u32 %s560, 1
        %s741 = scalar_lea.sflag [#allocation3], %s740
        %s742 = sand.u32 %s560, 1
        %s743 = smul.addr %s742, 4
        %s744 = scalar_lea.vmem [#allocation2], %s743
        %p745 = scmp.lt.s32.totalorder %s38, 1
        %s746 = scalar_select %p745, %s38, 1
        %s747 = smul.addr %s746, 4
        %s748 = scalar_lea.vmem %s0, %s747
        %s749 = smul.u32 2, %s38
        %p750 = scmp.lt.s32.totalorder %s749, 3
        %s751 = scalar_select %p750, %s749, 3
        %s752 = smul.addr %s751, 2
        %s753 = scalar_lea.vmem %s1, %s752
        %s754 = smul.u32 2, %s38
        %s755 = smul.u32 2, %s38
        %v756 = vld [vmem:[%s2] sm:$0xff]
        %v757 = vld [vmem:[%s2 + $0x8] sm:$0xff]
        %v758 = vld [vmem:[%s2 + $0x10] sm:$0xff]
        %v759 = vld [vmem:[%s2 + $0x18] sm:$0xff]
        %v760 = vld [vmem:[%s2 + $0x20] sm:$0xff]
        %v761 = vld [vmem:[%s2 + $0x28] sm:$0xff]
        %v762 = vld [vmem:[%s2 + $0x30] sm:$0xff]
        %v763 = vld [vmem:[%s2 + $0x38] sm:$0xff]
        %v764 = vld [vmem:[%s748] sm:$0x7]
        %v765 = vld [vmem:[%s3] sm:$0xff]
        %v766 = vld [vmem:[%s3 + $0x8] sm:$0xff]
        %v767 = vld [vmem:[%s3 + $0x10] sm:$0xff]
        %v768 = vld [vmem:[%s3 + $0x18] sm:$0xff]
        %v769 = vld [vmem:[%s3 + $0x20] sm:$0xff]
        %v770 = vld [vmem:[%s3 + $0x28] sm:$0xff]
        %v771 = vld [vmem:[%s3 + $0x30] sm:$0xff]
        %v772 = vld [vmem:[%s3 + $0x38] sm:$0xff]
        %774 = vset.pattern.permute.xlu0 0
        %775 = vperm.xlu0 %774, %v756
        %v776 = vpop.permute.xlu0 %775
        %779 = vset.pattern.permute.xlu0 0
        %780 = vperm.xlu0 %779, %v757
        %v781 = vpop.permute.xlu0 %780
        %784 = vset.pattern.permute.xlu0 0
        %785 = vperm.xlu0 %784, %v758
        %v786 = vpop.permute.xlu0 %785
        %789 = vset.pattern.permute.xlu0 0
        %790 = vperm.xlu0 %789, %v759
        %v791 = vpop.permute.xlu0 %790
        %794 = vset.pattern.permute.xlu0 0
        %795 = vperm.xlu0 %794, %v760
        %v796 = vpop.permute.xlu0 %795
        %799 = vset.pattern.permute.xlu0 0
        %800 = vperm.xlu0 %799, %v761
        %v801 = vpop.permute.xlu0 %800
        %804 = vset.pattern.permute.xlu0 0
        %805 = vperm.xlu0 %804, %v762
        %v806 = vpop.permute.xlu0 %805
        %809 = vset.pattern.permute.xlu0 0
        %810 = vperm.xlu0 %809, %v763
        %v811 = vpop.permute.xlu0 %810
        %v813 = vlaneseq
        %v814 = vshrl.u32 %v813, 7
        %v815 = vsub.s32 0, %v814
        %v816 = vrot.slane %v764, %v815
        %v817 = vmul.f32 %v776, %v816
        %v818 = vmul.f32 %v781, %v816
        %v819 = vmul.f32 %v786, %v816
        %v820 = vmul.f32 %v791, %v816
        %v821 = vmul.f32 %v796, %v816
        %v822 = vmul.f32 %v801, %v816
        %v823 = vmul.f32 %v806, %v816
        %v824 = vmul.f32 %v811, %v816
        %826 = vset.pattern.permute.xlu0 0
        %827 = vperm.xlu0 %826, %v765
        %v828 = vpop.permute.xlu0 %827
        %831 = vset.pattern.permute.xlu0 0
        %832 = vperm.xlu0 %831, %v766
        %v833 = vpop.permute.xlu0 %832
        %836 = vset.pattern.permute.xlu0 0
        %837 = vperm.xlu0 %836, %v767
        %v838 = vpop.permute.xlu0 %837
        %841 = vset.pattern.permute.xlu0 0
        %842 = vperm.xlu0 %841, %v768
        %v843 = vpop.permute.xlu0 %842
        %846 = vset.pattern.permute.xlu0 0
        %847 = vperm.xlu0 %846, %v769
        %v848 = vpop.permute.xlu0 %847
        %851 = vset.pattern.permute.xlu0 0
        %852 = vperm.xlu0 %851, %v770
        %v853 = vpop.permute.xlu0 %852
        %856 = vset.pattern.permute.xlu0 0
        %857 = vperm.xlu0 %856, %v771
        %v858 = vpop.permute.xlu0 %857
        %861 = vset.pattern.permute.xlu0 0
        %862 = vperm.xlu0 %861, %v772
        %v863 = vpop.permute.xlu0 %862
        %v865 = vadd.f32 %v828, %v817
        %v866 = vadd.f32 %v833, %v818
        %v867 = vadd.f32 %v838, %v819
        %v868 = vadd.f32 %v843, %v820
        %v869 = vadd.f32 %v848, %v821
        %v870 = vadd.f32 %v853, %v822
        %v871 = vadd.f32 %v858, %v823
        %v872 = vadd.f32 %v863, %v824
        %873 = vset.pattern.permute.xlu0 1
        %874 = vperm.xlu0 %873, %v756
        %v875 = vpop.permute.xlu0 %874
        %877 = vset.pattern.permute.xlu0 1
        %878 = vperm.xlu0 %877, %v757
        %v879 = vpop.permute.xlu0 %878
        %881 = vset.pattern.permute.xlu0 1
        %882 = vperm.xlu0 %881, %v758
        %v883 = vpop.permute.xlu0 %882
        %885 = vset.pattern.permute.xlu0 1
        %886 = vperm.xlu0 %885, %v759
        %v887 = vpop.permute.xlu0 %886
        %889 = vset.pattern.permute.xlu0 1
        %890 = vperm.xlu0 %889, %v760
        %v891 = vpop.permute.xlu0 %890
        %893 = vset.pattern.permute.xlu0 1
        %894 = vperm.xlu0 %893, %v761
        %v895 = vpop.permute.xlu0 %894
        %897 = vset.pattern.permute.xlu0 1
        %898 = vperm.xlu0 %897, %v762
        %v899 = vpop.permute.xlu0 %898
        %901 = vset.pattern.permute.xlu0 1
        %902 = vperm.xlu0 %901, %v763
        %v903 = vpop.permute.xlu0 %902
        %v905 = vlaneseq
        %v906 = vshrl.u32 %v905, 7
        %v907 = vsub.s32 1, %v906
        %v908 = vrot.slane %v764, %v907
        %v909 = vmul.f32 %v875, %v908
        %v910 = vmul.f32 %v879, %v908
        %v911 = vmul.f32 %v883, %v908
        %v912 = vmul.f32 %v887, %v908
        %v913 = vmul.f32 %v891, %v908
        %v914 = vmul.f32 %v895, %v908
        %v915 = vmul.f32 %v899, %v908
        %v916 = vmul.f32 %v903, %v908
        %v917 = vadd.f32 %v865, %v909
        %v918 = vadd.f32 %v866, %v910
        %v919 = vadd.f32 %v867, %v911
        %v920 = vadd.f32 %v868, %v912
        %v921 = vadd.f32 %v869, %v913
        %v922 = vadd.f32 %v870, %v914
        %v923 = vadd.f32 %v871, %v915
        %v924 = vadd.f32 %v872, %v916
        %925 = vset.pattern.permute.xlu0 2
        %926 = vperm.xlu0 %925, %v756
        %v927 = vpop.permute.xlu0 %926
        %929 = vset.pattern.permute.xlu0 2
        %930 = vperm.xlu0 %929, %v757
        %v931 = vpop.permute.xlu0 %930
        %933 = vset.pattern.permute.xlu0 2
        %934 = vperm.xlu0 %933, %v758
        %v935 = vpop.permute.xlu0 %934
        %937 = vset.pattern.permute.xlu0 2
        %938 = vperm.xlu0 %937, %v759
        %v939 = vpop.permute.xlu0 %938
        %941 = vset.pattern.permute.xlu0 2
        %942 = vperm.xlu0 %941, %v760
        %v943 = vpop.permute.xlu0 %942
        %945 = vset.pattern.permute.xlu0 2
        %946 = vperm.xlu0 %945, %v761
        %v947 = vpop.permute.xlu0 %946
        %949 = vset.pattern.permute.xlu0 2
        %950 = vperm.xlu0 %949, %v762
        %v951 = vpop.permute.xlu0 %950
        %953 = vset.pattern.permute.xlu0 2
        %954 = vperm.xlu0 %953, %v763
        %v955 = vpop.permute.xlu0 %954
        %v957 = vlaneseq
        %v958 = vshrl.u32 %v957, 7
        %v959 = vsub.s32 2, %v958
        %v960 = vrot.slane %v764, %v959
        %v961 = vmul.f32 %v927, %v960
        %v962 = vmul.f32 %v931, %v960
        %v963 = vmul.f32 %v935, %v960
        %v964 = vmul.f32 %v939, %v960
        %v965 = vmul.f32 %v943, %v960
        %v966 = vmul.f32 %v947, %v960
        %v967 = vmul.f32 %v951, %v960
        %v968 = vmul.f32 %v955, %v960
        %v969 = vadd.f32 %v917, %v961
        %v970 = vadd.f32 %v918, %v962
        %v971 = vadd.f32 %v919, %v963
        %v972 = vadd.f32 %v920, %v964
        %v973 = vadd.f32 %v921, %v965
        %v974 = vadd.f32 %v922, %v966
        %v975 = vadd.f32 %v923, %v967
        %v976 = vadd.f32 %v924, %v968
        %v977 = vmax.f32 %v969, 0.0
        %v978 = vmax.f32 %v970, 0.0
        %v979 = vmax.f32 %v971, 0.0
        %v980 = vmax.f32 %v972, 0.0
        %v981 = vmax.f32 %v973, 0.0
        %v982 = vmax.f32 %v974, 0.0
        %v983 = vmax.f32 %v975, 0.0
        %v984 = vmax.f32 %v976, 0.0
        %v985 = vld [vmem:[%s4] sm:$0xff]
        %v986 = vld [vmem:[%s4 + $0x8] sm:$0xff]
        %v987 = vld [vmem:[%s4 + $0x10] sm:$0xff]
        %v988 = vld [vmem:[%s4 + $0x18] sm:$0xff]
        %v989 = vld [vmem:[%s4 + $0x20] sm:$0xff]
        %v990 = vld [vmem:[%s4 + $0x28] sm:$0xff]
        %v991 = vld [vmem:[%s4 + $0x30] sm:$0xff]
        %v992 = vld [vmem:[%s4 + $0x38] sm:$0xff]
        %v993 = vld [vmem:[%s5] sm:$0xff]
        %v994 = vld [vmem:[%s5 + $0x8] sm:$0xff]
        %v995 = vld [vmem:[%s5 + $0x10] sm:$0xff]
        %v996 = vld [vmem:[%s5 + $0x18] sm:$0xff]
        %v997 = vld [vmem:[%s5 + $0x20] sm:$0xff]
        %v998 = vld [vmem:[%s5 + $0x28] sm:$0xff]
        %v999 = vld [vmem:[%s5 + $0x30] sm:$0xff]
        %v1000 = vld [vmem:[%s5 + $0x38] sm:$0xff]
        %1002 = vset.pattern.permute.xlu0 0
        %1003 = vperm.xlu0 %1002, %v993
        %v1004 = vpop.permute.xlu0 %1003
        %1007 = vset.pattern.permute.xlu0 0
        %1008 = vperm.xlu0 %1007, %v994
        %v1009 = vpop.permute.xlu0 %1008
        %1012 = vset.pattern.permute.xlu0 0
        %1013 = vperm.xlu0 %1012, %v995
        %v1014 = vpop.permute.xlu0 %1013
        %1017 = vset.pattern.permute.xlu0 0
        %1018 = vperm.xlu0 %1017, %v996
        %v1019 = vpop.permute.xlu0 %1018
        %1022 = vset.pattern.permute.xlu0 0
        %1023 = vperm.xlu0 %1022, %v997
        %v1024 = vpop.permute.xlu0 %1023
        %1027 = vset.pattern.permute.xlu0 0
        %1028 = vperm.xlu0 %1027, %v998
        %v1029 = vpop.permute.xlu0 %1028
        %1032 = vset.pattern.permute.xlu0 0
        %1033 = vperm.xlu0 %1032, %v999
        %v1034 = vpop.permute.xlu0 %1033
        %1037 = vset.pattern.permute.xlu0 0
        %1038 = vperm.xlu0 %1037, %v1000
        %v1039 = vpop.permute.xlu0 %1038
        %vm1041 = vcmask 523264
        %v1043 = vsel %vm1041, %v985, 0
        %v1046 = vsel %vm1041, %v986, 0
        %v1049 = vsel %vm1041, %v987, 0
        %v1052 = vsel %vm1041, %v988, 0
        %v1055 = vsel %vm1041, %v989, 0
        %v1058 = vsel %vm1041, %v990, 0
        %v1061 = vsel %vm1041, %v991, 0
        %v1064 = vsel %vm1041, %v992, 0
        %1066 = vmatprep.subr.mxu0 0.0
        %1067 = vmatpush1.msra.mxu0 %v977
        %1068 = vmatprep.subr.mxu0 0.0
        %1069 = vmatpush1.msra.mxu0 %v978
        %1070 = vmatprep.subr.mxu0 0.0
        %1071 = vmatpush1.msra.mxu0 %v979
        %1072 = vmatprep.subr.mxu0 0.0
        %1073 = vmatpush1.msra.mxu0 %v980
        %1074 = vmatprep.subr.mxu0 0.0
        %1075 = vmatpush1.msra.mxu0 %v981
        %1076 = vmatprep.subr.mxu0 0.0
        %1077 = vmatpush1.msra.mxu0 %v982
        %1078 = vmatprep.subr.mxu0 0.0
        %1079 = vmatpush1.msra.mxu0 %v983
        %1080 = vmatprep.subr.mxu0 0.0
        %1081 = vmatpush1.msra.mxu0 %v984
        %1082 = vmatprep.subr.mxu0 0.0
        %1083 = vmatpush1.msra.mxu0 0.0
        %1084 = vmatprep.subr.mxu0 0.0
        %1085 = vmatpush1.msra.mxu0 0.0
        %1086 = vmatprep.subr.mxu0 0.0
        %1087 = vmatpush1.msra.mxu0 0.0
        %1088 = vmatprep.subr.mxu0 0.0
        %1089 = vmatpush1.msra.mxu0 0.0
        %1090 = vmatprep.subr.mxu0 0.0
        %1091 = vmatpush1.msra.mxu0 0.0
        %1092 = vmatprep.subr.mxu0 0.0
        %1093 = vmatpush1.msra.mxu0 0.0
        %1094 = vmatprep.subr.mxu0 0.0
        %1095 = vmatpush1.msra.mxu0 0.0
        %1096 = vmatprep.subr.mxu0 0.0
        %1097 = vmatpush1.msra.mxu0 0.0
        %1098 = vmatprep.subr.mxu0 0.0
        %1099 = vmatpush1.msra.mxu0 0.0
        %1100 = vmatprep.subr.mxu0 0.0
        %1101 = vmatpush1.msra.mxu0 0.0
        %1102 = vmatprep.subr.mxu0 0.0
        %1103 = vmatpush1.msra.mxu0 0.0
        %1104 = vmatprep.subr.mxu0 0.0
        %1105 = vmatpush1.msra.mxu0 0.0
        %1106 = vmatprep.subr.mxu0 0.0
        %1107 = vmatpush1.msra.mxu0 0.0
        %1108 = vmatprep.subr.mxu0 0.0
        %1109 = vmatpush1.msra.mxu0 0.0
        %1110 = vmatprep.subr.mxu0 0.0
        %1111 = vmatpush1.msra.mxu0 0.0
        %1112 = vmatprep.subr.mxu0 0.0
        %1113 = vmatpush1.msra.mxu0 0.0
        %1114 = vmatprep.subr.mxu0 0.0
        %1115 = vmatpush1.msra.mxu0 0.0
        %1116 = vmatprep.subr.mxu0 0.0
        %1117 = vmatpush1.msra.mxu0 0.0
        %1118 = vmatprep.subr.mxu0 0.0
        %1119 = vmatpush1.msra.mxu0 0.0
        %1120 = vmatprep.subr.mxu0 0.0
        %1121 = vmatpush1.msra.mxu0 0.0
        %1122 = vmatprep.subr.mxu0 0.0
        %1123 = vmatpush1.msra.mxu0 0.0
        %1124 = vmatprep.subr.mxu0 0.0
        %1125 = vmatpush1.msra.mxu0 0.0
        %1126 = vmatprep.subr.mxu0 0.0
        %1127 = vmatpush1.msra.mxu0 0.0
        %1128 = vmatprep.subr.mxu0 0.0
        %1129 = vmatpush1.msra.mxu0 0.0
        %1130 = vmatprep.mubr.f32.mxu0 0.0
        %1131 = vmatmul.mubr.f32.gmra.mrb[0].mxu0 %v1043
        %v1132 = vpop.f32.mrb[0].mxu0
        %v1133 = vadd.f32 %v1004, %v1132
        %v1134 = vpop.f32.mrb[0].mxu0
        %1135 = vmatprep.mubr.f32.mxu0 0.0
        %1136 = vmatmul.mubr.f32.gmra.mrb[0].mxu0 %v1046
        %v1137 = vpop.f32.mrb[0].mxu0
        %v1138 = vadd.f32 %v1009, %v1137
        %v1139 = vpop.f32.mrb[0].mxu0
        %1140 = vmatprep.mubr.f32.mxu0 0.0
        %1141 = vmatmul.mubr.f32.gmra.mrb[0].mxu0 %v1049
        %v1142 = vpop.f32.mrb[0].mxu0
        %v1143 = vadd.f32 %v1014, %v1142
        %v1144 = vpop.f32.mrb[0].mxu0
        %1145 = vmatprep.mubr.f32.mxu0 0.0
        %1146 = vmatmul.mubr.f32.gmra.mrb[0].mxu0 %v1052
        %v1147 = vpop.f32.mrb[0].mxu0
        %v1148 = vadd.f32 %v1019, %v1147
        %v1149 = vpop.f32.mrb[0].mxu0
        %1150 = vmatprep.mubr.f32.mxu0 0.0
        %1151 = vmatmul.mubr.f32.gmra.mrb[0].mxu0 %v1055
        %v1152 = vpop.f32.mrb[0].mxu0
        %v1153 = vadd.f32 %v1024, %v1152
        %v1154 = vpop.f32.mrb[0].mxu0
        %1155 = vmatprep.mubr.f32.mxu0 0.0
        %1156 = vmatmul.mubr.f32.gmra.mrb[0].mxu0 %v1058
        %v1157 = vpop.f32.mrb[0].mxu0
        %v1158 = vadd.f32 %v1029, %v1157
        %v1159 = vpop.f32.mrb[0].mxu0
        %1160 = vmatprep.mubr.f32.mxu0 0.0
        %1161 = vmatmul.mubr.f32.gmra.mrb[0].mxu0 %v1061
        %v1162 = vpop.f32.mrb[0].mxu0
        %v1163 = vadd.f32 %v1034, %v1162
        %v1164 = vpop.f32.mrb[0].mxu0
        %1165 = vmatprep.mubr.f32.mxu0 0.0
        %1166 = vmatmul.mubr.f32.gmra.mrb[0].mxu0 %v1064
        %v1167 = vpop.f32.mrb[0].mxu0
        %v1168 = vadd.f32 %v1039, %v1167
        %v1169 = vpop.f32.mrb[0].mxu0
        %1170 = vdwg.mxu0
        %v1171 = vmax.f32 %v1133, 0.0
        %v1172 = vmax.f32 %v1138, 0.0
        %v1173 = vmax.f32 %v1143, 0.0
        %v1174 = vmax.f32 %v1148, 0.0
        %v1175 = vmax.f32 %v1153, 0.0
        %v1176 = vmax.f32 %v1158, 0.0
        %v1177 = vmax.f32 %v1163, 0.0
        %v1178 = vmax.f32 %v1168, 0.0
        %v1179 = vld [vmem:[%s21] sm:$0xff]
        %v1180 = vld [vmem:[%s21 + $0x8] sm:$0xff]
        %v1181 = vld [vmem:[%s21 + $0x10] sm:$0xff]
        %v1182 = vld [vmem:[%s21 + $0x18] sm:$0xff]
        %v1183 = vld [vmem:[%s21 + $0x20] sm:$0xff]
        %v1184 = vld [vmem:[%s21 + $0x28] sm:$0xff]
        %v1185 = vld [vmem:[%s21 + $0x30] sm:$0xff]
        %v1186 = vld [vmem:[%s21 + $0x38] sm:$0xff]
        %v1187 = vld [vmem:[%s21 + $0x40] sm:$0xff]
        %v1188 = vld [vmem:[%s21 + $0x48] sm:$0xff]
        %v1189 = vld [vmem:[%s21 + $0x50] sm:$0xff]
        %v1190 = vld [vmem:[%s21 + $0x58] sm:$0xff]
        %v1191 = vld [vmem:[%s21 + $0x60] sm:$0xff]
        %v1192 = vld [vmem:[%s21 + $0x68] sm:$0xff]
        %v1193 = vld [vmem:[%s21 + $0x70] sm:$0xff]
        %v1194 = vld [vmem:[%s21 + $0x78] sm:$0xff]
        %1195 = vmatprep.subr.mxu0 0.0
        %1196 = vmatpush1.msra.mxu0 %v1179
        %1197 = vmatprep.subr.mxu0 0.0
        %1198 = vmatpush1.msra.mxu0 %v1180
        %1199 = vmatprep.subr.mxu0 0.0
        %1200 = vmatpush1.msra.mxu0 %v1181
        %1201 = vmatprep.subr.mxu0 0.0
        %1202 = vmatpush1.msra.mxu0 %v1182
        %1203 = vmatprep.subr.mxu0 0.0
        %1204 = vmatpush1.msra.mxu0 %v1183
        %1205 = vmatprep.subr.mxu0 0.0
        %1206 = vmatpush1.msra.mxu0 %v1184
        %1207 = vmatprep.subr.mxu0 0.0
        %1208 = vmatpush1.msra.mxu0 %v1185
        %1209 = vmatprep.subr.mxu0 0.0
        %1210 = vmatpush1.msra.mxu0 %v1186
        %1211 = vmatprep.subr.mxu0 0.0
        %1212 = vmatpush1.msra.mxu0 %v1187
        %1213 = vmatprep.subr.mxu0 0.0
        %1214 = vmatpush1.msra.mxu0 %v1188
        %1215 = vmatprep.subr.mxu0 0.0
        %1216 = vmatpush1.msra.mxu0 %v1189
        %1217 = vmatprep.subr.mxu0 0.0
        %1218 = vmatpush1.msra.mxu0 %v1190
        %1219 = vmatprep.subr.mxu0 0.0
        %1220 = vmatpush1.msra.mxu0 %v1191
        %1221 = vmatprep.subr.mxu0 0.0
        %1222 = vmatpush1.msra.mxu0 %v1192
        %1223 = vmatprep.subr.mxu0 0.0
        %1224 = vmatpush1.msra.mxu0 %v1193
        %1225 = vmatprep.subr.mxu0 0.0
        %1226 = vmatpush1.msra.mxu0 %v1194
        %1227 = vmatprep.subr.mxu0 0.0
        %1228 = vmatpush1.msra.mxu0 0.0
        %1229 = vmatprep.subr.mxu0 0.0
        %1230 = vmatpush1.msra.mxu0 0.0
        %1231 = vmatprep.subr.mxu0 0.0
        %1232 = vmatpush1.msra.mxu0 0.0
        %1233 = vmatprep.subr.mxu0 0.0
        %1234 = vmatpush1.msra.mxu0 0.0
        %1235 = vmatprep.subr.mxu0 0.0
        %1236 = vmatpush1.msra.mxu0 0.0
        %1237 = vmatprep.subr.mxu0 0.0
        %1238 = vmatpush1.msra.mxu0 0.0
        %1239 = vmatprep.subr.mxu0 0.0
        %1240 = vmatpush1.msra.mxu0 0.0
        %1241 = vmatprep.subr.mxu0 0.0
        %1242 = vmatpush1.msra.mxu0 0.0
        %1243 = vmatprep.subr.mxu0 0.0
        %1244 = vmatpush1.msra.mxu0 0.0
        %1245 = vmatprep.subr.mxu0 0.0
        %1246 = vmatpush1.msra.mxu0 0.0
        %1247 = vmatprep.subr.mxu0 0.0
        %1248 = vmatpush1.msra.mxu0 0.0
        %1249 = vmatprep.subr.mxu0 0.0
        %1250 = vmatpush1.msra.mxu0 0.0
        %1251 = vmatprep.subr.mxu0 0.0
        %1252 = vmatpush1.msra.mxu0 0.0
        %1253 = vmatprep.subr.mxu0 0.0
        %1254 = vmatpush1.msra.mxu0 0.0
        %1255 = vmatprep.subr.mxu0 0.0
        %1256 = vmatpush1.msra.mxu0 0.0
        %1257 = vmatprep.subr.mxu0 0.0
        %1258 = vmatpush1.msra.mxu0 0.0
        %1259 = vmatprep.mubr.f32.mxu0 0.0
        %1260 = vmatmul.mubr.f32.gmra.mrb[0].mxu0 %v1171
        %v1261 = vpop.f32.mrb[0].mxu0
        %v1262 = vadd.f32 0.0, %v1261
        %v1263 = vpop.f32.mrb[0].mxu0
        %1264 = vmatprep.mubr.f32.mxu0 0.0
        %1265 = vmatmul.mubr.f32.gmra.mrb[0].mxu0 %v1172
        %v1266 = vpop.f32.mrb[0].mxu0
        %v1267 = vadd.f32 0.0, %v1266
        %v1268 = vpop.f32.mrb[0].mxu0
        %1269 = vmatprep.mubr.f32.mxu0 0.0
        %1270 = vmatmul.mubr.f32.gmra.mrb[0].mxu0 %v1173
        %v1271 = vpop.f32.mrb[0].mxu0
        %v1272 = vadd.f32 0.0, %v1271
        %v1273 = vpop.f32.mrb[0].mxu0
        %1274 = vmatprep.mubr.f32.mxu0 0.0
        %1275 = vmatmul.mubr.f32.gmra.mrb[0].mxu0 %v1174
        %v1276 = vpop.f32.mrb[0].mxu0
        %v1277 = vadd.f32 0.0, %v1276
        %v1278 = vpop.f32.mrb[0].mxu0
        %1279 = vmatprep.mubr.f32.mxu0 0.0
        %1280 = vmatmul.mubr.f32.gmra.mrb[0].mxu0 %v1175
        %v1281 = vpop.f32.mrb[0].mxu0
        %v1282 = vadd.f32 0.0, %v1281
        %v1283 = vpop.f32.mrb[0].mxu0
        %1284 = vmatprep.mubr.f32.mxu0 0.0
        %1285 = vmatmul.mubr.f32.gmra.mrb[0].mxu0 %v1176
        %v1286 = vpop.f32.mrb[0].mxu0
        %v1287 = vadd.f32 0.0, %v1286
        %v1288 = vpop.f32.mrb[0].mxu0
        %1289 = vmatprep.mubr.f32.mxu0 0.0
        %1290 = vmatmul.mubr.f32.gmra.mrb[0].mxu0 %v1177
        %v1291 = vpop.f32.mrb[0].mxu0
        %v1292 = vadd.f32 0.0, %v1291
        %v1293 = vpop.f32.mrb[0].mxu0
        %1294 = vmatprep.mubr.f32.mxu0 0.0
        %1295 = vmatmul.mubr.f32.gmra.mrb[0].mxu0 %v1178
        %v1296 = vpop.f32.mrb[0].mxu0
        %v1297 = vadd.f32 0.0, %v1296
        %v1298 = vpop.f32.mrb[0].mxu0
        %1299 = vdwg.mxu0
        %v1300 = vmul.f32 %v1262, 0.03125
        %v1301 = vmul.f32 %v1267, 0.03125
        %v1302 = vmul.f32 %v1272, 0.03125
        %v1303 = vmul.f32 %v1277, 0.03125
        %v1304 = vmul.f32 %v1282, 0.03125
        %v1305 = vmul.f32 %v1287, 0.03125
        %v1306 = vmul.f32 %v1292, 0.03125
        %v1307 = vmul.f32 %v1297, 0.03125
        %v1308 = vld [vmem:[%s6] sm:$0xff]
        %v1309 = vld [vmem:[%s6 + $0x8] sm:$0xff]
        %v1310 = vld [vmem:[%s6 + $0x10] sm:$0xff]
        %v1311 = vld [vmem:[%s6 + $0x18] sm:$0xff]
        %v1312 = vld [vmem:[%s6 + $0x20] sm:$0xff]
        %v1313 = vld [vmem:[%s6 + $0x28] sm:$0xff]
        %v1314 = vld [vmem:[%s6 + $0x30] sm:$0xff]
        %v1315 = vld [vmem:[%s6 + $0x38] sm:$0xff]
        %v1316 = vld [vmem:[%s7] sm:$0xff]
        %v1317 = vld [vmem:[%s7 + $0x8] sm:$0xff]
        %v1318 = vld [vmem:[%s7 + $0x10] sm:$0xff]
        %v1319 = vld [vmem:[%s7 + $0x18] sm:$0xff]
        %v1320 = vld [vmem:[%s7 + $0x20] sm:$0xff]
        %v1321 = vld [vmem:[%s7 + $0x28] sm:$0xff]
        %v1322 = vld [vmem:[%s7 + $0x30] sm:$0xff]
        %v1323 = vld [vmem:[%s7 + $0x38] sm:$0xff]
        %1325 = vset.pattern.permute.xlu0 0
        %1326 = vperm.xlu0 %1325, %v1316
        %v1327 = vpop.permute.xlu0 %1326
        %1330 = vset.pattern.permute.xlu0 0
        %1331 = vperm.xlu0 %1330, %v1317
        %v1332 = vpop.permute.xlu0 %1331
        %1335 = vset.pattern.permute.xlu0 0
        %1336 = vperm.xlu0 %1335, %v1318
        %v1337 = vpop.permute.xlu0 %1336
        %1340 = vset.pattern.permute.xlu0 0
        %1341 = vperm.xlu0 %1340, %v1319
        %v1342 = vpop.permute.xlu0 %1341
        %1345 = vset.pattern.permute.xlu0 0
        %1346 = vperm.xlu0 %1345, %v1320
        %v1347 = vpop.permute.xlu0 %1346
        %1350 = vset.pattern.permute.xlu0 0
        %1351 = vperm.xlu0 %1350, %v1321
        %v1352 = vpop.permute.xlu0 %1351
        %1355 = vset.pattern.permute.xlu0 0
        %1356 = vperm.xlu0 %1355, %v1322
        %v1357 = vpop.permute.xlu0 %1356
        %1360 = vset.pattern.permute.xlu0 0
        %1361 = vperm.xlu0 %1360, %v1323
        %v1362 = vpop.permute.xlu0 %1361
        %v1365 = vsel %vm1041, %v1308, 0
        %v1368 = vsel %vm1041, %v1309, 0
        %v1371 = vsel %vm1041, %v1310, 0
        %v1374 = vsel %vm1041, %v1311, 0
        %v1377 = vsel %vm1041, %v1312, 0
        %v1380 = vsel %vm1041, %v1313, 0
        %v1383 = vsel %vm1041, %v1314, 0
        %v1386 = vsel %vm1041, %v1315, 0
        %1388 = vmatprep.subr.mxu0 0.0
        %1389 = vmatpush1.msra.mxu0 %v1300
        %1390 = vmatprep.subr.mxu0 0.0
        %1391 = vmatpush1.msra.mxu0 %v1301
        %1392 = vmatprep.subr.mxu0 0.0
        %1393 = vmatpush1.msra.mxu0 %v1302
        %1394 = vmatprep.subr.mxu0 0.0
        %1395 = vmatpush1.msra.mxu0 %v1303
        %1396 = vmatprep.subr.mxu0 0.0
        %1397 = vmatpush1.msra.mxu0 %v1304
        %1398 = vmatprep.subr.mxu0 0.0
        %1399 = vmatpush1.msra.mxu0 %v1305
        %1400 = vmatprep.subr.mxu0 0.0
        %1401 = vmatpush1.msra.mxu0 %v1306
        %1402 = vmatprep.subr.mxu0 0.0
        %1403 = vmatpush1.msra.mxu0 %v1307
        %1404 = vmatprep.subr.mxu0 0.0
        %1405 = vmatpush1.msra.mxu0 0.0
        %1406 = vmatprep.subr.mxu0 0.0
        %1407 = vmatpush1.msra.mxu0 0.0
        %1408 = vmatprep.subr.mxu0 0.0
        %1409 = vmatpush1.msra.mxu0 0.0
        %1410 = vmatprep.subr.mxu0 0.0
        %1411 = vmatpush1.msra.mxu0 0.0
        %1412 = vmatprep.subr.mxu0 0.0
        %1413 = vmatpush1.msra.mxu0 0.0
        %1414 = vmatprep.subr.mxu0 0.0
        %1415 = vmatpush1.msra.mxu0 0.0
        %1416 = vmatprep.subr.mxu0 0.0
        %1417 = vmatpush1.msra.mxu0 0.0
        %1418 = vmatprep.subr.mxu0 0.0
        %1419 = vmatpush1.msra.mxu0 0.0
        %1420 = vmatprep.subr.mxu0 0.0
        %1421 = vmatpush1.msra.mxu0 0.0
        %1422 = vmatprep.subr.mxu0 0.0
        %1423 = vmatpush1.msra.mxu0 0.0
        %1424 = vmatprep.subr.mxu0 0.0
        %1425 = vmatpush1.msra.mxu0 0.0
        %1426 = vmatprep.subr.mxu0 0.0
        %1427 = vmatpush1.msra.mxu0 0.0
        %1428 = vmatprep.subr.mxu0 0.0
        %1429 = vmatpush1.msra.mxu0 0.0
        %1430 = vmatprep.subr.mxu0 0.0
        %1431 = vmatpush1.msra.mxu0 0.0
        %1432 = vmatprep.subr.mxu0 0.0
        %1433 = vmatpush1.msra.mxu0 0.0
        %1434 = vmatprep.subr.mxu0 0.0
        %1435 = vmatpush1.msra.mxu0 0.0
        %1436 = vmatprep.subr.mxu0 0.0
        %1437 = vmatpush1.msra.mxu0 0.0
        %1438 = vmatprep.subr.mxu0 0.0
        %1439 = vmatpush1.msra.mxu0 0.0
        %1440 = vmatprep.subr.mxu0 0.0
        %1441 = vmatpush1.msra.mxu0 0.0
        %1442 = vmatprep.subr.mxu0 0.0
        %1443 = vmatpush1.msra.mxu0 0.0
        %1444 = vmatprep.subr.mxu0 0.0
        %1445 = vmatpush1.msra.mxu0 0.0
        %1446 = vmatprep.subr.mxu0 0.0
        %1447 = vmatpush1.msra.mxu0 0.0
        %1448 = vmatprep.subr.mxu0 0.0
        %1449 = vmatpush1.msra.mxu0 0.0
        %1450 = vmatprep.subr.mxu0 0.0
        %1451 = vmatpush1.msra.mxu0 0.0
        %1452 = vmatprep.mubr.f32.mxu0 0.0
        %1453 = vmatmul.mubr.f32.gmra.mrb[0].mxu0 %v1365
        %v1454 = vpop.f32.mrb[0].mxu0
        %v1455 = vadd.f32 %v1327, %v1454
        %v1456 = vpop.f32.mrb[0].mxu0
        %1457 = vmatprep.mubr.f32.mxu0 0.0
        %1458 = vmatmul.mubr.f32.gmra.mrb[0].mxu0 %v1368
        %v1459 = vpop.f32.mrb[0].mxu0
        %v1460 = vadd.f32 %v1332, %v1459
        %v1461 = vpop.f32.mrb[0].mxu0
        %1462 = vmatprep.mubr.f32.mxu0 0.0
        %1463 = vmatmul.mubr.f32.gmra.mrb[0].mxu0 %v1371
        %v1464 = vpop.f32.mrb[0].mxu0
        %v1465 = vadd.f32 %v1337, %v1464
        %v1466 = vpop.f32.mrb[0].mxu0
        %1467 = vmatprep.mubr.f32.mxu0 0.0
        %1468 = vmatmul.mubr.f32.gmra.mrb[0].mxu0 %v1374
        %v1469 = vpop.f32.mrb[0].mxu0
        %v1470 = vadd.f32 %v1342, %v1469
        %v1471 = vpop.f32.mrb[0].mxu0
        %1472 = vmatprep.mubr.f32.mxu0 0.0
        %1473 = vmatmul.mubr.f32.gmra.mrb[0].mxu0 %v1377
        %v1474 = vpop.f32.mrb[0].mxu0
        %v1475 = vadd.f32 %v1347, %v1474
        %v1476 = vpop.f32.mrb[0].mxu0
        %1477 = vmatprep.mubr.f32.mxu0 0.0
        %1478 = vmatmul.mubr.f32.gmra.mrb[0].mxu0 %v1380
        %v1479 = vpop.f32.mrb[0].mxu0
        %v1480 = vadd.f32 %v1352, %v1479
        %v1481 = vpop.f32.mrb[0].mxu0
        %1482 = vmatprep.mubr.f32.mxu0 0.0
        %1483 = vmatmul.mubr.f32.gmra.mrb[0].mxu0 %v1383
        %v1484 = vpop.f32.mrb[0].mxu0
        %v1485 = vadd.f32 %v1357, %v1484
        %v1486 = vpop.f32.mrb[0].mxu0
        %1487 = vmatprep.mubr.f32.mxu0 0.0
        %1488 = vmatmul.mubr.f32.gmra.mrb[0].mxu0 %v1386
        %v1489 = vpop.f32.mrb[0].mxu0
        %v1490 = vadd.f32 %v1362, %v1489
        %v1491 = vpop.f32.mrb[0].mxu0
        %1492 = vdwg.mxu0
        %v1493 = vld [vmem:[%s8] sm:$0xff]
        %v1494 = vld [vmem:[%s8 + $0x8] sm:$0xff]
        %v1495 = vld [vmem:[%s8 + $0x10] sm:$0xff]
        %v1496 = vld [vmem:[%s8 + $0x18] sm:$0xff]
        %v1497 = vld [vmem:[%s8 + $0x20] sm:$0xff]
        %v1498 = vld [vmem:[%s8 + $0x28] sm:$0xff]
        %v1499 = vld [vmem:[%s8 + $0x30] sm:$0xff]
        %v1500 = vld [vmem:[%s8 + $0x38] sm:$0xff]
        %v1501 = vld [vmem:[%s9] sm:$0xff]
        %v1502 = vld [vmem:[%s9 + $0x8] sm:$0xff]
        %v1503 = vld [vmem:[%s9 + $0x10] sm:$0xff]
        %v1504 = vld [vmem:[%s9 + $0x18] sm:$0xff]
        %v1505 = vld [vmem:[%s9 + $0x20] sm:$0xff]
        %v1506 = vld [vmem:[%s9 + $0x28] sm:$0xff]
        %v1507 = vld [vmem:[%s9 + $0x30] sm:$0xff]
        %v1508 = vld [vmem:[%s9 + $0x38] sm:$0xff]
        %1510 = vset.pattern.permute.xlu0 0
        %1511 = vperm.xlu0 %1510, %v1501
        %v1512 = vpop.permute.xlu0 %1511
        %1515 = vset.pattern.permute.xlu0 0
        %1516 = vperm.xlu0 %1515, %v1502
        %v1517 = vpop.permute.xlu0 %1516
        %1520 = vset.pattern.permute.xlu0 0
        %1521 = vperm.xlu0 %1520, %v1503
        %v1522 = vpop.permute.xlu0 %1521
        %1525 = vset.pattern.permute.xlu0 0
        %1526 = vperm.xlu0 %1525, %v1504
        %v1527 = vpop.permute.xlu0 %1526
        %1530 = vset.pattern.permute.xlu0 0
        %1531 = vperm.xlu0 %1530, %v1505
        %v1532 = vpop.permute.xlu0 %1531
        %1535 = vset.pattern.permute.xlu0 0
        %1536 = vperm.xlu0 %1535, %v1506
        %v1537 = vpop.permute.xlu0 %1536
        %1540 = vset.pattern.permute.xlu0 0
        %1541 = vperm.xlu0 %1540, %v1507
        %v1542 = vpop.permute.xlu0 %1541
        %1545 = vset.pattern.permute.xlu0 0
        %1546 = vperm.xlu0 %1545, %v1508
        %v1547 = vpop.permute.xlu0 %1546
        %v1550 = vsel %vm1041, %v1493, 0
        %v1553 = vsel %vm1041, %v1494, 0
        %v1556 = vsel %vm1041, %v1495, 0
        %v1559 = vsel %vm1041, %v1496, 0
        %v1562 = vsel %vm1041, %v1497, 0
        %v1565 = vsel %vm1041, %v1498, 0
        %v1568 = vsel %vm1041, %v1499, 0
        %v1571 = vsel %vm1041, %v1500, 0
        %1573 = vmatprep.subr.mxu0 0.0
        %1574 = vmatpush1.msra.mxu0 %v1455
        %1575 = vmatprep.subr.mxu0 0.0
        %1576 = vmatpush1.msra.mxu0 %v1460
        %1577 = vmatprep.subr.mxu0 0.0
        %1578 = vmatpush1.msra.mxu0 %v1465
        %1579 = vmatprep.subr.mxu0 0.0
        %1580 = vmatpush1.msra.mxu0 %v1470
        %1581 = vmatprep.subr.mxu0 0.0
        %1582 = vmatpush1.msra.mxu0 %v1475
        %1583 = vmatprep.subr.mxu0 0.0
        %1584 = vmatpush1.msra.mxu0 %v1480
        %1585 = vmatprep.subr.mxu0 0.0
        %1586 = vmatpush1.msra.mxu0 %v1485
        %1587 = vmatprep.subr.mxu0 0.0
        %1588 = vmatpush1.msra.mxu0 %v1490
        %1589 = vmatprep.subr.mxu0 0.0
        %1590 = vmatpush1.msra.mxu0 0.0
        %1591 = vmatprep.subr.mxu0 0.0
        %1592 = vmatpush1.msra.mxu0 0.0
        %1593 = vmatprep.subr.mxu0 0.0
        %1594 = vmatpush1.msra.mxu0 0.0
        %1595 = vmatprep.subr.mxu0 0.0
        %1596 = vmatpush1.msra.mxu0 0.0
        %1597 = vmatprep.subr.mxu0 0.0
        %1598 = vmatpush1.msra.mxu0 0.0
        %1599 = vmatprep.subr.mxu0 0.0
        %1600 = vmatpush1.msra.mxu0 0.0
        %1601 = vmatprep.subr.mxu0 0.0
        %1602 = vmatpush1.msra.mxu0 0.0
        %1603 = vmatprep.subr.mxu0 0.0
        %1604 = vmatpush1.msra.mxu0 0.0
        %1605 = vmatprep.subr.mxu0 0.0
        %1606 = vmatpush1.msra.mxu0 0.0
        %1607 = vmatprep.subr.mxu0 0.0
        %1608 = vmatpush1.msra.mxu0 0.0
        %1609 = vmatprep.subr.mxu0 0.0
        %1610 = vmatpush1.msra.mxu0 0.0
        %1611 = vmatprep.subr.mxu0 0.0
        %1612 = vmatpush1.msra.mxu0 0.0
        %1613 = vmatprep.subr.mxu0 0.0
        %1614 = vmatpush1.msra.mxu0 0.0
        %1615 = vmatprep.subr.mxu0 0.0
        %1616 = vmatpush1.msra.mxu0 0.0
        %1617 = vmatprep.subr.mxu0 0.0
        %1618 = vmatpush1.msra.mxu0 0.0
        %1619 = vmatprep.subr.mxu0 0.0
        %1620 = vmatpush1.msra.mxu0 0.0
        %1621 = vmatprep.subr.mxu0 0.0
        %1622 = vmatpush1.msra.mxu0 0.0
        %1623 = vmatprep.subr.mxu0 0.0
        %1624 = vmatpush1.msra.mxu0 0.0
        %1625 = vmatprep.subr.mxu0 0.0
        %1626 = vmatpush1.msra.mxu0 0.0
        %1627 = vmatprep.subr.mxu0 0.0
        %1628 = vmatpush1.msra.mxu0 0.0
        %1629 = vmatprep.subr.mxu0 0.0
        %1630 = vmatpush1.msra.mxu0 0.0
        %1631 = vmatprep.subr.mxu0 0.0
        %1632 = vmatpush1.msra.mxu0 0.0
        %1633 = vmatprep.subr.mxu0 0.0
        %1634 = vmatpush1.msra.mxu0 0.0
        %1635 = vmatprep.subr.mxu0 0.0
        %1636 = vmatpush1.msra.mxu0 0.0
        %1637 = vmatprep.mubr.f32.mxu0 0.0
        %1638 = vmatmul.mubr.f32.gmra.mrb[0].mxu0 %v1550
        %v1639 = vpop.f32.mrb[0].mxu0
        %v1640 = vadd.f32 %v1512, %v1639
        %v1641 = vpop.f32.mrb[0].mxu0
        %1642 = vmatprep.mubr.f32.mxu0 0.0
        %1643 = vmatmul.mubr.f32.gmra.mrb[0].mxu0 %v1553
        %v1644 = vpop.f32.mrb[0].mxu0
        %v1645 = vadd.f32 %v1517, %v1644
        %v1646 = vpop.f32.mrb[0].mxu0
        %1647 = vmatprep.mubr.f32.mxu0 0.0
        %1648 = vmatmul.mubr.f32.gmra.mrb[0].mxu0 %v1556
        %v1649 = vpop.f32.mrb[0].mxu0
        %v1650 = vadd.f32 %v1522, %v1649
        %v1651 = vpop.f32.mrb[0].mxu0
        %1652 = vmatprep.mubr.f32.mxu0 0.0
        %1653 = vmatmul.mubr.f32.gmra.mrb[0].mxu0 %v1559
        %v1654 = vpop.f32.mrb[0].mxu0
        %v1655 = vadd.f32 %v1527, %v1654
        %v1656 = vpop.f32.mrb[0].mxu0
        %1657 = vmatprep.mubr.f32.mxu0 0.0
        %1658 = vmatmul.mubr.f32.gmra.mrb[0].mxu0 %v1562
        %v1659 = vpop.f32.mrb[0].mxu0
        %v1660 = vadd.f32 %v1532, %v1659
        %v1661 = vpop.f32.mrb[0].mxu0
        %1662 = vmatprep.mubr.f32.mxu0 0.0
        %1663 = vmatmul.mubr.f32.gmra.mrb[0].mxu0 %v1565
        %v1664 = vpop.f32.mrb[0].mxu0
        %v1665 = vadd.f32 %v1537, %v1664
        %v1666 = vpop.f32.mrb[0].mxu0
        %1667 = vmatprep.mubr.f32.mxu0 0.0
        %1668 = vmatmul.mubr.f32.gmra.mrb[0].mxu0 %v1568
        %v1669 = vpop.f32.mrb[0].mxu0
        %v1670 = vadd.f32 %v1542, %v1669
        %v1671 = vpop.f32.mrb[0].mxu0
        %1672 = vmatprep.mubr.f32.mxu0 0.0
        %1673 = vmatmul.mubr.f32.gmra.mrb[0].mxu0 %v1571
        %v1674 = vpop.f32.mrb[0].mxu0
        %v1675 = vadd.f32 %v1547, %v1674
        %v1676 = vpop.f32.mrb[0].mxu0
        %1677 = vdwg.mxu0
        %v1678 = vmax.f32 %v1640, 0.0
        %v1679 = vmax.f32 %v1645, 0.0
        %v1680 = vmax.f32 %v1650, 0.0
        %v1681 = vmax.f32 %v1655, 0.0
        %v1682 = vmax.f32 %v1660, 0.0
        %v1683 = vmax.f32 %v1665, 0.0
        %v1684 = vmax.f32 %v1670, 0.0
        %v1685 = vmax.f32 %v1675, 0.0
        %v1686 = vld [vmem:[%s10] sm:$0xff]
        %v1687 = vld [vmem:[%s10 + $0x8] sm:$0xff]
        %v1688 = vld [vmem:[%s10 + $0x10] sm:$0xff]
        %v1689 = vld [vmem:[%s10 + $0x18] sm:$0xff]
        %v1690 = vld [vmem:[%s10 + $0x20] sm:$0xff]
        %v1691 = vld [vmem:[%s10 + $0x28] sm:$0xff]
        %v1692 = vld [vmem:[%s10 + $0x30] sm:$0xff]
        %v1693 = vld [vmem:[%s10 + $0x38] sm:$0xff]
        %v1694 = vld [vmem:[%s11] sm:$0xff]
        %v1695 = vld [vmem:[%s11 + $0x8] sm:$0xff]
        %v1696 = vld [vmem:[%s11 + $0x10] sm:$0xff]
        %v1697 = vld [vmem:[%s11 + $0x18] sm:$0xff]
        %v1698 = vld [vmem:[%s11 + $0x20] sm:$0xff]
        %v1699 = vld [vmem:[%s11 + $0x28] sm:$0xff]
        %v1700 = vld [vmem:[%s11 + $0x30] sm:$0xff]
        %v1701 = vld [vmem:[%s11 + $0x38] sm:$0xff]
        %1703 = vset.pattern.permute.xlu0 0
        %1704 = vperm.xlu0 %1703, %v1694
        %v1705 = vpop.permute.xlu0 %1704
        %1708 = vset.pattern.permute.xlu0 0
        %1709 = vperm.xlu0 %1708, %v1695
        %v1710 = vpop.permute.xlu0 %1709
        %1713 = vset.pattern.permute.xlu0 0
        %1714 = vperm.xlu0 %1713, %v1696
        %v1715 = vpop.permute.xlu0 %1714
        %1718 = vset.pattern.permute.xlu0 0
        %1719 = vperm.xlu0 %1718, %v1697
        %v1720 = vpop.permute.xlu0 %1719
        %1723 = vset.pattern.permute.xlu0 0
        %1724 = vperm.xlu0 %1723, %v1698
        %v1725 = vpop.permute.xlu0 %1724
        %1728 = vset.pattern.permute.xlu0 0
        %1729 = vperm.xlu0 %1728, %v1699
        %v1730 = vpop.permute.xlu0 %1729
        %1733 = vset.pattern.permute.xlu0 0
        %1734 = vperm.xlu0 %1733, %v1700
        %v1735 = vpop.permute.xlu0 %1734
        %1738 = vset.pattern.permute.xlu0 0
        %1739 = vperm.xlu0 %1738, %v1701
        %v1740 = vpop.permute.xlu0 %1739
        %v1743 = vsel %vm1041, %v1686, 0
        %v1746 = vsel %vm1041, %v1687, 0
        %v1749 = vsel %vm1041, %v1688, 0
        %v1752 = vsel %vm1041, %v1689, 0
        %v1755 = vsel %vm1041, %v1690, 0
        %v1758 = vsel %vm1041, %v1691, 0
        %v1761 = vsel %vm1041, %v1692, 0
        %v1764 = vsel %vm1041, %v1693, 0
        %1766 = vmatprep.subr.mxu0 0.0
        %1767 = vmatpush1.msra.mxu0 %v1678
        %1768 = vmatprep.subr.mxu0 0.0
        %1769 = vmatpush1.msra.mxu0 %v1679
        %1770 = vmatprep.subr.mxu0 0.0
        %1771 = vmatpush1.msra.mxu0 %v1680
        %1772 = vmatprep.subr.mxu0 0.0
        %1773 = vmatpush1.msra.mxu0 %v1681
        %1774 = vmatprep.subr.mxu0 0.0
        %1775 = vmatpush1.msra.mxu0 %v1682
        %1776 = vmatprep.subr.mxu0 0.0
        %1777 = vmatpush1.msra.mxu0 %v1683
        %1778 = vmatprep.subr.mxu0 0.0
        %1779 = vmatpush1.msra.mxu0 %v1684
        %1780 = vmatprep.subr.mxu0 0.0
        %1781 = vmatpush1.msra.mxu0 %v1685
        %1782 = vmatprep.subr.mxu0 0.0
        %1783 = vmatpush1.msra.mxu0 0.0
        %1784 = vmatprep.subr.mxu0 0.0
        %1785 = vmatpush1.msra.mxu0 0.0
        %1786 = vmatprep.subr.mxu0 0.0
        %1787 = vmatpush1.msra.mxu0 0.0
        %1788 = vmatprep.subr.mxu0 0.0
        %1789 = vmatpush1.msra.mxu0 0.0
        %1790 = vmatprep.subr.mxu0 0.0
        %1791 = vmatpush1.msra.mxu0 0.0
        %1792 = vmatprep.subr.mxu0 0.0
        %1793 = vmatpush1.msra.mxu0 0.0
        %1794 = vmatprep.subr.mxu0 0.0
        %1795 = vmatpush1.msra.mxu0 0.0
        %1796 = vmatprep.subr.mxu0 0.0
        %1797 = vmatpush1.msra.mxu0 0.0
        %1798 = vmatprep.subr.mxu0 0.0
        %1799 = vmatpush1.msra.mxu0 0.0
        %1800 = vmatprep.subr.mxu0 0.0
        %1801 = vmatpush1.msra.mxu0 0.0
        %1802 = vmatprep.subr.mxu0 0.0
        %1803 = vmatpush1.msra.mxu0 0.0
        %1804 = vmatprep.subr.mxu0 0.0
        %1805 = vmatpush1.msra.mxu0 0.0
        %1806 = vmatprep.subr.mxu0 0.0
        %1807 = vmatpush1.msra.mxu0 0.0
        %1808 = vmatprep.subr.mxu0 0.0
        %1809 = vmatpush1.msra.mxu0 0.0
        %1810 = vmatprep.subr.mxu0 0.0
        %1811 = vmatpush1.msra.mxu0 0.0
        %1812 = vmatprep.subr.mxu0 0.0
        %1813 = vmatpush1.msra.mxu0 0.0
        %1814 = vmatprep.subr.mxu0 0.0
        %1815 = vmatpush1.msra.mxu0 0.0
        %1816 = vmatprep.subr.mxu0 0.0
        %1817 = vmatpush1.msra.mxu0 0.0
        %1818 = vmatprep.subr.mxu0 0.0
        %1819 = vmatpush1.msra.mxu0 0.0
        %1820 = vmatprep.subr.mxu0 0.0
        %1821 = vmatpush1.msra.mxu0 0.0
        %1822 = vmatprep.subr.mxu0 0.0
        %1823 = vmatpush1.msra.mxu0 0.0
        %1824 = vmatprep.subr.mxu0 0.0
        %1825 = vmatpush1.msra.mxu0 0.0
        %1826 = vmatprep.subr.mxu0 0.0
        %1827 = vmatpush1.msra.mxu0 0.0
        %1828 = vmatprep.subr.mxu0 0.0
        %1829 = vmatpush1.msra.mxu0 0.0
        %1830 = vmatprep.mubr.f32.mxu0 0.0
        %1831 = vmatmul.mubr.f32.gmra.mrb[0].mxu0 %v1743
        %v1832 = vpop.f32.mrb[0].mxu0
        %v1833 = vadd.f32 %v1705, %v1832
        %v1834 = vpop.f32.mrb[0].mxu0
        %1835 = vmatprep.mubr.f32.mxu0 0.0
        %1836 = vmatmul.mubr.f32.gmra.mrb[0].mxu0 %v1746
        %v1837 = vpop.f32.mrb[0].mxu0
        %v1838 = vadd.f32 %v1710, %v1837
        %v1839 = vpop.f32.mrb[0].mxu0
        %1840 = vmatprep.mubr.f32.mxu0 0.0
        %1841 = vmatmul.mubr.f32.gmra.mrb[0].mxu0 %v1749
        %v1842 = vpop.f32.mrb[0].mxu0
        %v1843 = vadd.f32 %v1715, %v1842
        %v1844 = vpop.f32.mrb[0].mxu0
        %1845 = vmatprep.mubr.f32.mxu0 0.0
        %1846 = vmatmul.mubr.f32.gmra.mrb[0].mxu0 %v1752
        %v1847 = vpop.f32.mrb[0].mxu0
        %v1848 = vadd.f32 %v1720, %v1847
        %v1849 = vpop.f32.mrb[0].mxu0
        %1850 = vmatprep.mubr.f32.mxu0 0.0
        %1851 = vmatmul.mubr.f32.gmra.mrb[0].mxu0 %v1755
        %v1852 = vpop.f32.mrb[0].mxu0
        %v1853 = vadd.f32 %v1725, %v1852
        %v1854 = vpop.f32.mrb[0].mxu0
        %1855 = vmatprep.mubr.f32.mxu0 0.0
        %1856 = vmatmul.mubr.f32.gmra.mrb[0].mxu0 %v1758
        %v1857 = vpop.f32.mrb[0].mxu0
        %v1858 = vadd.f32 %v1730, %v1857
        %v1859 = vpop.f32.mrb[0].mxu0
        %1860 = vmatprep.mubr.f32.mxu0 0.0
        %1861 = vmatmul.mubr.f32.gmra.mrb[0].mxu0 %v1761
        %v1862 = vpop.f32.mrb[0].mxu0
        %v1863 = vadd.f32 %v1735, %v1862
        %v1864 = vpop.f32.mrb[0].mxu0
        %1865 = vmatprep.mubr.f32.mxu0 0.0
        %1866 = vmatmul.mubr.f32.gmra.mrb[0].mxu0 %v1764
        %v1867 = vpop.f32.mrb[0].mxu0
        %v1868 = vadd.f32 %v1740, %v1867
        %v1869 = vpop.f32.mrb[0].mxu0
        %1870 = vdwg.mxu0
        %v1871 = vld [vmem:[%s12] sm:$0xff]
        %v1872 = vld [vmem:[%s12 + $0x8] sm:$0xff]
        %v1873 = vld [vmem:[%s12 + $0x10] sm:$0xff]
        %v1874 = vld [vmem:[%s12 + $0x18] sm:$0xff]
        %v1875 = vld [vmem:[%s12 + $0x20] sm:$0xff]
        %v1876 = vld [vmem:[%s12 + $0x28] sm:$0xff]
        %v1877 = vld [vmem:[%s12 + $0x30] sm:$0xff]
        %v1878 = vld [vmem:[%s12 + $0x38] sm:$0xff]
        %v1879 = vld [vmem:[%s753] sm:$0xf]
        %v1880 = vld [vmem:[%s13] sm:$0xff]
        %v1881 = vld [vmem:[%s13 + $0x8] sm:$0xff]
        %v1882 = vld [vmem:[%s13 + $0x10] sm:$0xff]
        %v1883 = vld [vmem:[%s13 + $0x18] sm:$0xff]
        %v1884 = vld [vmem:[%s13 + $0x20] sm:$0xff]
        %v1885 = vld [vmem:[%s13 + $0x28] sm:$0xff]
        %v1886 = vld [vmem:[%s13 + $0x30] sm:$0xff]
        %v1887 = vld [vmem:[%s13 + $0x38] sm:$0xff]
        %1889 = vset.pattern.permute.xlu0 0
        %1890 = vperm.xlu0 %1889, %v1871
        %v1891 = vpop.permute.xlu0 %1890
        %1894 = vset.pattern.permute.xlu0 0
        %1895 = vperm.xlu0 %1894, %v1872
        %v1896 = vpop.permute.xlu0 %1895
        %1899 = vset.pattern.permute.xlu0 0
        %1900 = vperm.xlu0 %1899, %v1873
        %v1901 = vpop.permute.xlu0 %1900
        %1904 = vset.pattern.permute.xlu0 0
        %1905 = vperm.xlu0 %1904, %v1874
        %v1906 = vpop.permute.xlu0 %1905
        %1909 = vset.pattern.permute.xlu0 0
        %1910 = vperm.xlu0 %1909, %v1875
        %v1911 = vpop.permute.xlu0 %1910
        %1914 = vset.pattern.permute.xlu0 0
        %1915 = vperm.xlu0 %1914, %v1876
        %v1916 = vpop.permute.xlu0 %1915
        %1919 = vset.pattern.permute.xlu0 0
        %1920 = vperm.xlu0 %1919, %v1877
        %v1921 = vpop.permute.xlu0 %1920
        %1924 = vset.pattern.permute.xlu0 0
        %1925 = vperm.xlu0 %1924, %v1878
        %v1926 = vpop.permute.xlu0 %1925
        %v1929 = vlaneseq
        %v1930 = vshrl.u32 %v1929, 7
        %v1931 = vsub.s32 0, %v1930
        %v1932 = vrot.slane %v1879, %v1931
        %v1933 = vlaneseq
        %v1934 = vshrl.u32 %v1933, 7
        %v1935 = vsub.s32 2, %v1934
        %v1936 = vrot.slane %v1879, %v1935
        %v1939 = vlaneseq
        %v1940 = vshrl.u32 %v1939, 7
        %v1941 = vsub.s32 0, %v1940
        %v1942 = vrot.slane %v1932, %v1941
        %v1943 = vlaneseq
        %v1944 = vshrl.u32 %v1943, 7
        %v1945 = vsub.s32 0, %v1944
        %v1946 = vrot.slane %v1936, %v1945
        %v1947 = vmul.f32 %v1891, %v1942
        %v1948 = vmul.f32 %v1891, %v1946
        %v1949 = vmul.f32 %v1896, %v1942
        %v1950 = vmul.f32 %v1896, %v1946
        %v1951 = vmul.f32 %v1901, %v1942
        %v1952 = vmul.f32 %v1901, %v1946
        %v1953 = vmul.f32 %v1906, %v1942
        %v1954 = vmul.f32 %v1906, %v1946
        %v1955 = vmul.f32 %v1911, %v1942
        %v1956 = vmul.f32 %v1911, %v1946
        %v1957 = vmul.f32 %v1916, %v1942
        %v1958 = vmul.f32 %v1916, %v1946
        %v1959 = vmul.f32 %v1921, %v1942
        %v1960 = vmul.f32 %v1921, %v1946
        %v1961 = vmul.f32 %v1926, %v1942
        %v1962 = vmul.f32 %v1926, %v1946
        %1964 = vset.pattern.permute.xlu0 0
        %1965 = vperm.xlu0 %1964, %v1880
        %v1966 = vpop.permute.xlu0 %1965
        %1969 = vset.pattern.permute.xlu0 0
        %1970 = vperm.xlu0 %1969, %v1881
        %v1971 = vpop.permute.xlu0 %1970
        %1974 = vset.pattern.permute.xlu0 0
        %1975 = vperm.xlu0 %1974, %v1882
        %v1976 = vpop.permute.xlu0 %1975
        %1979 = vset.pattern.permute.xlu0 0
        %1980 = vperm.xlu0 %1979, %v1883
        %v1981 = vpop.permute.xlu0 %1980
        %1984 = vset.pattern.permute.xlu0 0
        %1985 = vperm.xlu0 %1984, %v1884
        %v1986 = vpop.permute.xlu0 %1985
        %1989 = vset.pattern.permute.xlu0 0
        %1990 = vperm.xlu0 %1989, %v1885
        %v1991 = vpop.permute.xlu0 %1990
        %1994 = vset.pattern.permute.xlu0 0
        %1995 = vperm.xlu0 %1994, %v1886
        %v1996 = vpop.permute.xlu0 %1995
        %1999 = vset.pattern.permute.xlu0 0
        %2000 = vperm.xlu0 %1999, %v1887
        %v2001 = vpop.permute.xlu0 %2000
        %v2003 = vadd.f32 %v1966, %v1947
        %v2004 = vadd.f32 %v1966, %v1948
        %v2005 = vadd.f32 %v1971, %v1949
        %v2006 = vadd.f32 %v1971, %v1950
        %v2007 = vadd.f32 %v1976, %v1951
        %v2008 = vadd.f32 %v1976, %v1952
        %v2009 = vadd.f32 %v1981, %v1953
        %v2010 = vadd.f32 %v1981, %v1954
        %v2011 = vadd.f32 %v1986, %v1955
        %v2012 = vadd.f32 %v1986, %v1956
        %v2013 = vadd.f32 %v1991, %v1957
        %v2014 = vadd.f32 %v1991, %v1958
        %v2015 = vadd.f32 %v1996, %v1959
        %v2016 = vadd.f32 %v1996, %v1960
        %v2017 = vadd.f32 %v2001, %v1961
        %v2018 = vadd.f32 %v2001, %v1962
        %2019 = vset.pattern.permute.xlu0 1
        %2020 = vperm.xlu0 %2019, %v1871
        %v2021 = vpop.permute.xlu0 %2020
        %2023 = vset.pattern.permute.xlu0 1
        %2024 = vperm.xlu0 %2023, %v1872
        %v2025 = vpop.permute.xlu0 %2024
        %2027 = vset.pattern.permute.xlu0 1
        %2028 = vperm.xlu0 %2027, %v1873
        %v2029 = vpop.permute.xlu0 %2028
        %2031 = vset.pattern.permute.xlu0 1
        %2032 = vperm.xlu0 %2031, %v1874
        %v2033 = vpop.permute.xlu0 %2032
        %2035 = vset.pattern.permute.xlu0 1
        %2036 = vperm.xlu0 %2035, %v1875
        %v2037 = vpop.permute.xlu0 %2036
        %2039 = vset.pattern.permute.xlu0 1
        %2040 = vperm.xlu0 %2039, %v1876
        %v2041 = vpop.permute.xlu0 %2040
        %2043 = vset.pattern.permute.xlu0 1
        %2044 = vperm.xlu0 %2043, %v1877
        %v2045 = vpop.permute.xlu0 %2044
        %2047 = vset.pattern.permute.xlu0 1
        %2048 = vperm.xlu0 %2047, %v1878
        %v2049 = vpop.permute.xlu0 %2048
        %v2051 = vlaneseq
        %v2052 = vshrl.u32 %v2051, 7
        %v2053 = vsub.s32 1, %v2052
        %v2054 = vrot.slane %v1879, %v2053
        %v2055 = vlaneseq
        %v2056 = vshrl.u32 %v2055, 7
        %v2057 = vsub.s32 3, %v2056
        %v2058 = vrot.slane %v1879, %v2057
        %v2061 = vlaneseq
        %v2062 = vshrl.u32 %v2061, 7
        %v2063 = vsub.s32 1, %v2062
        %v2064 = vrot.slane %v2054, %v2063
        %v2065 = vlaneseq
        %v2066 = vshrl.u32 %v2065, 7
        %v2067 = vsub.s32 1, %v2066
        %v2068 = vrot.slane %v2058, %v2067
        %v2069 = vmul.f32 %v2021, %v2064
        %v2070 = vmul.f32 %v2021, %v2068
        %v2071 = vmul.f32 %v2025, %v2064
        %v2072 = vmul.f32 %v2025, %v2068
        %v2073 = vmul.f32 %v2029, %v2064
        %v2074 = vmul.f32 %v2029, %v2068
        %v2075 = vmul.f32 %v2033, %v2064
        %v2076 = vmul.f32 %v2033, %v2068
        %v2077 = vmul.f32 %v2037, %v2064
        %v2078 = vmul.f32 %v2037, %v2068
        %v2079 = vmul.f32 %v2041, %v2064
        %v2080 = vmul.f32 %v2041, %v2068
        %v2081 = vmul.f32 %v2045, %v2064
        %v2082 = vmul.f32 %v2045, %v2068
        %v2083 = vmul.f32 %v2049, %v2064
        %v2084 = vmul.f32 %v2049, %v2068
        %v2085 = vadd.f32 %v2003, %v2069
        %v2086 = vadd.f32 %v2004, %v2070
        %v2087 = vadd.f32 %v2005, %v2071
        %v2088 = vadd.f32 %v2006, %v2072
        %v2089 = vadd.f32 %v2007, %v2073
        %v2090 = vadd.f32 %v2008, %v2074
        %v2091 = vadd.f32 %v2009, %v2075
        %v2092 = vadd.f32 %v2010, %v2076
        %v2093 = vadd.f32 %v2011, %v2077
        %v2094 = vadd.f32 %v2012, %v2078
        %v2095 = vadd.f32 %v2013, %v2079
        %v2096 = vadd.f32 %v2014, %v2080
        %v2097 = vadd.f32 %v2015, %v2081
        %v2098 = vadd.f32 %v2016, %v2082
        %v2099 = vadd.f32 %v2017, %v2083
        %v2100 = vadd.f32 %v2018, %v2084
        %v2101 = vmax.f32 %v2085, 0.0
        %v2102 = vmax.f32 %v2086, 0.0
        %v2103 = vmax.f32 %v2087, 0.0
        %v2104 = vmax.f32 %v2088, 0.0
        %v2105 = vmax.f32 %v2089, 0.0
        %v2106 = vmax.f32 %v2090, 0.0
        %v2107 = vmax.f32 %v2091, 0.0
        %v2108 = vmax.f32 %v2092, 0.0
        %v2109 = vmax.f32 %v2093, 0.0
        %v2110 = vmax.f32 %v2094, 0.0
        %v2111 = vmax.f32 %v2095, 0.0
        %v2112 = vmax.f32 %v2096, 0.0
        %v2113 = vmax.f32 %v2097, 0.0
        %v2114 = vmax.f32 %v2098, 0.0
        %v2115 = vmax.f32 %v2099, 0.0
        %v2116 = vmax.f32 %v2100, 0.0
        %v2117 = vld [vmem:[%s14] sm:$0xff]
        %v2118 = vld [vmem:[%s14 + $0x8] sm:$0xff]
        %v2119 = vld [vmem:[%s14 + $0x10] sm:$0xff]
        %v2120 = vld [vmem:[%s14 + $0x18] sm:$0xff]
        %v2121 = vld [vmem:[%s14 + $0x20] sm:$0xff]
        %v2122 = vld [vmem:[%s14 + $0x28] sm:$0xff]
        %v2123 = vld [vmem:[%s14 + $0x30] sm:$0xff]
        %v2124 = vld [vmem:[%s14 + $0x38] sm:$0xff]
        %v2125 = vld [vmem:[%s15] sm:$0xff]
        %v2126 = vld [vmem:[%s15 + $0x8] sm:$0xff]
        %v2127 = vld [vmem:[%s15 + $0x10] sm:$0xff]
        %v2128 = vld [vmem:[%s15 + $0x18] sm:$0xff]
        %v2129 = vld [vmem:[%s15 + $0x20] sm:$0xff]
        %v2130 = vld [vmem:[%s15 + $0x28] sm:$0xff]
        %v2131 = vld [vmem:[%s15 + $0x30] sm:$0xff]
        %v2132 = vld [vmem:[%s15 + $0x38] sm:$0xff]
        %2134 = vset.pattern.permute.xlu0 0
        %2135 = vperm.xlu0 %2134, %v2125
        %v2136 = vpop.permute.xlu0 %2135
        %2139 = vset.pattern.permute.xlu0 0
        %2140 = vperm.xlu0 %2139, %v2126
        %v2141 = vpop.permute.xlu0 %2140
        %2144 = vset.pattern.permute.xlu0 0
        %2145 = vperm.xlu0 %2144, %v2127
        %v2146 = vpop.permute.xlu0 %2145
        %2149 = vset.pattern.permute.xlu0 0
        %2150 = vperm.xlu0 %2149, %v2128
        %v2151 = vpop.permute.xlu0 %2150
        %2154 = vset.pattern.permute.xlu0 0
        %2155 = vperm.xlu0 %2154, %v2129
        %v2156 = vpop.permute.xlu0 %2155
        %2159 = vset.pattern.permute.xlu0 0
        %2160 = vperm.xlu0 %2159, %v2130
        %v2161 = vpop.permute.xlu0 %2160
        %2164 = vset.pattern.permute.xlu0 0
        %2165 = vperm.xlu0 %2164, %v2131
        %v2166 = vpop.permute.xlu0 %2165
        %2169 = vset.pattern.permute.xlu0 0
        %2170 = vperm.xlu0 %2169, %v2132
        %v2171 = vpop.permute.xlu0 %2170
        %v2174 = vsel %vm1041, %v2117, 0
        %v2177 = vsel %vm1041, %v2118, 0
        %v2180 = vsel %vm1041, %v2119, 0
        %v2183 = vsel %vm1041, %v2120, 0
        %v2186 = vsel %vm1041, %v2121, 0
        %v2189 = vsel %vm1041, %v2122, 0
        %v2192 = vsel %vm1041, %v2123, 0
        %v2195 = vsel %vm1041, %v2124, 0
        %2197 = vmatprep.subr.mxu0 %v2102
        %2198 = vmatpush1.msra.mxu0 %v2101
        %2199 = vmatprep.subr.mxu0 %v2104
        %2200 = vmatpush1.msra.mxu0 %v2103
        %2201 = vmatprep.subr.mxu0 %v2106
        %2202 = vmatpush1.msra.mxu0 %v2105
        %2203 = vmatprep.subr.mxu0 %v2108
        %2204 = vmatpush1.msra.mxu0 %v2107
        %2205 = vmatprep.subr.mxu0 %v2110
        %2206 = vmatpush1.msra.mxu0 %v2109
        %2207 = vmatprep.subr.mxu0 %v2112
        %2208 = vmatpush1.msra.mxu0 %v2111
        %2209 = vmatprep.subr.mxu0 %v2114
        %2210 = vmatpush1.msra.mxu0 %v2113
        %2211 = vmatprep.subr.mxu0 %v2116
        %2212 = vmatpush1.msra.mxu0 %v2115
        %2213 = vmatprep.subr.mxu0 0.0
        %2214 = vmatpush1.msra.mxu0 0.0
        %2215 = vmatprep.subr.mxu0 0.0
        %2216 = vmatpush1.msra.mxu0 0.0
        %2217 = vmatprep.subr.mxu0 0.0
        %2218 = vmatpush1.msra.mxu0 0.0
        %2219 = vmatprep.subr.mxu0 0.0
        %2220 = vmatpush1.msra.mxu0 0.0
        %2221 = vmatprep.subr.mxu0 0.0
        %2222 = vmatpush1.msra.mxu0 0.0
        %2223 = vmatprep.subr.mxu0 0.0
        %2224 = vmatpush1.msra.mxu0 0.0
        %2225 = vmatprep.subr.mxu0 0.0
        %2226 = vmatpush1.msra.mxu0 0.0
        %2227 = vmatprep.subr.mxu0 0.0
        %2228 = vmatpush1.msra.mxu0 0.0
        %2229 = vmatprep.subr.mxu0 0.0
        %2230 = vmatpush1.msra.mxu0 0.0
        %2231 = vmatprep.subr.mxu0 0.0
        %2232 = vmatpush1.msra.mxu0 0.0
        %2233 = vmatprep.subr.mxu0 0.0
        %2234 = vmatpush1.msra.mxu0 0.0
        %2235 = vmatprep.subr.mxu0 0.0
        %2236 = vmatpush1.msra.mxu0 0.0
        %2237 = vmatprep.subr.mxu0 0.0
        %2238 = vmatpush1.msra.mxu0 0.0
        %2239 = vmatprep.subr.mxu0 0.0
        %2240 = vmatpush1.msra.mxu0 0.0
        %2241 = vmatprep.subr.mxu0 0.0
        %2242 = vmatpush1.msra.mxu0 0.0
        %2243 = vmatprep.subr.mxu0 0.0
        %2244 = vmatpush1.msra.mxu0 0.0
        %2245 = vmatprep.subr.mxu0 0.0
        %2246 = vmatpush1.msra.mxu0 0.0
        %2247 = vmatprep.subr.mxu0 0.0
        %2248 = vmatpush1.msra.mxu0 0.0
        %2249 = vmatprep.subr.mxu0 0.0
        %2250 = vmatpush1.msra.mxu0 0.0
        %2251 = vmatprep.subr.mxu0 0.0
        %2252 = vmatpush1.msra.mxu0 0.0
        %2253 = vmatprep.subr.mxu0 0.0
        %2254 = vmatpush1.msra.mxu0 0.0
        %2255 = vmatprep.subr.mxu0 0.0
        %2256 = vmatpush1.msra.mxu0 0.0
        %2257 = vmatprep.subr.mxu0 0.0
        %2258 = vmatpush1.msra.mxu0 0.0
        %2259 = vmatprep.subr.mxu0 0.0
        %2260 = vmatpush1.msra.mxu0 0.0
        %2261 = vmatprep.mubr.f32.mxu0 0.0
        %2262 = vmatmul.mubr.f32.gmra.mrb[0].mxu0 %v2174
        %v2263 = vpop.f32.mrb[0].mxu0
        %v2264 = vadd.f32 %v2136, %v2263
        %v2265 = vpop.f32.mrb[0].mxu0
        %v2266 = vadd.f32 %v2136, %v2265
        %2267 = vmatprep.mubr.f32.mxu0 0.0
        %2268 = vmatmul.mubr.f32.gmra.mrb[0].mxu0 %v2177
        %v2269 = vpop.f32.mrb[0].mxu0
        %v2270 = vadd.f32 %v2141, %v2269
        %v2271 = vpop.f32.mrb[0].mxu0
        %v2272 = vadd.f32 %v2141, %v2271
        %2273 = vmatprep.mubr.f32.mxu0 0.0
        %2274 = vmatmul.mubr.f32.gmra.mrb[0].mxu0 %v2180
        %v2275 = vpop.f32.mrb[0].mxu0
        %v2276 = vadd.f32 %v2146, %v2275
        %v2277 = vpop.f32.mrb[0].mxu0
        %v2278 = vadd.f32 %v2146, %v2277
        %2279 = vmatprep.mubr.f32.mxu0 0.0
        %2280 = vmatmul.mubr.f32.gmra.mrb[0].mxu0 %v2183
        %v2281 = vpop.f32.mrb[0].mxu0
        %v2282 = vadd.f32 %v2151, %v2281
        %v2283 = vpop.f32.mrb[0].mxu0
        %v2284 = vadd.f32 %v2151, %v2283
        %2285 = vmatprep.mubr.f32.mxu0 0.0
        %2286 = vmatmul.mubr.f32.gmra.mrb[0].mxu0 %v2186
        %v2287 = vpop.f32.mrb[0].mxu0
        %v2288 = vadd.f32 %v2156, %v2287
        %v2289 = vpop.f32.mrb[0].mxu0
        %v2290 = vadd.f32 %v2156, %v2289
        %2291 = vmatprep.mubr.f32.mxu0 0.0
        %2292 = vmatmul.mubr.f32.gmra.mrb[0].mxu0 %v2189
        %v2293 = vpop.f32.mrb[0].mxu0
        %v2294 = vadd.f32 %v2161, %v2293
        %v2295 = vpop.f32.mrb[0].mxu0
        %v2296 = vadd.f32 %v2161, %v2295
        %2297 = vmatprep.mubr.f32.mxu0 0.0
        %2298 = vmatmul.mubr.f32.gmra.mrb[0].mxu0 %v2192
        %v2299 = vpop.f32.mrb[0].mxu0
        %v2300 = vadd.f32 %v2166, %v2299
        %v2301 = vpop.f32.mrb[0].mxu0
        %v2302 = vadd.f32 %v2166, %v2301
        %2303 = vmatprep.mubr.f32.mxu0 0.0
        %2304 = vmatmul.mubr.f32.gmra.mrb[0].mxu0 %v2195
        %v2305 = vpop.f32.mrb[0].mxu0
        %v2306 = vadd.f32 %v2171, %v2305
        %v2307 = vpop.f32.mrb[0].mxu0
        %v2308 = vadd.f32 %v2171, %v2307
        %2309 = vdwg.mxu0
        %v2310 = vmax.f32 %v2264, 0.0
        %v2311 = vmax.f32 %v2266, 0.0
        %v2312 = vmax.f32 %v2270, 0.0
        %v2313 = vmax.f32 %v2272, 0.0
        %v2314 = vmax.f32 %v2276, 0.0
        %v2315 = vmax.f32 %v2278, 0.0
        %v2316 = vmax.f32 %v2282, 0.0
        %v2317 = vmax.f32 %v2284, 0.0
        %v2318 = vmax.f32 %v2288, 0.0
        %v2319 = vmax.f32 %v2290, 0.0
        %v2320 = vmax.f32 %v2294, 0.0
        %v2321 = vmax.f32 %v2296, 0.0
        %v2322 = vmax.f32 %v2300, 0.0
        %v2323 = vmax.f32 %v2302, 0.0
        %v2324 = vmax.f32 %v2306, 0.0
        %v2325 = vmax.f32 %v2308, 0.0
        %v2326 = vld [vmem:[%s16] sm:$0xff]
        %v2327 = vld [vmem:[%s16 + $0x8] sm:$0xff]
        %v2328 = vld [vmem:[%s16 + $0x10] sm:$0xff]
        %v2329 = vld [vmem:[%s16 + $0x18] sm:$0xff]
        %v2330 = vld [vmem:[%s16 + $0x20] sm:$0xff]
        %v2331 = vld [vmem:[%s16 + $0x28] sm:$0xff]
        %v2332 = vld [vmem:[%s16 + $0x30] sm:$0xff]
        %v2333 = vld [vmem:[%s16 + $0x38] sm:$0xff]
        %v2334 = vld [vmem:[%s17] sm:$0xff]
        %v2335 = vld [vmem:[%s17 + $0x8] sm:$0xff]
        %v2336 = vld [vmem:[%s17 + $0x10] sm:$0xff]
        %v2337 = vld [vmem:[%s17 + $0x18] sm:$0xff]
        %v2338 = vld [vmem:[%s17 + $0x20] sm:$0xff]
        %v2339 = vld [vmem:[%s17 + $0x28] sm:$0xff]
        %v2340 = vld [vmem:[%s17 + $0x30] sm:$0xff]
        %v2341 = vld [vmem:[%s17 + $0x38] sm:$0xff]
        %2343 = vset.pattern.permute.xlu0 0
        %2344 = vperm.xlu0 %2343, %v2334
        %v2345 = vpop.permute.xlu0 %2344
        %2348 = vset.pattern.permute.xlu0 0
        %2349 = vperm.xlu0 %2348, %v2335
        %v2350 = vpop.permute.xlu0 %2349
        %2353 = vset.pattern.permute.xlu0 0
        %2354 = vperm.xlu0 %2353, %v2336
        %v2355 = vpop.permute.xlu0 %2354
        %2358 = vset.pattern.permute.xlu0 0
        %2359 = vperm.xlu0 %2358, %v2337
        %v2360 = vpop.permute.xlu0 %2359
        %2363 = vset.pattern.permute.xlu0 0
        %2364 = vperm.xlu0 %2363, %v2338
        %v2365 = vpop.permute.xlu0 %2364
        %2368 = vset.pattern.permute.xlu0 0
        %2369 = vperm.xlu0 %2368, %v2339
        %v2370 = vpop.permute.xlu0 %2369
        %2373 = vset.pattern.permute.xlu0 0
        %2374 = vperm.xlu0 %2373, %v2340
        %v2375 = vpop.permute.xlu0 %2374
        %2378 = vset.pattern.permute.xlu0 0
        %2379 = vperm.xlu0 %2378, %v2341
        %v2380 = vpop.permute.xlu0 %2379
        %v2383 = vsel %vm1041, %v2326, 0
        %v2386 = vsel %vm1041, %v2327, 0
        %v2389 = vsel %vm1041, %v2328, 0
        %v2392 = vsel %vm1041, %v2329, 0
        %v2395 = vsel %vm1041, %v2330, 0
        %v2398 = vsel %vm1041, %v2331, 0
        %v2401 = vsel %vm1041, %v2332, 0
        %v2404 = vsel %vm1041, %v2333, 0
        %2406 = vmatprep.subr.mxu0 %v2311
        %2407 = vmatpush1.msra.mxu0 %v2310
        %2408 = vmatprep.subr.mxu0 %v2313
        %2409 = vmatpush1.msra.mxu0 %v2312
        %2410 = vmatprep.subr.mxu0 %v2315
        %2411 = vmatpush1.msra.mxu0 %v2314
        %2412 = vmatprep.subr.mxu0 %v2317
        %2413 = vmatpush1.msra.mxu0 %v2316
        %2414 = vmatprep.subr.mxu0 %v2319
        %2415 = vmatpush1.msra.mxu0 %v2318
        %2416 = vmatprep.subr.mxu0 %v2321
        %2417 = vmatpush1.msra.mxu0 %v2320
        %2418 = vmatprep.subr.mxu0 %v2323
        %2419 = vmatpush1.msra.mxu0 %v2322
        %2420 = vmatprep.subr.mxu0 %v2325
        %2421 = vmatpush1.msra.mxu0 %v2324
        %2422 = vmatprep.subr.mxu0 0.0
        %2423 = vmatpush1.msra.mxu0 0.0
        %2424 = vmatprep.subr.mxu0 0.0
        %2425 = vmatpush1.msra.mxu0 0.0
        %2426 = vmatprep.subr.mxu0 0.0
        %2427 = vmatpush1.msra.mxu0 0.0
        %2428 = vmatprep.subr.mxu0 0.0
        %2429 = vmatpush1.msra.mxu0 0.0
        %2430 = vmatprep.subr.mxu0 0.0
        %2431 = vmatpush1.msra.mxu0 0.0
        %2432 = vmatprep.subr.mxu0 0.0
        %2433 = vmatpush1.msra.mxu0 0.0
        %2434 = vmatprep.subr.mxu0 0.0
        %2435 = vmatpush1.msra.mxu0 0.0
        %2436 = vmatprep.subr.mxu0 0.0
        %2437 = vmatpush1.msra.mxu0 0.0
        %2438 = vmatprep.subr.mxu0 0.0
        %2439 = vmatpush1.msra.mxu0 0.0
        %2440 = vmatprep.subr.mxu0 0.0
        %2441 = vmatpush1.msra.mxu0 0.0
        %2442 = vmatprep.subr.mxu0 0.0
        %2443 = vmatpush1.msra.mxu0 0.0
        %2444 = vmatprep.subr.mxu0 0.0
        %2445 = vmatpush1.msra.mxu0 0.0
        %2446 = vmatprep.subr.mxu0 0.0
        %2447 = vmatpush1.msra.mxu0 0.0
        %2448 = vmatprep.subr.mxu0 0.0
        %2449 = vmatpush1.msra.mxu0 0.0
        %2450 = vmatprep.subr.mxu0 0.0
        %2451 = vmatpush1.msra.mxu0 0.0
        %2452 = vmatprep.subr.mxu0 0.0
        %2453 = vmatpush1.msra.mxu0 0.0
        %2454 = vmatprep.subr.mxu0 0.0
        %2455 = vmatpush1.msra.mxu0 0.0
        %2456 = vmatprep.subr.mxu0 0.0
        %2457 = vmatpush1.msra.mxu0 0.0
        %2458 = vmatprep.subr.mxu0 0.0
        %2459 = vmatpush1.msra.mxu0 0.0
        %2460 = vmatprep.subr.mxu0 0.0
        %2461 = vmatpush1.msra.mxu0 0.0
        %2462 = vmatprep.subr.mxu0 0.0
        %2463 = vmatpush1.msra.mxu0 0.0
        %2464 = vmatprep.subr.mxu0 0.0
        %2465 = vmatpush1.msra.mxu0 0.0
        %2466 = vmatprep.subr.mxu0 0.0
        %2467 = vmatpush1.msra.mxu0 0.0
        %2468 = vmatprep.subr.mxu0 0.0
        %2469 = vmatpush1.msra.mxu0 0.0
        %2470 = vmatprep.mubr.f32.mxu0 0.0
        %2471 = vmatmul.mubr.f32.gmra.mrb[0].mxu0 %v2383
        %v2472 = vpop.f32.mrb[0].mxu0
        %v2473 = vadd.f32 %v2345, %v2472
        %v2474 = vpop.f32.mrb[0].mxu0
        %v2475 = vadd.f32 %v2345, %v2474
        %2476 = vmatprep.mubr.f32.mxu0 0.0
        %2477 = vmatmul.mubr.f32.gmra.mrb[0].mxu0 %v2386
        %v2478 = vpop.f32.mrb[0].mxu0
        %v2479 = vadd.f32 %v2350, %v2478
        %v2480 = vpop.f32.mrb[0].mxu0
        %v2481 = vadd.f32 %v2350, %v2480
        %2482 = vmatprep.mubr.f32.mxu0 0.0
        %2483 = vmatmul.mubr.f32.gmra.mrb[0].mxu0 %v2389
        %v2484 = vpop.f32.mrb[0].mxu0
        %v2485 = vadd.f32 %v2355, %v2484
        %v2486 = vpop.f32.mrb[0].mxu0
        %v2487 = vadd.f32 %v2355, %v2486
        %2488 = vmatprep.mubr.f32.mxu0 0.0
        %2489 = vmatmul.mubr.f32.gmra.mrb[0].mxu0 %v2392
        %v2490 = vpop.f32.mrb[0].mxu0
        %v2491 = vadd.f32 %v2360, %v2490
        %v2492 = vpop.f32.mrb[0].mxu0
        %v2493 = vadd.f32 %v2360, %v2492
        %2494 = vmatprep.mubr.f32.mxu0 0.0
        %2495 = vmatmul.mubr.f32.gmra.mrb[0].mxu0 %v2395
        %v2496 = vpop.f32.mrb[0].mxu0
        %v2497 = vadd.f32 %v2365, %v2496
        %v2498 = vpop.f32.mrb[0].mxu0
        %v2499 = vadd.f32 %v2365, %v2498
        %2500 = vmatprep.mubr.f32.mxu0 0.0
        %2501 = vmatmul.mubr.f32.gmra.mrb[0].mxu0 %v2398
        %v2502 = vpop.f32.mrb[0].mxu0
        %v2503 = vadd.f32 %v2370, %v2502
        %v2504 = vpop.f32.mrb[0].mxu0
        %v2505 = vadd.f32 %v2370, %v2504
        %2506 = vmatprep.mubr.f32.mxu0 0.0
        %2507 = vmatmul.mubr.f32.gmra.mrb[0].mxu0 %v2401
        %v2508 = vpop.f32.mrb[0].mxu0
        %v2509 = vadd.f32 %v2375, %v2508
        %v2510 = vpop.f32.mrb[0].mxu0
        %v2511 = vadd.f32 %v2375, %v2510
        %2512 = vmatprep.mubr.f32.mxu0 0.0
        %2513 = vmatmul.mubr.f32.gmra.mrb[0].mxu0 %v2404
        %v2514 = vpop.f32.mrb[0].mxu0
        %v2515 = vadd.f32 %v2380, %v2514
        %v2516 = vpop.f32.mrb[0].mxu0
        %v2517 = vadd.f32 %v2380, %v2516
        %2518 = vdwg.mxu0
        %v2519 = vmax.f32 %v2473, 0.0
        %v2520 = vmax.f32 %v2475, 0.0
        %v2521 = vmax.f32 %v2479, 0.0
        %v2522 = vmax.f32 %v2481, 0.0
        %v2523 = vmax.f32 %v2485, 0.0
        %v2524 = vmax.f32 %v2487, 0.0
        %v2525 = vmax.f32 %v2491, 0.0
        %v2526 = vmax.f32 %v2493, 0.0
        %v2527 = vmax.f32 %v2497, 0.0
        %v2528 = vmax.f32 %v2499, 0.0
        %v2529 = vmax.f32 %v2503, 0.0
        %v2530 = vmax.f32 %v2505, 0.0
        %v2531 = vmax.f32 %v2509, 0.0
        %v2532 = vmax.f32 %v2511, 0.0
        %v2533 = vmax.f32 %v2515, 0.0
        %v2534 = vmax.f32 %v2517, 0.0
        %v2535 = vld [vmem:[%s18] sm:$0xff]
        %v2536 = vld [vmem:[%s18 + $0x8] sm:$0xff]
        %v2537 = vld [vmem:[%s18 + $0x10] sm:$0xff]
        %v2538 = vld [vmem:[%s18 + $0x18] sm:$0xff]
        %v2539 = vld [vmem:[%s18 + $0x20] sm:$0xff]
        %v2540 = vld [vmem:[%s18 + $0x28] sm:$0xff]
        %v2541 = vld [vmem:[%s18 + $0x30] sm:$0xff]
        %v2542 = vld [vmem:[%s18 + $0x38] sm:$0xff]
        %v2543 = vld [vmem:[%s19] sm:$0xff]
        %v2544 = vld [vmem:[%s19 + $0x8] sm:$0xff]
        %v2545 = vld [vmem:[%s19 + $0x10] sm:$0xff]
        %v2546 = vld [vmem:[%s19 + $0x18] sm:$0xff]
        %v2547 = vld [vmem:[%s19 + $0x20] sm:$0xff]
        %v2548 = vld [vmem:[%s19 + $0x28] sm:$0xff]
        %v2549 = vld [vmem:[%s19 + $0x30] sm:$0xff]
        %v2550 = vld [vmem:[%s19 + $0x38] sm:$0xff]
        %2552 = vset.pattern.permute.xlu0 0
        %2553 = vperm.xlu0 %2552, %v2543
        %v2554 = vpop.permute.xlu0 %2553
        %2557 = vset.pattern.permute.xlu0 0
        %2558 = vperm.xlu0 %2557, %v2544
        %v2559 = vpop.permute.xlu0 %2558
        %2562 = vset.pattern.permute.xlu0 0
        %2563 = vperm.xlu0 %2562, %v2545
        %v2564 = vpop.permute.xlu0 %2563
        %2567 = vset.pattern.permute.xlu0 0
        %2568 = vperm.xlu0 %2567, %v2546
        %v2569 = vpop.permute.xlu0 %2568
        %2572 = vset.pattern.permute.xlu0 0
        %2573 = vperm.xlu0 %2572, %v2547
        %v2574 = vpop.permute.xlu0 %2573
        %2577 = vset.pattern.permute.xlu0 0
        %2578 = vperm.xlu0 %2577, %v2548
        %v2579 = vpop.permute.xlu0 %2578
        %2582 = vset.pattern.permute.xlu0 0
        %2583 = vperm.xlu0 %2582, %v2549
        %v2584 = vpop.permute.xlu0 %2583
        %2587 = vset.pattern.permute.xlu0 0
        %2588 = vperm.xlu0 %2587, %v2550
        %v2589 = vpop.permute.xlu0 %2588
        %v2592 = vsel %vm1041, %v2535, 0
        %v2595 = vsel %vm1041, %v2536, 0
        %v2598 = vsel %vm1041, %v2537, 0
        %v2601 = vsel %vm1041, %v2538, 0
        %v2604 = vsel %vm1041, %v2539, 0
        %v2607 = vsel %vm1041, %v2540, 0
        %v2610 = vsel %vm1041, %v2541, 0
        %v2613 = vsel %vm1041, %v2542, 0
        %2615 = vmatprep.subr.mxu0 %v2520
        %2616 = vmatpush1.msra.mxu0 %v2519
        %2617 = vmatprep.subr.mxu0 %v2522
        %2618 = vmatpush1.msra.mxu0 %v2521
        %2619 = vmatprep.subr.mxu0 %v2524
        %2620 = vmatpush1.msra.mxu0 %v2523
        %2621 = vmatprep.subr.mxu0 %v2526
        %2622 = vmatpush1.msra.mxu0 %v2525
        %2623 = vmatprep.subr.mxu0 %v2528
        %2624 = vmatpush1.msra.mxu0 %v2527
        %2625 = vmatprep.subr.mxu0 %v2530
        %2626 = vmatpush1.msra.mxu0 %v2529
        %2627 = vmatprep.subr.mxu0 %v2532
        %2628 = vmatpush1.msra.mxu0 %v2531
        %2629 = vmatprep.subr.mxu0 %v2534
        %2630 = vmatpush1.msra.mxu0 %v2533
        %2631 = vmatprep.subr.mxu0 0.0
        %2632 = vmatpush1.msra.mxu0 0.0
        %2633 = vmatprep.subr.mxu0 0.0
        %2634 = vmatpush1.msra.mxu0 0.0
        %2635 = vmatprep.subr.mxu0 0.0
        %2636 = vmatpush1.msra.mxu0 0.0
        %2637 = vmatprep.subr.mxu0 0.0
        %2638 = vmatpush1.msra.mxu0 0.0
        %2639 = vmatprep.subr.mxu0 0.0
        %2640 = vmatpush1.msra.mxu0 0.0
        %2641 = vmatprep.subr.mxu0 0.0
        %2642 = vmatpush1.msra.mxu0 0.0
        %2643 = vmatprep.subr.mxu0 0.0
        %2644 = vmatpush1.msra.mxu0 0.0
        %2645 = vmatprep.subr.mxu0 0.0
        %2646 = vmatpush1.msra.mxu0 0.0
        %2647 = vmatprep.subr.mxu0 0.0
        %2648 = vmatpush1.msra.mxu0 0.0
        %2649 = vmatprep.subr.mxu0 0.0
        %2650 = vmatpush1.msra.mxu0 0.0
        %2651 = vmatprep.subr.mxu0 0.0
        %2652 = vmatpush1.msra.mxu0 0.0
        %2653 = vmatprep.subr.mxu0 0.0
        %2654 = vmatpush1.msra.mxu0 0.0
        %2655 = vmatprep.subr.mxu0 0.0
        %2656 = vmatpush1.msra.mxu0 0.0
        %2657 = vmatprep.subr.mxu0 0.0
        %2658 = vmatpush1.msra.mxu0 0.0
        %2659 = vmatprep.subr.mxu0 0.0
        %2660 = vmatpush1.msra.mxu0 0.0
        %2661 = vmatprep.subr.mxu0 0.0
        %2662 = vmatpush1.msra.mxu0 0.0
        %2663 = vmatprep.subr.mxu0 0.0
        %2664 = vmatpush1.msra.mxu0 0.0
        %2665 = vmatprep.subr.mxu0 0.0
        %2666 = vmatpush1.msra.mxu0 0.0
        %2667 = vmatprep.subr.mxu0 0.0
        %2668 = vmatpush1.msra.mxu0 0.0
        %2669 = vmatprep.subr.mxu0 0.0
        %2670 = vmatpush1.msra.mxu0 0.0
        %2671 = vmatprep.subr.mxu0 0.0
        %2672 = vmatpush1.msra.mxu0 0.0
        %2673 = vmatprep.subr.mxu0 0.0
        %2674 = vmatpush1.msra.mxu0 0.0
        %2675 = vmatprep.subr.mxu0 0.0
        %2676 = vmatpush1.msra.mxu0 0.0
        %2677 = vmatprep.subr.mxu0 0.0
        %2678 = vmatpush1.msra.mxu0 0.0
        %2679 = vmatprep.mubr.f32.mxu0 0.0
        %2680 = vmatmul.mubr.f32.gmra.mrb[0].mxu0 %v2592
        %v2681 = vpop.f32.mrb[0].mxu0
        %v2682 = vadd.f32 %v2554, %v2681
        %v2683 = vpop.f32.mrb[0].mxu0
        %v2684 = vadd.f32 %v2554, %v2683
        %2685 = vmatprep.mubr.f32.mxu0 0.0
        %2686 = vmatmul.mubr.f32.gmra.mrb[0].mxu0 %v2595
        %v2687 = vpop.f32.mrb[0].mxu0
        %v2688 = vadd.f32 %v2559, %v2687
        %v2689 = vpop.f32.mrb[0].mxu0
        %v2690 = vadd.f32 %v2559, %v2689
        %2691 = vmatprep.mubr.f32.mxu0 0.0
        %2692 = vmatmul.mubr.f32.gmra.mrb[0].mxu0 %v2598
        %v2693 = vpop.f32.mrb[0].mxu0
        %v2694 = vadd.f32 %v2564, %v2693
        %v2695 = vpop.f32.mrb[0].mxu0
        %v2696 = vadd.f32 %v2564, %v2695
        %2697 = vmatprep.mubr.f32.mxu0 0.0
        %2698 = vmatmul.mubr.f32.gmra.mrb[0].mxu0 %v2601
        %v2699 = vpop.f32.mrb[0].mxu0
        %v2700 = vadd.f32 %v2569, %v2699
        %v2701 = vpop.f32.mrb[0].mxu0
        %v2702 = vadd.f32 %v2569, %v2701
        %2703 = vmatprep.mubr.f32.mxu0 0.0
        %2704 = vmatmul.mubr.f32.gmra.mrb[0].mxu0 %v2604
        %v2705 = vpop.f32.mrb[0].mxu0
        %v2706 = vadd.f32 %v2574, %v2705
        %v2707 = vpop.f32.mrb[0].mxu0
        %v2708 = vadd.f32 %v2574, %v2707
        %2709 = vmatprep.mubr.f32.mxu0 0.0
        %2710 = vmatmul.mubr.f32.gmra.mrb[0].mxu0 %v2607
        %v2711 = vpop.f32.mrb[0].mxu0
        %v2712 = vadd.f32 %v2579, %v2711
        %v2713 = vpop.f32.mrb[0].mxu0
        %v2714 = vadd.f32 %v2579, %v2713
        %2715 = vmatprep.mubr.f32.mxu0 0.0
        %2716 = vmatmul.mubr.f32.gmra.mrb[0].mxu0 %v2610
        %v2717 = vpop.f32.mrb[0].mxu0
        %v2718 = vadd.f32 %v2584, %v2717
        %v2719 = vpop.f32.mrb[0].mxu0
        %v2720 = vadd.f32 %v2584, %v2719
        %2721 = vmatprep.mubr.f32.mxu0 0.0
        %2722 = vmatmul.mubr.f32.gmra.mrb[0].mxu0 %v2613
        %v2723 = vpop.f32.mrb[0].mxu0
        %v2724 = vadd.f32 %v2589, %v2723
        %v2725 = vpop.f32.mrb[0].mxu0
        %v2726 = vadd.f32 %v2589, %v2725
        %2727 = vdwg.mxu0
        %v2728 = vld [vmem:[%s22] sm:$0xff]
        %v2730 = vcombine.high %v2728, %v2728
        %vm2731 = vcmask 31744
        %v2733 = vsel %vm2731, %v1833, 0
        %v2736 = vsel %vm2731, %v1838, 0
        %v2739 = vsel %vm2731, %v1843, 0
        %v2742 = vsel %vm2731, %v1848, 0
        %v2745 = vsel %vm2731, %v1853, 0
        %v2748 = vsel %vm2731, %v1858, 0
        %v2751 = vsel %vm2731, %v1863, 0
        %v2754 = vsel %vm2731, %v1868, 0
        %vm2756 = vcmask 1043456
        %v2757 = vsel %vm2756, %v2728, 0
        %v2759 = vsel %vm2756, %v2730, 0
        %2761 = vmatprep.subr.mxu0 %v2759
        %2762 = vmatpush1.msra.mxu0 %v2757
        %2763 = vmatprep.subr.mxu0 0.0
        %2764 = vmatpush1.msra.mxu0 0.0
        %2765 = vmatprep.subr.mxu0 0.0
        %2766 = vmatpush1.msra.mxu0 0.0
        %2767 = vmatprep.subr.mxu0 0.0
        %2768 = vmatpush1.msra.mxu0 0.0
        %2769 = vmatprep.subr.mxu0 0.0
        %2770 = vmatpush1.msra.mxu0 0.0
        %2771 = vmatprep.subr.mxu0 0.0
        %2772 = vmatpush1.msra.mxu0 0.0
        %2773 = vmatprep.subr.mxu0 0.0
        %2774 = vmatpush1.msra.mxu0 0.0
        %2775 = vmatprep.subr.mxu0 0.0
        %2776 = vmatpush1.msra.mxu0 0.0
        %2777 = vmatprep.subr.mxu0 0.0
        %2778 = vmatpush1.msra.mxu0 0.0
        %2779 = vmatprep.subr.mxu0 0.0
        %2780 = vmatpush1.msra.mxu0 0.0
        %2781 = vmatprep.subr.mxu0 0.0
        %2782 = vmatpush1.msra.mxu0 0.0
        %2783 = vmatprep.subr.mxu0 0.0
        %2784 = vmatpush1.msra.mxu0 0.0
        %2785 = vmatprep.subr.mxu0 0.0
        %2786 = vmatpush1.msra.mxu0 0.0
        %2787 = vmatprep.subr.mxu0 0.0
        %2788 = vmatpush1.msra.mxu0 0.0
        %2789 = vmatprep.subr.mxu0 0.0
        %2790 = vmatpush1.msra.mxu0 0.0
        %2791 = vmatprep.subr.mxu0 0.0
        %2792 = vmatpush1.msra.mxu0 0.0
        %2793 = vmatprep.subr.mxu0 0.0
        %2794 = vmatpush1.msra.mxu0 0.0
        %2795 = vmatprep.subr.mxu0 0.0
        %2796 = vmatpush1.msra.mxu0 0.0
        %2797 = vmatprep.subr.mxu0 0.0
        %2798 = vmatpush1.msra.mxu0 0.0
        %2799 = vmatprep.subr.mxu0 0.0
        %2800 = vmatpush1.msra.mxu0 0.0
        %2801 = vmatprep.subr.mxu0 0.0
        %2802 = vmatpush1.msra.mxu0 0.0
        %2803 = vmatprep.subr.mxu0 0.0
        %2804 = vmatpush1.msra.mxu0 0.0
        %2805 = vmatprep.subr.mxu0 0.0
        %2806 = vmatpush1.msra.mxu0 0.0
        %2807 = vmatprep.subr.mxu0 0.0
        %2808 = vmatpush1.msra.mxu0 0.0
        %2809 = vmatprep.subr.mxu0 0.0
        %2810 = vmatpush1.msra.mxu0 0.0
        %2811 = vmatprep.subr.mxu0 0.0
        %2812 = vmatpush1.msra.mxu0 0.0
        %2813 = vmatprep.subr.mxu0 0.0
        %2814 = vmatpush1.msra.mxu0 0.0
        %2815 = vmatprep.subr.mxu0 0.0
        %2816 = vmatpush1.msra.mxu0 0.0
        %2817 = vmatprep.subr.mxu0 0.0
        %2818 = vmatpush1.msra.mxu0 0.0
        %2819 = vmatprep.subr.mxu0 0.0
        %2820 = vmatpush1.msra.mxu0 0.0
        %2821 = vmatprep.subr.mxu0 0.0
        %2822 = vmatpush1.msra.mxu0 0.0
        %2823 = vmatprep.subr.mxu0 0.0
        %2824 = vmatpush1.msra.mxu0 0.0
        %2825 = vmatprep.mubr.f32.mxu0 0.0
        %2826 = vmatmul.mubr.f32.gmra.mrb[0].mxu0 %v2733
        %v2827 = vpop.f32.mrb[0].mxu0
        %v2828 = vadd.f32 0.0, %v2827
        %v2829 = vpop.f32.mrb[0].mxu0
        %v2830 = vadd.f32 0.0, %v2829
        %2831 = vmatprep.mubr.f32.mxu0 0.0
        %2832 = vmatmul.mubr.f32.gmra.mrb[0].mxu0 %v2736
        %v2833 = vpop.f32.mrb[0].mxu0
        %v2834 = vadd.f32 0.0, %v2833
        %v2835 = vpop.f32.mrb[0].mxu0
        %v2836 = vadd.f32 0.0, %v2835
        %2837 = vmatprep.mubr.f32.mxu0 0.0
        %2838 = vmatmul.mubr.f32.gmra.mrb[0].mxu0 %v2739
        %v2839 = vpop.f32.mrb[0].mxu0
        %v2840 = vadd.f32 0.0, %v2839
        %v2841 = vpop.f32.mrb[0].mxu0
        %v2842 = vadd.f32 0.0, %v2841
        %2843 = vmatprep.mubr.f32.mxu0 0.0
        %2844 = vmatmul.mubr.f32.gmra.mrb[0].mxu0 %v2742
        %v2845 = vpop.f32.mrb[0].mxu0
        %v2846 = vadd.f32 0.0, %v2845
        %v2847 = vpop.f32.mrb[0].mxu0
        %v2848 = vadd.f32 0.0, %v2847
        %2849 = vmatprep.mubr.f32.mxu0 0.0
        %2850 = vmatmul.mubr.f32.gmra.mrb[0].mxu0 %v2745
        %v2851 = vpop.f32.mrb[0].mxu0
        %v2852 = vadd.f32 0.0, %v2851
        %v2853 = vpop.f32.mrb[0].mxu0
        %v2854 = vadd.f32 0.0, %v2853
        %2855 = vmatprep.mubr.f32.mxu0 0.0
        %2856 = vmatmul.mubr.f32.gmra.mrb[0].mxu0 %v2748
        %v2857 = vpop.f32.mrb[0].mxu0
        %v2858 = vadd.f32 0.0, %v2857
        %v2859 = vpop.f32.mrb[0].mxu0
        %v2860 = vadd.f32 0.0, %v2859
        %2861 = vmatprep.mubr.f32.mxu0 0.0
        %2862 = vmatmul.mubr.f32.gmra.mrb[0].mxu0 %v2751
        %v2863 = vpop.f32.mrb[0].mxu0
        %v2864 = vadd.f32 0.0, %v2863
        %v2865 = vpop.f32.mrb[0].mxu0
        %v2866 = vadd.f32 0.0, %v2865
        %2867 = vmatprep.mubr.f32.mxu0 0.0
        %2868 = vmatmul.mubr.f32.gmra.mrb[0].mxu0 %v2754
        %v2869 = vpop.f32.mrb[0].mxu0
        %v2870 = vadd.f32 0.0, %v2869
        %v2871 = vpop.f32.mrb[0].mxu0
        %v2872 = vadd.f32 0.0, %v2871
        %2873 = vdwg.mxu0
        %v2874 = vmul.f32 %v2682, %v2828
        %v2875 = vmul.f32 %v2684, %v2830
        %v2876 = vmul.f32 %v2688, %v2834
        %v2877 = vmul.f32 %v2690, %v2836
        %v2878 = vmul.f32 %v2694, %v2840
        %v2879 = vmul.f32 %v2696, %v2842
        %v2880 = vmul.f32 %v2700, %v2846
        %v2881 = vmul.f32 %v2702, %v2848
        %v2882 = vmul.f32 %v2706, %v2852
        %v2883 = vmul.f32 %v2708, %v2854
        %v2884 = vmul.f32 %v2712, %v2858
        %v2885 = vmul.f32 %v2714, %v2860
        %v2886 = vmul.f32 %v2718, %v2864
        %v2887 = vmul.f32 %v2720, %v2866
        %v2888 = vmul.f32 %v2724, %v2870
        %v2889 = vmul.f32 %v2726, %v2872
        %v2890 = vld [vmem:[%s23] sm:$0x3]
        %v2891 = vld [vmem:[%s20] sm:$0x3]
        %2893 = vset.pattern.permute.xlu0 0
        %2894 = vperm.xlu0 %2893, %v2891
        %v2895 = vpop.permute.xlu0 %2894
        %v2898 = vsel %vm1041, %v2890, 0
        %2900 = vmatprep.subr.mxu0 %v2875
        %2901 = vmatpush1.msra.mxu0 %v2874
        %2902 = vmatprep.subr.mxu0 %v2877
        %2903 = vmatpush1.msra.mxu0 %v2876
        %2904 = vmatprep.subr.mxu0 %v2879
        %2905 = vmatpush1.msra.mxu0 %v2878
        %2906 = vmatprep.subr.mxu0 %v2881
        %2907 = vmatpush1.msra.mxu0 %v2880
        %2908 = vmatprep.subr.mxu0 %v2883
        %2909 = vmatpush1.msra.mxu0 %v2882
        %2910 = vmatprep.subr.mxu0 %v2885
        %2911 = vmatpush1.msra.mxu0 %v2884
        %2912 = vmatprep.subr.mxu0 %v2887
        %2913 = vmatpush1.msra.mxu0 %v2886
        %2914 = vmatprep.subr.mxu0 %v2889
        %2915 = vmatpush1.msra.mxu0 %v2888
        %2916 = vmatprep.subr.mxu0 0.0
        %2917 = vmatpush1.msra.mxu0 0.0
        %2918 = vmatprep.subr.mxu0 0.0
        %2919 = vmatpush1.msra.mxu0 0.0
        %2920 = vmatprep.subr.mxu0 0.0
        %2921 = vmatpush1.msra.mxu0 0.0
        %2922 = vmatprep.subr.mxu0 0.0
        %2923 = vmatpush1.msra.mxu0 0.0
        %2924 = vmatprep.subr.mxu0 0.0
        %2925 = vmatpush1.msra.mxu0 0.0
        %2926 = vmatprep.subr.mxu0 0.0
        %2927 = vmatpush1.msra.mxu0 0.0
        %2928 = vmatprep.subr.mxu0 0.0
        %2929 = vmatpush1.msra.mxu0 0.0
        %2930 = vmatprep.subr.mxu0 0.0
        %2931 = vmatpush1.msra.mxu0 0.0
        %2932 = vmatprep.subr.mxu0 0.0
        %2933 = vmatpush1.msra.mxu0 0.0
        %2934 = vmatprep.subr.mxu0 0.0
        %2935 = vmatpush1.msra.mxu0 0.0
        %2936 = vmatprep.subr.mxu0 0.0
        %2937 = vmatpush1.msra.mxu0 0.0
        %2938 = vmatprep.subr.mxu0 0.0
        %2939 = vmatpush1.msra.mxu0 0.0
        %2940 = vmatprep.subr.mxu0 0.0
        %2941 = vmatpush1.msra.mxu0 0.0
        %2942 = vmatprep.subr.mxu0 0.0
        %2943 = vmatpush1.msra.mxu0 0.0
        %2944 = vmatprep.subr.mxu0 0.0
        %2945 = vmatpush1.msra.mxu0 0.0
        %2946 = vmatprep.subr.mxu0 0.0
        %2947 = vmatpush1.msra.mxu0 0.0
        %2948 = vmatprep.subr.mxu0 0.0
        %2949 = vmatpush1.msra.mxu0 0.0
        %2950 = vmatprep.subr.mxu0 0.0
        %2951 = vmatpush1.msra.mxu0 0.0
        %2952 = vmatprep.subr.mxu0 0.0
        %2953 = vmatpush1.msra.mxu0 0.0
        %2954 = vmatprep.subr.mxu0 0.0
        %2955 = vmatpush1.msra.mxu0 0.0
        %2956 = vmatprep.subr.mxu0 0.0
        %2957 = vmatpush1.msra.mxu0 0.0
        %2958 = vmatprep.subr.mxu0 0.0
        %2959 = vmatpush1.msra.mxu0 0.0
        %2960 = vmatprep.subr.mxu0 0.0
        %2961 = vmatpush1.msra.mxu0 0.0
        %2962 = vmatprep.subr.mxu0 0.0
        %2963 = vmatpush1.msra.mxu0 0.0
        %2964 = vmatprep.mubr.f32.mxu0 0.0
        %2965 = vmatmul.mubr.f32.gmra.mrb[0].mxu0 %v2898
        %v2966 = vpop.f32.mrb[0].mxu0
        %v2967 = vadd.f32 %v2895, %v2966
        %v2968 = vpop.f32.mrb[0].mxu0
        %v2969 = vadd.f32 %v2895, %v2968
        %2970 = vdwg.mxu0
        %v2973 = vcombine.low %v2967, %v2969
        %v2975 = vunpack.c.l.s4 1983009808
        %v2976 = vunpack.c.0.s8 %v2975
        %v2977 = vlaneseq
        %v2978 = vshrl.u32 %v2977, 7
        %v2979 = vsub.s32 %v2976, %v2978
        %v2980 = vrot.slane %v2973, %v2979
        %2982 = vst [vmem:[%s744] sm:$0xf] %v2980
        %s2983 = sand.u32 %s560, 1
        %s2984 = scalar_lea.sflag [#allocation3], %s2983
        %s2985 = sand.u32 %s560, 1
        %s2986 = smul.addr %s2985, 4
        %s2987 = scalar_lea.vmem [#allocation2], %s2986
        // Predicated region
        $region117: #{tpu_custom_call.1} parent=115 // pred_check
          %p2988 = pneg %p570
        $region118: #{tpu_custom_call.1} parent=115 // pred_check_branch
          %2990 = sbr.rel (%p2988) target = $region120
        $region119: #{tpu_custom_call.1} parent=115 // pred_region
          %s2991 = smul.u32 2, %s38
          %s2993 = ssub.s32 64, 64
          %2994 = vsyncadd %s2984, %s2993
          %s2995 = smul.addr %s2991, 32
          %s2996 = scalar_lea.hbm %s24, %s2995
          %s2998 = sshll.u32 %s2987, 4
          %s2999 = int_to_ptr.vmem [resolvable:$true] %s2998
          %3001 = dma.vmem_to_hbm [thread:$0]  %s2999, 64, %s2996, %s2984
        $region120: #{tpu_custom_call.1} parent=115 // pred_fallthru
          _
      $region116: #{tpu_custom_call.1} parent=5 // pred_fallthru
        _
      %p3002 = scmp.le.s32.totalorder 2, %s33
      // Predicated region
      $region121: #{tpu_custom_call.1} parent=5 // pred_check
        %p3003 = pneg %p3002
      $region122: #{tpu_custom_call.1} parent=5 // pred_check_branch
        %3005 = sbr.rel (%p3003) target = $region124
      $region123: #{tpu_custom_call.1} parent=5 // pred_region
        %s3006 = ssub.s32 %s33, 2
        // Predicated region
        $region125: #{tpu_custom_call.1} parent=123 // pred_check
          %p3007 = pneg %p576
        $region126: #{tpu_custom_call.1} parent=123 // pred_check_branch
          %3009 = sbr.rel (%p3007) target = $region128
        $region127: #{tpu_custom_call.1} parent=123 // pred_region
          %s3010 = sand.u32 %s561, 1
          %s3011 = scalar_lea.sflag [#allocation3], %s3010
          %s3012 = sand.u32 %s561, 1
          %s3013 = smul.addr %s3012, 4
          %s3014 = scalar_lea.vmem [#allocation2], %s3013
          %3015 = dma.done %s3011, 64
        $region128: #{tpu_custom_call.1} parent=123 // pred_fallthru
          _
      $region124: #{tpu_custom_call.1} parent=5 // pred_fallthru
        _
    $region6: #{tpu_custom_call.1} parent=1 // loop_footer
      %s37 = sadd.s32 1, %s33
    $region7: #{tpu_custom_call.1} parent=1 // loop_footer_branch
      %32 = sbr.rel target = $region3
    $region8: #{tpu_custom_call.1} parent=1 // loop_exit
      _
    %3016 = vsyncpa [#allocation3], 1
    %s3017 = scalar_lea.sflag [#allocation3], 1
    %3018 = vsyncpa %s3017, 1

</llo_original>
